<compile_context>
chip_gen: v7x
topology: tpu7x:2x2x1
jax: 0.10.0
libtpu: 0.0.40
codegen_flags: <defaults>
</compile_context>

<pallas_src>
import jax
import jax.numpy as jnp
from jax.experimental import pallas as pl
from jax.experimental.pallas import tpu as pltpu


def _resblock_kernel(x_ref, xup_ref, xdn_ref, w1_ref, b1_ref, w2_ref, b2_ref,
                     out_ref, pad1_ref, pad2_ref):
    # x_ref   : (1, TH, Wh, 2C)  current row tile, pair-packed channels-last
    # xup_ref : (1, 2, Wh, 2C)   image rows r0-2, r0-1   (ignored at top tile)
    # xdn_ref : (1, 2, Wh, 2C)   image rows r0+TH, r0+TH+1 (ignored at bottom)
    # w*_ref  : (12C, 2C) packed im2col weights; b*_ref: (1, 2C) packed bias
    # out_ref : (1, TH, Wh, 2C)
    # pad1_ref: (TH+4, Wpad, 2C) zero-padded, shifted conv1 input
    # pad2_ref: (TH+2, Wpad, 2C) zero-padded, shifted conv2 input
    _, TH, Wh, C2 = x_ref.shape
    C = C2 // 2
    f32 = jnp.float32
    t = pl.program_id(1)
    t_last = pl.num_programs(1) - 1

    def shift_pack(data):
        # data (R, Wh, 2C) pair-packed -> (R, Wh+1, 2C) where padded col p
        # holds [image pixel 2p-1 | image pixel 2p]; zero outside the image.
        R = data.shape[0]
        zc = jnp.zeros((R, 1, C), f32)
        lo = jnp.concatenate([zc, data[:, :, C:]], axis=1)    # pixels 2p-1
        hi = jnp.concatenate([data[:, :, :C], zc], axis=1)    # pixels 2p
        return jnp.concatenate([lo, hi], axis=2)

    def conv(pad_ref, rows, w_ref, b_ref):
        # 6 accumulating K=2C matmuls read directly from the padded scratch
        # (no im2col patch buffer); identical MXU cycles to one K=12C matmul.
        M = rows * Wh
        acc = None
        for dh in range(3):
            for jp in range(2):
                blk = dh * 2 + jp
                a = pad_ref[dh:dh + rows, jp:jp + Wh, :].reshape(M, C2)
                d = jnp.dot(a, w_ref[blk * C2:(blk + 1) * C2, :],
                            preferred_element_type=f32)
                acc = d if acc is None else acc + d
        return acc + b_ref[...]

    # ---- conv1 padded input: image rows r0-2 .. r0+TH+1 (zeros off-image) ----
    pad1_ref[0:2, 0:Wh + 1, :] = shift_pack(xup_ref[0].astype(f32))
    pad1_ref[2:TH + 2, 0:Wh + 1, :] = shift_pack(x_ref[0].astype(f32))
    pad1_ref[TH + 2:TH + 4, 0:Wh + 1, :] = shift_pack(xdn_ref[0].astype(f32))

    @pl.when(t == 0)
    def _():  # image rows -2, -1 are outside the image -> conv zero padding
        pad1_ref[0:2, 0:Wh + 1, :] = jnp.zeros((2, Wh + 1, C2), f32)

    @pl.when(t == t_last)
    def _():  # image rows H, H+1
        pad1_ref[TH + 2:TH + 4, 0:Wh + 1, :] = jnp.zeros((2, Wh + 1, C2), f32)

    # ---- conv1 + bias + ReLU on TH+2 rows (includes conv2's 1-row halo) ----
    act = jnp.maximum(conv(pad1_ref, TH + 2, w1_ref, b1_ref), 0.0)

    # ---- repack conv1 output as conv2's zero-padded, shifted input ----
    pad2_ref[0:TH + 2, 0:Wh + 1, :] = shift_pack(act.reshape(TH + 2, Wh, C2))

    @pl.when(t == 0)
    def _():  # conv2's zero padding row above the image
        pad2_ref[0:1, 0:Wh + 1, :] = jnp.zeros((1, Wh + 1, C2), f32)

    @pl.when(t == t_last)
    def _():  # conv2's zero padding row below the image
        pad2_ref[TH + 1:TH + 2, 0:Wh + 1, :] = jnp.zeros((1, Wh + 1, C2), f32)

    # ---- conv2 + residual add (x re-read from its resident VMEM block) ----
    y = conv(pad2_ref, TH, w2_ref, b2_ref).reshape(TH, Wh, C2)
    out_ref[0] = (x_ref[0].astype(f32) + y).astype(out_ref.dtype)


def pack_conv_params(w_pt, b):
    """OIHW (C,C,3,3) weight + (C,) bias -> pixel-pair packed im2col params.

    Done once per model outside the kernel call path (const-foldable).
    """
    C = w_pt.shape[0]
    w = jnp.transpose(w_pt, (2, 3, 1, 0))                     # (3,3,Cin,Cout) HWIO
    z = jnp.zeros((3, 1, C, C), w.dtype)
    w_even = jnp.concatenate([w, z], axis=1)                  # even pixel: dw=0,1,2
    w_odd = jnp.concatenate([z, w], axis=1)                   # odd  pixel: dw=1,2,3
    wp = jnp.concatenate([w_even, w_odd], axis=-1)            # (3, 4, C, 2C)
    wp = wp.reshape(12 * C, 2 * C).astype(jnp.float32)
    bp = jnp.concatenate([b, b]).reshape(1, 2 * C).astype(jnp.float32)
    return wp, bp


def _pick_tile_h(H, Wh, C2, budget_bytes=24 * 1024 * 1024):
    """Largest even divisor of H whose per-tile f32 working set fits the budget."""
    per_row = 10 * Wh * C2 * 4        # x/out double-buffers + 2 pads + matmul temps
    max_rows = int(max(2, min(H, budget_bytes // max(per_row, 1))))
    th = 2
    for cand in range(2, max_rows + 1, 2):
        if H % cand == 0:
            th = cand
    return th


def _vmem_limit_bytes():
    # ~3/4 of physical VMEM (v5e/v6e: 128 MiB, v7x: 64 MiB), with a safe fallback.
    try:
        cap = pltpu.get_tpu_info().vmem_capacity_bytes
    except Exception:
        cap = 64 * 1024 * 1024
    return int(min(max(cap * 3 // 4, 32 * 1024 * 1024), 100 * 1024 * 1024))


def residual_block_no_bn_nhwc(x_nhwc, wp1, bp1, wp2, bp2, tile_h=None):
    """Core call: NHWC input, pre-packed weights/biases."""
    N, H, W, C = x_nhwc.shape
    assert W % 2 == 0 and H % 2 == 0, "pixel-pair packing / row halos need even H, W"
    Wh = W // 2
    C2 = 2 * C
    TH = int(tile_h) if tile_h is not None else _pick_tile_h(H, Wh, C2)
    assert TH % 2 == 0 and H % TH == 0, f"tile_h={TH} must be even and divide H={H}"
    HT = H // TH
    HB2 = H // 2                      # number of 2-row halo blocks along H
    Wpad = ((Wh + 1 + 7) // 8) * 8    # 8-aligned sublane dim for pad scratches
    KC = wp1.shape[0]                 # 12 * C

    x_packed = x_nhwc.reshape(N, H, Wh, C2)   # contiguous pixel-pair view

    grid_spec = pltpu.PrefetchScalarGridSpec(
        num_scalar_prefetch=0,
        grid=(N, HT),
        in_specs=[
            # current row tile (auto-pipelined)
            pl.BlockSpec((1, TH, Wh, C2), lambda n, t: (n, t, 0, 0)),
            # 2-row halo above (image rows r0-2, r0-1), clamped at the top
            pl.BlockSpec((1, 2, Wh, C2),
                         lambda n, t: (n, jnp.maximum(t * (TH // 2) - 1, 0), 0, 0)),
            # 2-row halo below (image rows r0+TH, r0+TH+1), clamped at the bottom
            pl.BlockSpec((1, 2, Wh, C2),
                         lambda n, t: (n, jnp.minimum((t + 1) * (TH // 2), HB2 - 1),
                                       0, 0)),
            # weights / biases: constant index maps -> not re-DMA'd per step
            pl.BlockSpec((KC, C2), lambda n, t: (0, 0)),
            pl.BlockSpec((1, C2), lambda n, t: (0, 0)),
            pl.BlockSpec((KC, C2), lambda n, t: (0, 0)),
            pl.BlockSpec((1, C2), lambda n, t: (0, 0)),
        ],
        out_specs=pl.BlockSpec((1, TH, Wh, C2), lambda n, t: (n, t, 0, 0)),
        scratch_shapes=[
            pltpu.VMEM((TH + 4, Wpad, C2), jnp.float32),   # conv1 padded input
            pltpu.VMEM((TH + 2, Wpad, C2), jnp.float32),   # conv2 padded input
        ],
    )

    out_packed = pl.pallas_call(
        _resblock_kernel,
        out_shape=jax.ShapeDtypeStruct((N, H, Wh, C2), x_nhwc.dtype),
        grid_spec=grid_spec,
        compiler_params=pltpu.CompilerParams(
            dimension_semantics=("parallel", "parallel"),
            vmem_limit_bytes=_vmem_limit_bytes()),
    )(x_packed, x_packed, x_packed, wp1, bp1, wp2, bp2)

    return out_packed.reshape(N, H, W, C)


def residual_block_no_bn(x_nchw, w1_pt, b1, w2_pt, b2, tile_h=None):
    """Drop-in NCHW / OIHW interface matching the PyTorch module."""
    wp1, bp1 = pack_conv_params(w1_pt, b1)
    wp2, bp2 = pack_conv_params(w2_pt, b2)
    x_nhwc = jnp.transpose(x_nchw, (0, 2, 3, 1))
    out_nhwc = residual_block_no_bn_nhwc(x_nhwc, wp1, bp1, wp2, bp2, tile_h=tile_h)
    return jnp.transpose(out_nhwc, (0, 3, 1, 2))


def _reference(x_nchw, w1_pt, b1, w2_pt, b2):
    """Pure-JAX reference matching PyTorch nn.Conv2d semantics (NCHW, OIHW)."""
    dn = ("NCHW", "OIHW", "NCHW")
    c1 = jax.lax.conv_general_dilated(x_nchw, w1_pt, (1, 1), ((1, 1), (1, 1)),
                                      dimension_numbers=dn)
    c1 = jnp.maximum(c1 + b1[None, :, None, None], 0.0)
    c2 = jax.lax.conv_general_dilated(c1, w2_pt, (1, 1), ((1, 1), (1, 1)),
                                      dimension_numbers=dn)
    c2 = c2 + b2[None, :, None, None]
    return x_nchw + c2


if __name__ == "__main__":
    nf = 64                       # module default channel count
    N, H, W = 2, 24, 16           # tile_h=8 -> top / interior / bottom row tiles

    key = jax.random.PRNGKey(0)
    kx, kw1, kb1, kw2, kb2 = jax.random.split(key, 5)

    x = jax.random.normal(kx, (N, nf, H, W), dtype=jnp.float32)
    w1 = jax.random.normal(kw1, (nf, nf, 3, 3), dtype=jnp.float32) * 0.05
    b1 = jax.random.normal(kb1, (nf,), dtype=jnp.float32) * 0.05
    w2 = jax.random.normal(kw2, (nf, nf, 3, 3), dtype=jnp.float32) * 0.05
    b2 = jax.random.normal(kb2, (nf,), dtype=jnp.float32) * 0.05

    out = jax.block_until_ready(residual_block_no_bn(x, w1, b1, w2, b2, tile_h=8))
    ref = jax.block_until_ready(_reference(x, w1, b1, w2, b2))

    assert out.shape == (N, nf, H, W)
    max_err = float(jnp.max(jnp.abs(out - ref)))
    assert max_err < 1e-3, max_err

    print("KERNEL_OK")
</pallas_src>

<mosaic_0001>
module attributes {stable_mosaic.version = 11 : i64} {
  func.func @_resblock_kernel(%arg0: i32, %arg1: i32, %arg2: memref<1x8x8x128xf32, #tpu.memory_space<vmem>>, %arg3: memref<1x2x8x128xf32, #tpu.memory_space<vmem>>, %arg4: memref<1x2x8x128xf32, #tpu.memory_space<vmem>>, %arg5: memref<768x128xf32, #tpu.memory_space<vmem>>, %arg6: memref<1x128xf32, #tpu.memory_space<vmem>>, %arg7: memref<768x128xf32, #tpu.memory_space<vmem>>, %arg8: memref<1x128xf32, #tpu.memory_space<vmem>>, %arg9: memref<1x8x8x128xf32, #tpu.memory_space<vmem>>, %arg10: memref<12x16x128xf32, #tpu.memory_space<vmem>>, %arg11: memref<10x16x128xf32, #tpu.memory_space<vmem>>) attributes {dimension_semantics = [#tpu.dimension_semantics<parallel>, #tpu.dimension_semantics<parallel>], iteration_bounds = array<i64: 2, 3>, scalar_prefetch = 0 : i64, scratch_operands = 2 : i64, tpu.core_type = #tpu.core_type<tc>, window_params = [{transform_indices = @transform_0, window_bounds = array<i64: 1, 8, 8, 128>}, {transform_indices = @transform_1, window_bounds = array<i64: 1, 2, 8, 128>}, {transform_indices = @transform_2, window_bounds = array<i64: 1, 2, 8, 128>}, {pipeline_mode = #tpu.pipeline_mode<synchronous>, transform_indices = @transform_3, window_bounds = array<i64: 768, 128>}, {pipeline_mode = #tpu.pipeline_mode<synchronous>, transform_indices = @transform_4, window_bounds = array<i64: 1, 128>}, {pipeline_mode = #tpu.pipeline_mode<synchronous>, transform_indices = @transform_5, window_bounds = array<i64: 768, 128>}, {pipeline_mode = #tpu.pipeline_mode<synchronous>, transform_indices = @transform_6, window_bounds = array<i64: 1, 128>}, {transform_indices = @transform_7, window_bounds = array<i64: 1, 8, 8, 128>}]} {
    %c0 = arith.constant 0 : index
    %c0_0 = arith.constant 0 : index
    %c0_1 = arith.constant 0 : index
    %c0_2 = arith.constant 0 : index
    %0 = vector.load %arg3[%c0, %c0_0, %c0_1, %c0_2] : memref<1x2x8x128xf32, #tpu.memory_space<vmem>>, vector<1x2x8x128xf32>
    %1 = vector.shape_cast %0 : vector<1x2x8x128xf32> to vector<2x8x128xf32>
    %cst = arith.constant 0.000000e+00 : f32
    %2 = vector.broadcast %cst : f32 to vector<2x1x64xf32>
    %3 = vector.extract_strided_slice %1 {offsets = [0, 0, 64], sizes = [2, 8, 64], strides = [1, 1, 1]} : vector<2x8x128xf32> to vector<2x8x64xf32>
    %4 = tpu.concatenate %2, %3 in 1 : vector<2x1x64xf32>, vector<2x8x64xf32> -> vector<2x9x64xf32>
    %5 = vector.extract_strided_slice %1 {offsets = [0, 0, 0], sizes = [2, 8, 64], strides = [1, 1, 1]} : vector<2x8x128xf32> to vector<2x8x64xf32>
    %6 = tpu.concatenate %5, %2 in 1 : vector<2x8x64xf32>, vector<2x1x64xf32> -> vector<2x9x64xf32>
    %7 = tpu.concatenate %4, %6 in 2 : vector<2x9x64xf32>, vector<2x9x64xf32> -> vector<2x9x128xf32>
    %c0_3 = arith.constant 0 : index
    %c0_4 = arith.constant 0 : index
    %c0_5 = arith.constant 0 : index
    %8 = vector.load %arg10[%c0_3, %c0_4, %c0_5] : memref<12x16x128xf32, #tpu.memory_space<vmem>>, vector<2x9x128xf32>
    tpu.vector_store %arg10[%c0_3, %c0_4, %c0_5], %7 {strides = array<i32>} : memref<12x16x128xf32, #tpu.memory_space<vmem>>, vector<2x9x128xf32>,
    %c0_6 = arith.constant 0 : index
    %c0_7 = arith.constant 0 : index
    %c0_8 = arith.constant 0 : index
    %c0_9 = arith.constant 0 : index
    %9 = vector.load %arg2[%c0_6, %c0_7, %c0_8, %c0_9] : memref<1x8x8x128xf32, #tpu.memory_space<vmem>>, vector<1x8x8x128xf32>
    %10 = vector.shape_cast %9 : vector<1x8x8x128xf32> to vector<8x8x128xf32>
    %cst_10 = arith.constant 0.000000e+00 : f32
    %11 = vector.broadcast %cst_10 : f32 to vector<8x1x64xf32>
    %12 = vector.extract_strided_slice %10 {offsets = [0, 0, 64], sizes = [8, 8, 64], strides = [1, 1, 1]} : vector<8x8x128xf32> to vector<8x8x64xf32>
    %13 = tpu.concatenate %11, %12 in 1 : vector<8x1x64xf32>, vector<8x8x64xf32> -> vector<8x9x64xf32>
    %14 = vector.extract_strided_slice %10 {offsets = [0, 0, 0], sizes = [8, 8, 64], strides = [1, 1, 1]} : vector<8x8x128xf32> to vector<8x8x64xf32>
    %15 = tpu.concatenate %14, %11 in 1 : vector<8x8x64xf32>, vector<8x1x64xf32> -> vector<8x9x64xf32>
    %16 = tpu.concatenate %13, %15 in 2 : vector<8x9x64xf32>, vector<8x9x64xf32> -> vector<8x9x128xf32>
    %c2 = arith.constant 2 : index
    %c0_11 = arith.constant 0 : index
    %c0_12 = arith.constant 0 : index
    %17 = vector.load %arg10[%c2, %c0_11, %c0_12] : memref<12x16x128xf32, #tpu.memory_space<vmem>>, vector<8x9x128xf32>
    tpu.vector_store %arg10[%c2, %c0_11, %c0_12], %16 {strides = array<i32>} : memref<12x16x128xf32, #tpu.memory_space<vmem>>, vector<8x9x128xf32>,
    %c0_13 = arith.constant 0 : index
    %c0_14 = arith.constant 0 : index
    %c0_15 = arith.constant 0 : index
    %c0_16 = arith.constant 0 : index
    %18 = vector.load %arg4[%c0_13, %c0_14, %c0_15, %c0_16] : memref<1x2x8x128xf32, #tpu.memory_space<vmem>>, vector<1x2x8x128xf32>
    %19 = vector.shape_cast %18 : vector<1x2x8x128xf32> to vector<2x8x128xf32>
    %cst_17 = arith.constant 0.000000e+00 : f32
    %20 = vector.broadcast %cst_17 : f32 to vector<2x1x64xf32>
    %21 = vector.extract_strided_slice %19 {offsets = [0, 0, 64], sizes = [2, 8, 64], strides = [1, 1, 1]} : vector<2x8x128xf32> to vector<2x8x64xf32>
    %22 = tpu.concatenate %20, %21 in 1 : vector<2x1x64xf32>, vector<2x8x64xf32> -> vector<2x9x64xf32>
    %23 = vector.extract_strided_slice %19 {offsets = [0, 0, 0], sizes = [2, 8, 64], strides = [1, 1, 1]} : vector<2x8x128xf32> to vector<2x8x64xf32>
    %24 = tpu.concatenate %23, %20 in 1 : vector<2x8x64xf32>, vector<2x1x64xf32> -> vector<2x9x64xf32>
    %25 = tpu.concatenate %22, %24 in 2 : vector<2x9x64xf32>, vector<2x9x64xf32> -> vector<2x9x128xf32>
    %c10 = arith.constant 10 : index
    %c0_18 = arith.constant 0 : index
    %c0_19 = arith.constant 0 : index
    %26 = vector.load %arg10[%c10, %c0_18, %c0_19] : memref<12x16x128xf32, #tpu.memory_space<vmem>>, vector<2x9x128xf32>
    tpu.vector_store %arg10[%c10, %c0_18, %c0_19], %25 {strides = array<i32>} : memref<12x16x128xf32, #tpu.memory_space<vmem>>, vector<2x9x128xf32>,
    %c0_i32 = arith.constant 0 : i32
    %27 = arith.cmpi eq, %arg1, %c0_i32 : i32
    %28 = arith.extui %27 : i1 to i32
    %c0_i32_20 = arith.constant 0 : i32
    %29 = arith.cmpi ne, %28, %c0_i32_20 : i32
    scf.if %29 {
      %cst_109 = arith.constant 0.000000e+00 : f32
      %120 = vector.broadcast %cst_109 : f32 to vector<2x9x128xf32>
      %c0_110 = arith.constant 0 : index
      %c0_111 = arith.constant 0 : index
      %c0_112 = arith.constant 0 : index
      %121 = vector.load %arg10[%c0_110, %c0_111, %c0_112] : memref<12x16x128xf32, #tpu.memory_space<vmem>>, vector<2x9x128xf32>
      tpu.vector_store %arg10[%c0_110, %c0_111, %c0_112], %120 {strides = array<i32>} : memref<12x16x128xf32, #tpu.memory_space<vmem>>, vector<2x9x128xf32>,
    } else {
    }
    %c2_i32 = arith.constant 2 : i32
    %30 = arith.cmpi eq, %arg1, %c2_i32 : i32
    %31 = arith.extui %30 : i1 to i32
    %c0_i32_21 = arith.constant 0 : i32
    %32 = arith.cmpi ne, %31, %c0_i32_21 : i32
    scf.if %32 {
      %cst_109 = arith.constant 0.000000e+00 : f32
      %120 = vector.broadcast %cst_109 : f32 to vector<2x9x128xf32>
      %c10_110 = arith.constant 10 : index
      %c0_111 = arith.constant 0 : index
      %c0_112 = arith.constant 0 : index
      %121 = vector.load %arg10[%c10_110, %c0_111, %c0_112] : memref<12x16x128xf32, #tpu.memory_space<vmem>>, vector<2x9x128xf32>
      tpu.vector_store %arg10[%c10_110, %c0_111, %c0_112], %120 {strides = array<i32>} : memref<12x16x128xf32, #tpu.memory_space<vmem>>, vector<2x9x128xf32>,
    } else {
    }
    %c0_22 = arith.constant 0 : index
    %c0_23 = arith.constant 0 : index
    %c0_24 = arith.constant 0 : index
    %33 = vector.load %arg10[%c0_22, %c0_23, %c0_24] : memref<12x16x128xf32, #tpu.memory_space<vmem>>, vector<10x8x128xf32>
    %34 = vector.shape_cast %33 : vector<10x8x128xf32> to vector<80x128xf32>
    %c0_25 = arith.constant 0 : index
    %c0_26 = arith.constant 0 : index
    %35 = vector.load %arg5[%c0_25, %c0_26] : memref<768x128xf32, #tpu.memory_space<vmem>>, vector<128x128xf32>
    %cst_27 = arith.constant dense<0.000000e+00> : vector<80x128xf32>
    %36 = tpu.matmul %34, %35, %cst_27 {dimension_numbers = #tpu.dot_dimension_numbers<[1], [0], [0], [1], [0, 0, 1, 1], [], []>} : vector<80x128xf32>, vector<128x128xf32>, vector<80x128xf32> -> vector<80x128xf32>
    %c0_28 = arith.constant 0 : index
    %c1 = arith.constant 1 : index
    %c0_29 = arith.constant 0 : index
    %37 = vector.load %arg10[%c0_28, %c1, %c0_29] : memref<12x16x128xf32, #tpu.memory_space<vmem>>, vector<10x8x128xf32>
    %38 = vector.shape_cast %37 : vector<10x8x128xf32> to vector<80x128xf32>
    %c128 = arith.constant 128 : index
    %c0_30 = arith.constant 0 : index
    %39 = vector.load %arg5[%c128, %c0_30] : memref<768x128xf32, #tpu.memory_space<vmem>>, vector<128x128xf32>
    %cst_31 = arith.constant dense<0.000000e+00> : vector<80x128xf32>
    %40 = tpu.matmul %38, %39, %cst_31 {dimension_numbers = #tpu.dot_dimension_numbers<[1], [0], [0], [1], [0, 0, 1, 1], [], []>} : vector<80x128xf32>, vector<128x128xf32>, vector<80x128xf32> -> vector<80x128xf32>
    %41 = arith.addf %36, %40 : vector<80x128xf32>
    %c1_32 = arith.constant 1 : index
    %c0_33 = arith.constant 0 : index
    %c0_34 = arith.constant 0 : index
    %42 = vector.load %arg10[%c1_32, %c0_33, %c0_34] : memref<12x16x128xf32, #tpu.memory_space<vmem>>, vector<10x8x128xf32>
    %43 = vector.shape_cast %42 : vector<10x8x128xf32> to vector<80x128xf32>
    %c256 = arith.constant 256 : index
    %c0_35 = arith.constant 0 : index
    %44 = vector.load %arg5[%c256, %c0_35] : memref<768x128xf32, #tpu.memory_space<vmem>>, vector<128x128xf32>
    %cst_36 = arith.constant dense<0.000000e+00> : vector<80x128xf32>
    %45 = tpu.matmul %43, %44, %cst_36 {dimension_numbers = #tpu.dot_dimension_numbers<[1], [0], [0], [1], [0, 0, 1, 1], [], []>} : vector<80x128xf32>, vector<128x128xf32>, vector<80x128xf32> -> vector<80x128xf32>
    %46 = arith.addf %41, %45 : vector<80x128xf32>
    %c1_37 = arith.constant 1 : index
    %c1_38 = arith.constant 1 : index
    %c0_39 = arith.constant 0 : index
    %47 = vector.load %arg10[%c1_37, %c1_38, %c0_39] : memref<12x16x128xf32, #tpu.memory_space<vmem>>, vector<10x8x128xf32>
    %48 = vector.shape_cast %47 : vector<10x8x128xf32> to vector<80x128xf32>
    %c384 = arith.constant 384 : index
    %c0_40 = arith.constant 0 : index
    %49 = vector.load %arg5[%c384, %c0_40] : memref<768x128xf32, #tpu.memory_space<vmem>>, vector<128x128xf32>
    %cst_41 = arith.constant dense<0.000000e+00> : vector<80x128xf32>
    %50 = tpu.matmul %48, %49, %cst_41 {dimension_numbers = #tpu.dot_dimension_numbers<[1], [0], [0], [1], [0, 0, 1, 1], [], []>} : vector<80x128xf32>, vector<128x128xf32>, vector<80x128xf32> -> vector<80x128xf32>
    %51 = arith.addf %46, %50 : vector<80x128xf32>
    %c2_42 = arith.constant 2 : index
    %c0_43 = arith.constant 0 : index
    %c0_44 = arith.constant 0 : index
    %52 = vector.load %arg10[%c2_42, %c0_43, %c0_44] : memref<12x16x128xf32, #tpu.memory_space<vmem>>, vector<10x8x128xf32>
    %53 = vector.shape_cast %52 : vector<10x8x128xf32> to vector<80x128xf32>
    %c512 = arith.constant 512 : index
    %c0_45 = arith.constant 0 : index
    %54 = vector.load %arg5[%c512, %c0_45] : memref<768x128xf32, #tpu.memory_space<vmem>>, vector<128x128xf32>
    %cst_46 = arith.constant dense<0.000000e+00> : vector<80x128xf32>
    %55 = tpu.matmul %53, %54, %cst_46 {dimension_numbers = #tpu.dot_dimension_numbers<[1], [0], [0], [1], [0, 0, 1, 1], [], []>} : vector<80x128xf32>, vector<128x128xf32>, vector<80x128xf32> -> vector<80x128xf32>
    %56 = arith.addf %51, %55 : vector<80x128xf32>
    %c2_47 = arith.constant 2 : index
    %c1_48 = arith.constant 1 : index
    %c0_49 = arith.constant 0 : index
    %57 = vector.load %arg10[%c2_47, %c1_48, %c0_49] : memref<12x16x128xf32, #tpu.memory_space<vmem>>, vector<10x8x128xf32>
    %58 = vector.shape_cast %57 : vector<10x8x128xf32> to vector<80x128xf32>
    %c640 = arith.constant 640 : index
    %c0_50 = arith.constant 0 : index
    %59 = vector.load %arg5[%c640, %c0_50] : memref<768x128xf32, #tpu.memory_space<vmem>>, vector<128x128xf32>
    %cst_51 = arith.constant dense<0.000000e+00> : vector<80x128xf32>
    %60 = tpu.matmul %58, %59, %cst_51 {dimension_numbers = #tpu.dot_dimension_numbers<[1], [0], [0], [1], [0, 0, 1, 1], [], []>} : vector<80x128xf32>, vector<128x128xf32>, vector<80x128xf32> -> vector<80x128xf32>
    %61 = arith.addf %56, %60 : vector<80x128xf32>
    %c0_52 = arith.constant 0 : index
    %c0_53 = arith.constant 0 : index
    %62 = vector.load %arg6[%c0_52, %c0_53] : memref<1x128xf32, #tpu.memory_space<vmem>>, vector<1x128xf32>
    %63 = vector.broadcast %62 : vector<1x128xf32> to vector<80x128xf32>
    %64 = arith.addf %61, %63 : vector<80x128xf32>
    %cst_54 = arith.constant 0.000000e+00 : f32
    %65 = vector.broadcast %cst_54 : f32 to vector<80x128xf32>
    %66 = arith.maximumf %64, %65 : vector<80x128xf32>
    %67 = vector.shape_cast %66 : vector<80x128xf32> to vector<10x8x128xf32>
    %cst_55 = arith.constant 0.000000e+00 : f32
    %68 = vector.broadcast %cst_55 : f32 to vector<10x1x64xf32>
    %69 = vector.extract_strided_slice %67 {offsets = [0, 0, 64], sizes = [10, 8, 64], strides = [1, 1, 1]} : vector<10x8x128xf32> to vector<10x8x64xf32>
    %70 = tpu.concatenate %68, %69 in 1 : vector<10x1x64xf32>, vector<10x8x64xf32> -> vector<10x9x64xf32>
    %71 = vector.extract_strided_slice %67 {offsets = [0, 0, 0], sizes = [10, 8, 64], strides = [1, 1, 1]} : vector<10x8x128xf32> to vector<10x8x64xf32>
    %72 = tpu.concatenate %71, %68 in 1 : vector<10x8x64xf32>, vector<10x1x64xf32> -> vector<10x9x64xf32>
    %73 = tpu.concatenate %70, %72 in 2 : vector<10x9x64xf32>, vector<10x9x64xf32> -> vector<10x9x128xf32>
    %c0_56 = arith.constant 0 : index
    %c0_57 = arith.constant 0 : index
    %c0_58 = arith.constant 0 : index
    %74 = vector.load %arg11[%c0_56, %c0_57, %c0_58] : memref<10x16x128xf32, #tpu.memory_space<vmem>>, vector<10x9x128xf32>
    tpu.vector_store %arg11[%c0_56, %c0_57, %c0_58], %73 {strides = array<i32>} : memref<10x16x128xf32, #tpu.memory_space<vmem>>, vector<10x9x128xf32>,
    %c0_i32_59 = arith.constant 0 : i32
    %75 = arith.cmpi eq, %arg1, %c0_i32_59 : i32
    %76 = arith.extui %75 : i1 to i32
    %c0_i32_60 = arith.constant 0 : i32
    %77 = arith.cmpi ne, %76, %c0_i32_60 : i32
    scf.if %77 {
      %cst_109 = arith.constant 0.000000e+00 : f32
      %120 = vector.broadcast %cst_109 : f32 to vector<1x9x128xf32>
      %c0_110 = arith.constant 0 : index
      %c0_111 = arith.constant 0 : index
      %c0_112 = arith.constant 0 : index
      %121 = vector.load %arg11[%c0_110, %c0_111, %c0_112] : memref<10x16x128xf32, #tpu.memory_space<vmem>>, vector<1x9x128xf32>
      tpu.vector_store %arg11[%c0_110, %c0_111, %c0_112], %120 {strides = array<i32>} : memref<10x16x128xf32, #tpu.memory_space<vmem>>, vector<1x9x128xf32>,
    } else {
    }
    %c2_i32_61 = arith.constant 2 : i32
    %78 = arith.cmpi eq, %arg1, %c2_i32_61 : i32
    %79 = arith.extui %78 : i1 to i32
    %c0_i32_62 = arith.constant 0 : i32
    %80 = arith.cmpi ne, %79, %c0_i32_62 : i32
    scf.if %80 {
      %cst_109 = arith.constant 0.000000e+00 : f32
      %120 = vector.broadcast %cst_109 : f32 to vector<1x9x128xf32>
      %c9 = arith.constant 9 : index
      %c0_110 = arith.constant 0 : index
      %c0_111 = arith.constant 0 : index
      %121 = vector.load %arg11[%c9, %c0_110, %c0_111] : memref<10x16x128xf32, #tpu.memory_space<vmem>>, vector<1x9x128xf32>
      tpu.vector_store %arg11[%c9, %c0_110, %c0_111], %120 {strides = array<i32>} : memref<10x16x128xf32, #tpu.memory_space<vmem>>, vector<1x9x128xf32>,
    } else {
    }
    %c0_63 = arith.constant 0 : index
    %c0_64 = arith.constant 0 : index
    %c0_65 = arith.constant 0 : index
    %81 = vector.load %arg11[%c0_63, %c0_64, %c0_65] : memref<10x16x128xf32, #tpu.memory_space<vmem>>, vector<8x8x128xf32>
    %82 = vector.shape_cast %81 : vector<8x8x128xf32> to vector<64x128xf32>
    %c0_66 = arith.constant 0 : index
    %c0_67 = arith.constant 0 : index
    %83 = vector.load %arg7[%c0_66, %c0_67] : memref<768x128xf32, #tpu.memory_space<vmem>>, vector<128x128xf32>
    %cst_68 = arith.constant dense<0.000000e+00> : vector<64x128xf32>
    %84 = tpu.matmul %82, %83, %cst_68 {dimension_numbers = #tpu.dot_dimension_numbers<[1], [0], [0], [1], [0, 0, 1, 1], [], []>} : vector<64x128xf32>, vector<128x128xf32>, vector<64x128xf32> -> vector<64x128xf32>
    %c0_69 = arith.constant 0 : index
    %c1_70 = arith.constant 1 : index
    %c0_71 = arith.constant 0 : index
    %85 = vector.load %arg11[%c0_69, %c1_70, %c0_71] : memref<10x16x128xf32, #tpu.memory_space<vmem>>, vector<8x8x128xf32>
    %86 = vector.shape_cast %85 : vector<8x8x128xf32> to vector<64x128xf32>
    %c128_72 = arith.constant 128 : index
    %c0_73 = arith.constant 0 : index
    %87 = vector.load %arg7[%c128_72, %c0_73] : memref<768x128xf32, #tpu.memory_space<vmem>>, vector<128x128xf32>
    %cst_74 = arith.constant dense<0.000000e+00> : vector<64x128xf32>
    %88 = tpu.matmul %86, %87, %cst_74 {dimension_numbers = #tpu.dot_dimension_numbers<[1], [0], [0], [1], [0, 0, 1, 1], [], []>} : vector<64x128xf32>, vector<128x128xf32>, vector<64x128xf32> -> vector<64x128xf32>
    %89 = arith.addf %84, %88 : vector<64x128xf32>
    %c1_75 = arith.constant 1 : index
    %c0_76 = arith.constant 0 : index
    %c0_77 = arith.constant 0 : index
    %90 = vector.load %arg11[%c1_75, %c0_76, %c0_77] : memref<10x16x128xf32, #tpu.memory_space<vmem>>, vector<8x8x128xf32>
    %91 = vector.shape_cast %90 : vector<8x8x128xf32> to vector<64x128xf32>
    %c256_78 = arith.constant 256 : index
    %c0_79 = arith.constant 0 : index
    %92 = vector.load %arg7[%c256_78, %c0_79] : memref<768x128xf32, #tpu.memory_space<vmem>>, vector<128x128xf32>
    %cst_80 = arith.constant dense<0.000000e+00> : vector<64x128xf32>
    %93 = tpu.matmul %91, %92, %cst_80 {dimension_numbers = #tpu.dot_dimension_numbers<[1], [0], [0], [1], [0, 0, 1, 1], [], []>} : vector<64x128xf32>, vector<128x128xf32>, vector<64x128xf32> -> vector<64x128xf32>
    %94 = arith.addf %89, %93 : vector<64x128xf32>
    %c1_81 = arith.constant 1 : index
    %c1_82 = arith.constant 1 : index
    %c0_83 = arith.constant 0 : index
    %95 = vector.load %arg11[%c1_81, %c1_82, %c0_83] : memref<10x16x128xf32, #tpu.memory_space<vmem>>, vector<8x8x128xf32>
    %96 = vector.shape_cast %95 : vector<8x8x128xf32> to vector<64x128xf32>
    %c384_84 = arith.constant 384 : index
    %c0_85 = arith.constant 0 : index
    %97 = vector.load %arg7[%c384_84, %c0_85] : memref<768x128xf32, #tpu.memory_space<vmem>>, vector<128x128xf32>
    %cst_86 = arith.constant dense<0.000000e+00> : vector<64x128xf32>
    %98 = tpu.matmul %96, %97, %cst_86 {dimension_numbers = #tpu.dot_dimension_numbers<[1], [0], [0], [1], [0, 0, 1, 1], [], []>} : vector<64x128xf32>, vector<128x128xf32>, vector<64x128xf32> -> vector<64x128xf32>
    %99 = arith.addf %94, %98 : vector<64x128xf32>
    %c2_87 = arith.constant 2 : index
    %c0_88 = arith.constant 0 : index
    %c0_89 = arith.constant 0 : index
    %100 = vector.load %arg11[%c2_87, %c0_88, %c0_89] : memref<10x16x128xf32, #tpu.memory_space<vmem>>, vector<8x8x128xf32>
    %101 = vector.shape_cast %100 : vector<8x8x128xf32> to vector<64x128xf32>
    %c512_90 = arith.constant 512 : index
    %c0_91 = arith.constant 0 : index
    %102 = vector.load %arg7[%c512_90, %c0_91] : memref<768x128xf32, #tpu.memory_space<vmem>>, vector<128x128xf32>
    %cst_92 = arith.constant dense<0.000000e+00> : vector<64x128xf32>
    %103 = tpu.matmul %101, %102, %cst_92 {dimension_numbers = #tpu.dot_dimension_numbers<[1], [0], [0], [1], [0, 0, 1, 1], [], []>} : vector<64x128xf32>, vector<128x128xf32>, vector<64x128xf32> -> vector<64x128xf32>
    %104 = arith.addf %99, %103 : vector<64x128xf32>
    %c2_93 = arith.constant 2 : index
    %c1_94 = arith.constant 1 : index
    %c0_95 = arith.constant 0 : index
    %105 = vector.load %arg11[%c2_93, %c1_94, %c0_95] : memref<10x16x128xf32, #tpu.memory_space<vmem>>, vector<8x8x128xf32>
    %106 = vector.shape_cast %105 : vector<8x8x128xf32> to vector<64x128xf32>
    %c640_96 = arith.constant 640 : index
    %c0_97 = arith.constant 0 : index
    %107 = vector.load %arg7[%c640_96, %c0_97] : memref<768x128xf32, #tpu.memory_space<vmem>>, vector<128x128xf32>
    %cst_98 = arith.constant dense<0.000000e+00> : vector<64x128xf32>
    %108 = tpu.matmul %106, %107, %cst_98 {dimension_numbers = #tpu.dot_dimension_numbers<[1], [0], [0], [1], [0, 0, 1, 1], [], []>} : vector<64x128xf32>, vector<128x128xf32>, vector<64x128xf32> -> vector<64x128xf32>
    %109 = arith.addf %104, %108 : vector<64x128xf32>
    %c0_99 = arith.constant 0 : index
    %c0_100 = arith.constant 0 : index
    %110 = vector.load %arg8[%c0_99, %c0_100] : memref<1x128xf32, #tpu.memory_space<vmem>>, vector<1x128xf32>
    %111 = vector.broadcast %110 : vector<1x128xf32> to vector<64x128xf32>
    %112 = arith.addf %109, %111 : vector<64x128xf32>
    %113 = vector.shape_cast %112 : vector<64x128xf32> to vector<8x8x128xf32>
    %c0_101 = arith.constant 0 : index
    %c0_102 = arith.constant 0 : index
    %c0_103 = arith.constant 0 : index
    %c0_104 = arith.constant 0 : index
    %114 = vector.load %arg2[%c0_101, %c0_102, %c0_103, %c0_104] : memref<1x8x8x128xf32, #tpu.memory_space<vmem>>, vector<1x8x8x128xf32>
    %115 = vector.shape_cast %114 : vector<1x8x8x128xf32> to vector<8x8x128xf32>
    %116 = arith.addf %115, %113 : vector<8x8x128xf32>
    %c0_105 = arith.constant 0 : index
    %c0_106 = arith.constant 0 : index
    %c0_107 = arith.constant 0 : index
    %c0_108 = arith.constant 0 : index
    %117 = vector.load %arg9[%c0_105, %c0_106, %c0_107, %c0_108] : memref<1x8x8x128xf32, #tpu.memory_space<vmem>>, vector<1x8x8x128xf32>
    %118 = vector.shape_cast %117 : vector<1x8x8x128xf32> to vector<8x8x128xf32>
    %119 = vector.shape_cast %116 : vector<8x8x128xf32> to vector<1x8x8x128xf32>
    tpu.vector_store %arg9[%c0_105, %c0_106, %c0_107, %c0_108], %119 {strides = array<i32>} : memref<1x8x8x128xf32, #tpu.memory_space<vmem>>, vector<1x8x8x128xf32>,
    return
  }
  func.func @transform_0(%arg0: i32, %arg1: i32) -> (i32, i32, i32, i32) {
    %c0_i32 = arith.constant 0 : i32
    %c0_i32_0 = arith.constant 0 : i32
    %c0_i32_1 = arith.constant 0 : i32
    return %arg0, %arg1, %c0_i32, %c0_i32_0 : i32, i32, i32, i32
  }
  func.func @transform_1(%arg0: i32, %arg1: i32) -> (i32, i32, i32, i32) {
    %c4_i32 = arith.constant 4 : i32
    %0 = arith.muli %arg1, %c4_i32 : i32
    %c1_i32 = arith.constant 1 : i32
    %1 = arith.subi %0, %c1_i32 : i32
    %c0_i32 = arith.constant 0 : i32
    %2 = arith.maxsi %1, %c0_i32 : i32
    %c0_i32_0 = arith.constant 0 : i32
    %c0_i32_1 = arith.constant 0 : i32
    %c0_i32_2 = arith.constant 0 : i32
    return %arg0, %2, %c0_i32_0, %c0_i32_1 : i32, i32, i32, i32
  }
  func.func @transform_2(%arg0: i32, %arg1: i32) -> (i32, i32, i32, i32) {
    %c1_i32 = arith.constant 1 : i32
    %0 = arith.addi %arg1, %c1_i32 : i32
    %c4_i32 = arith.constant 4 : i32
    %1 = arith.muli %0, %c4_i32 : i32
    %c11_i32 = arith.constant 11 : i32
    %2 = arith.minsi %1, %c11_i32 : i32
    %c0_i32 = arith.constant 0 : i32
    %c0_i32_0 = arith.constant 0 : i32
    %c0_i32_1 = arith.constant 0 : i32
    return %arg0, %2, %c0_i32, %c0_i32_0 : i32, i32, i32, i32
  }
  func.func @transform_3(%arg0: i32, %arg1: i32) -> (i32, i32) {
    %c0_i32 = arith.constant 0 : i32
    %c0_i32_0 = arith.constant 0 : i32
    %c0_i32_1 = arith.constant 0 : i32
    return %c0_i32, %c0_i32_0 : i32, i32
  }
  func.func @transform_4(%arg0: i32, %arg1: i32) -> (i32, i32) {
    %c0_i32 = arith.constant 0 : i32
    %c0_i32_0 = arith.constant 0 : i32
    %c0_i32_1 = arith.constant 0 : i32
    return %c0_i32, %c0_i32_0 : i32, i32
  }
  func.func @transform_5(%arg0: i32, %arg1: i32) -> (i32, i32) {
    %c0_i32 = arith.constant 0 : i32
    %c0_i32_0 = arith.constant 0 : i32
    %c0_i32_1 = arith.constant 0 : i32
    return %c0_i32, %c0_i32_0 : i32, i32
  }
  func.func @transform_6(%arg0: i32, %arg1: i32) -> (i32, i32) {
    %c0_i32 = arith.constant 0 : i32
    %c0_i32_0 = arith.constant 0 : i32
    %c0_i32_1 = arith.constant 0 : i32
    return %c0_i32, %c0_i32_0 : i32, i32
  }
  func.func @transform_7(%arg0: i32, %arg1: i32) -> (i32, i32, i32, i32) {
    %c0_i32 = arith.constant 0 : i32
    %c0_i32_0 = arith.constant 0 : i32
    %c0_i32_1 = arith.constant 0 : i32
    return %arg0, %arg1, %c0_i32, %c0_i32_0 : i32, i32, i32, i32
  }
}

</mosaic_0001>

<llo_original>
// kernel: tpu_custom_call.1
$region0: #{tpu_custom_call.1}
  #allocation0 [shape = 'u32[]', space=smem, size = 0x4, offset = 0x4, fixed_abs, tag = 'smem constant byte address 0x4 - core index']
  #allocation1 [shape = 'u32[144,128]{1,0:T(1,128)}', space=vmem, size = 0x12000, scoped, tag = 'internal scratch']
  #allocation2 [shape = 'f32[12,16,128]{2,1,0:T(8,128)}', space=vmem, size = 0x18000, scoped, tag = 'scratch operand']
  #allocation3 [shape = 'f32[10,16,128]{2,1,0:T(8,128)}', space=vmem, size = 0x14000, scoped, tag = 'scratch operand']
  %s0 = inlined_call_operand.hbm [shape: f32[2,24,8,128], index: 0, kind: input, shape index: {}]
  %s1 = inlined_call_operand.hbm [shape: f32[2,24,8,128], index: 1, kind: input, shape index: {}]
  %s2 = inlined_call_operand.hbm [shape: f32[2,24,8,128], index: 2, kind: input, shape index: {}]
  %s3 = inlined_call_operand.hbm [shape: f32[768,128], index: 3, kind: input, shape index: {}]
  %s4 = inlined_call_operand.vmem [shape: f32[1,128], index: 4, kind: input, shape index: {}]
  %s5 = inlined_call_operand.hbm [shape: f32[768,128], index: 5, kind: input, shape index: {}]
  %s6 = inlined_call_operand.vmem [shape: f32[1,128], index: 6, kind: input, shape index: {}]
  %s7 = inlined_call_operand.hbm [shape: f32[2,24,8,128], index: 7, kind: output, shape index: {}]
  %s8 = sld [smem:[#allocation0]]
  $region97: #{tpu_custom_call.1} parent=0
    _
  %s10 = ssub.s32 1, %s8
  %s11 = scalar_select 0, %s10, %s8
  $region1: #{tpu_custom_call.1} parent=0
    #allocation4 [shape = 'u8[65536]{0}', space=vmem, size = 0x10000, scoped, tag = 'input window, operand 0']
    #allocation5 [shape = 's32[2]{0}', space=sflag, size = 0x8, scoped, tag = 'scoped memory for tpu_custom_call.1']
    #allocation6 [shape = 's32[2]{0}', space=sflag, size = 0x8, scoped, tag = 'scoped memory for tpu_custom_call.1']
    #allocation7 [shape = 'u8[16384]{0}', space=vmem, size = 0x4000, scoped, tag = 'input window, operand 1']
    #allocation8 [shape = 's32[2]{0}', space=sflag, size = 0x8, scoped, tag = 'scoped memory for tpu_custom_call.1']
    #allocation9 [shape = 'u8[16384]{0}', space=vmem, size = 0x4000, scoped, tag = 'input window, operand 2']
    #allocation10 [shape = 'u8[393216]{0}', space=vmem, size = 0x60000, scoped, tag = 'input window, operand 3, single buffered']
    #allocation11 [shape = 's32[1]{0}', space=sflag, size = 0x4, scoped, tag = 'scoped memory for tpu_custom_call.1']
    #allocation12 [shape = 'u8[393216]{0}', space=vmem, size = 0x60000, scoped, tag = 'input window, operand 5, single buffered']
    #allocation13 [shape = 'u8[65536]{0}', space=vmem, size = 0x10000, scoped, tag = 'output window, operand 0']
    %12 = vsyncpa [#allocation5], 0
    %s13 = scalar_lea.sflag [#allocation5], 1
    %14 = vsyncpa %s13, 0
    %15 = vsyncpa [#allocation8], 0
    %s16 = scalar_lea.sflag [#allocation8], 1
    %17 = vsyncpa %s16, 0
    %18 = vsyncpa [#allocation11], 0
    %19 = vsyncpa [#allocation6], 0
    %s20 = scalar_lea.sflag [#allocation6], 1
    %21 = vsyncpa %s20, 0
    loop: start=0, step=1, limit=8
    $region2: #{tpu_custom_call.1} parent=1 // loop_pre_header
      _
    $region3: #{tpu_custom_call.1} parent=1 // loop_header
      %s23 = sphi 0, %s27
      %p24 = scmp.ge.s32.totalorder %s23, 8
      %s30 = sphi 0, %s42
      %s31 = sphi 0, %s38
      %s32 = sphi 0, %s30
      %s33 = sphi 0, %s31
      %s34 = sphi 0, %s32
      %s35 = sphi 0, %s33
      %s47 = sphi 0, %s49
      %s50 = sphi 0, %s47
      %s51 = sphi 0, %s50
      %s67 = sphi 0, %s51
      %s83 = sphi 0, %s85
      %s86 = sphi 0, %s83
      %s87 = sphi 0, %s86
      %s103 = sphi 0, %s87
      %s119 = sphi 0, %s121
      %s122 = sphi 0, %s119
      %s123 = sphi 0, %s122
      %s139 = sphi 0, %s123
      %s143 = sphi 0, %s143
      %s145 = sphi 0, %s143
      %s146 = sphi 0, %s145
      %s160 = sphi 0, %s146
      %s164 = sphi 0, %s164
      %s166 = sphi 0, %s164
      %s167 = sphi 0, %s166
      %s181 = sphi 0, %s167
      %s185 = sphi 0, %s185
      %s187 = sphi 0, %s185
      %s188 = sphi 0, %s187
      %s202 = sphi 0, %s188
      %s206 = sphi 0, %s206
      %s208 = sphi 0, %s206
      %s209 = sphi 0, %s208
      %s223 = sphi 0, %s209
      %s231 = sphi 0, %s233
      %s234 = sphi 0, %s231
      %s235 = sphi 0, %s234
      %s251 = sphi 0, %s235
    $region4: #{tpu_custom_call.1} parent=1 // loop_header_branch
      %26 = sbr.rel (%p24) target = $region8
    $region5: #{tpu_custom_call.1} parent=1 // loop_body
      %s28 = ssub.s32 %s23, 1
      %s29 = ssub.s32 %s23, 2
      %s36 = sadd.s32 1, %s31
      %p37 = scmp.ge.s32.totalorder %s36, 3
      %s38 = scalar_select %p37, 0, %s36
      %s39 = sadd.s32 1, %s30
      %s40 = scalar_select %p37, %s39, %s30
      %p41 = scmp.ge.s32.totalorder %s40, 2
      %s42 = scalar_select %p41, 0, %s40
      %s43 = ssub.s32 %s30, %s42
      %s44 = ssub.s32 %s31, %s38
      %s45 = sor.u32 %s43, %s44
      %p46 = scmp.eq.s32.totalorder %s45, 0
      %s48 = sadd.s32 %s47, 1
      %s49 = scalar_select %p46, %s47, %s48
      %p52 = pneg %p46
      %p53 = scmp.eq.s32.totalorder %s23, 5
      %p54 = por %p52, %p53
      %p55 = scmp.ne.s32.totalorder %s47, %s50
      %p56 = scmp.eq.s32.totalorder %s23, 0
      %p57 = por %p55, %p56
      %p58 = scmp.ne.s32.totalorder %s47, %s50
      %p59 = scmp.eq.s32.totalorder %s28, 5
      %p60 = por %p58, %p59
      %p61 = scmp.ne.s32.totalorder %s50, %s51
      %p62 = scmp.eq.s32.totalorder %s28, 0
      %p63 = por %p61, %p62
      %p64 = scmp.ne.s32.totalorder %s50, %s51
      %p65 = scmp.eq.s32.totalorder %s29, 5
      %p66 = por %p64, %p65
      %p68 = scmp.ne.s32.totalorder %s51, %s67
      %p69 = scmp.eq.s32.totalorder %s29, 0
      %p70 = por %p68, %p69
      %s71 = smul.u32 %s31, 4
      %s72 = ssub.s32 %s71, 1
      %p73 = scmp.gt.s32.totalorder %s72, 0
      %s74 = scalar_select %p73, %s72, 0
      %s75 = smul.u32 %s38, 4
      %s76 = ssub.s32 %s75, 1
      %p77 = scmp.gt.s32.totalorder %s76, 0
      %s78 = scalar_select %p77, %s76, 0
      %s79 = ssub.s32 %s30, %s42
      %s80 = ssub.s32 %s74, %s78
      %s81 = sor.u32 %s79, %s80
      %p82 = scmp.eq.s32.totalorder %s81, 0
      %s84 = sadd.s32 %s83, 1
      %s85 = scalar_select %p82, %s83, %s84
      %p88 = pneg %p82
      %p89 = scmp.eq.s32.totalorder %s23, 5
      %p90 = por %p88, %p89
      %p91 = scmp.ne.s32.totalorder %s83, %s86
      %p92 = scmp.eq.s32.totalorder %s23, 0
      %p93 = por %p91, %p92
      %p94 = scmp.ne.s32.totalorder %s83, %s86
      %p95 = scmp.eq.s32.totalorder %s28, 5
      %p96 = por %p94, %p95
      %p97 = scmp.ne.s32.totalorder %s86, %s87
      %p98 = scmp.eq.s32.totalorder %s28, 0
      %p99 = por %p97, %p98
      %p100 = scmp.ne.s32.totalorder %s86, %s87
      %p101 = scmp.eq.s32.totalorder %s29, 5
      %p102 = por %p100, %p101
      %p104 = scmp.ne.s32.totalorder %s87, %s103
      %p105 = scmp.eq.s32.totalorder %s29, 0
      %p106 = por %p104, %p105
      %s107 = sadd.s32 %s31, 1
      %s108 = smul.u32 %s107, 4
      %p109 = scmp.lt.s32.totalorder %s108, 11
      %s110 = scalar_select %p109, %s108, 11
      %s111 = sadd.s32 %s38, 1
      %s112 = smul.u32 %s111, 4
      %p113 = scmp.lt.s32.totalorder %s112, 11
      %s114 = scalar_select %p113, %s112, 11
      %s115 = ssub.s32 %s30, %s42
      %s116 = ssub.s32 %s110, %s114
      %s117 = sor.u32 %s115, %s116
      %p118 = scmp.eq.s32.totalorder %s117, 0
      %s120 = sadd.s32 %s119, 1
      %s121 = scalar_select %p118, %s119, %s120
      %p124 = pneg %p118
      %p125 = scmp.eq.s32.totalorder %s23, 5
      %p126 = por %p124, %p125
      %p127 = scmp.ne.s32.totalorder %s119, %s122
      %p128 = scmp.eq.s32.totalorder %s23, 0
      %p129 = por %p127, %p128
      %p130 = scmp.ne.s32.totalorder %s119, %s122
      %p131 = scmp.eq.s32.totalorder %s28, 5
      %p132 = por %p130, %p131
      %p133 = scmp.ne.s32.totalorder %s122, %s123
      %p134 = scmp.eq.s32.totalorder %s28, 0
      %p135 = por %p133, %p134
      %p136 = scmp.ne.s32.totalorder %s122, %s123
      %p137 = scmp.eq.s32.totalorder %s29, 5
      %p138 = por %p136, %p137
      %p140 = scmp.ne.s32.totalorder %s123, %s139
      %p141 = scmp.eq.s32.totalorder %s29, 0
      %p142 = por %p140, %p141
      %s144 = sadd.s32 %s143, 1
      %p147 = scmp.eq.s32.totalorder %s23, 5
      %p148 = scmp.ne.s32.totalorder %s143, %s145
      %p149 = scmp.eq.s32.totalorder %s23, 0
      %p150 = por %p148, %p149
      %p151 = scmp.ne.s32.totalorder %s143, %s145
      %p152 = scmp.eq.s32.totalorder %s28, 5
      %p153 = por %p151, %p152
      %p154 = scmp.ne.s32.totalorder %s145, %s146
      %p155 = scmp.eq.s32.totalorder %s28, 0
      %p156 = por %p154, %p155
      %p157 = scmp.ne.s32.totalorder %s145, %s146
      %p158 = scmp.eq.s32.totalorder %s29, 5
      %p159 = por %p157, %p158
      %p161 = scmp.ne.s32.totalorder %s146, %s160
      %p162 = scmp.eq.s32.totalorder %s29, 0
      %p163 = por %p161, %p162
      %s165 = sadd.s32 %s164, 1
      %p168 = scmp.eq.s32.totalorder %s23, 5
      %p169 = scmp.ne.s32.totalorder %s164, %s166
      %p170 = scmp.eq.s32.totalorder %s23, 0
      %p171 = por %p169, %p170
      %p172 = scmp.ne.s32.totalorder %s164, %s166
      %p173 = scmp.eq.s32.totalorder %s28, 5
      %p174 = por %p172, %p173
      %p175 = scmp.ne.s32.totalorder %s166, %s167
      %p176 = scmp.eq.s32.totalorder %s28, 0
      %p177 = por %p175, %p176
      %p178 = scmp.ne.s32.totalorder %s166, %s167
      %p179 = scmp.eq.s32.totalorder %s29, 5
      %p180 = por %p178, %p179
      %p182 = scmp.ne.s32.totalorder %s167, %s181
      %p183 = scmp.eq.s32.totalorder %s29, 0
      %p184 = por %p182, %p183
      %s186 = sadd.s32 %s185, 1
      %p189 = scmp.eq.s32.totalorder %s23, 5
      %p190 = scmp.ne.s32.totalorder %s185, %s187
      %p191 = scmp.eq.s32.totalorder %s23, 0
      %p192 = por %p190, %p191
      %p193 = scmp.ne.s32.totalorder %s185, %s187
      %p194 = scmp.eq.s32.totalorder %s28, 5
      %p195 = por %p193, %p194
      %p196 = scmp.ne.s32.totalorder %s187, %s188
      %p197 = scmp.eq.s32.totalorder %s28, 0
      %p198 = por %p196, %p197
      %p199 = scmp.ne.s32.totalorder %s187, %s188
      %p200 = scmp.eq.s32.totalorder %s29, 5
      %p201 = por %p199, %p200
      %p203 = scmp.ne.s32.totalorder %s188, %s202
      %p204 = scmp.eq.s32.totalorder %s29, 0
      %p205 = por %p203, %p204
      %s207 = sadd.s32 %s206, 1
      %p210 = scmp.eq.s32.totalorder %s23, 5
      %p211 = scmp.ne.s32.totalorder %s206, %s208
      %p212 = scmp.eq.s32.totalorder %s23, 0
      %p213 = por %p211, %p212
      %p214 = scmp.ne.s32.totalorder %s206, %s208
      %p215 = scmp.eq.s32.totalorder %s28, 5
      %p216 = por %p214, %p215
      %p217 = scmp.ne.s32.totalorder %s208, %s209
      %p218 = scmp.eq.s32.totalorder %s28, 0
      %p219 = por %p217, %p218
      %p220 = scmp.ne.s32.totalorder %s208, %s209
      %p221 = scmp.eq.s32.totalorder %s29, 5
      %p222 = por %p220, %p221
      %p224 = scmp.ne.s32.totalorder %s209, %s223
      %p225 = scmp.eq.s32.totalorder %s29, 0
      %p226 = por %p224, %p225
      %s227 = ssub.s32 %s30, %s42
      %s228 = ssub.s32 %s31, %s38
      %s229 = sor.u32 %s227, %s228
      %p230 = scmp.eq.s32.totalorder %s229, 0
      %s232 = sadd.s32 %s231, 1
      %s233 = scalar_select %p230, %s231, %s232
      %p236 = pneg %p230
      %p237 = scmp.eq.s32.totalorder %s23, 5
      %p238 = por %p236, %p237
      %p239 = scmp.ne.s32.totalorder %s231, %s234
      %p240 = scmp.eq.s32.totalorder %s23, 0
      %p241 = por %p239, %p240
      %p242 = scmp.ne.s32.totalorder %s231, %s234
      %p243 = scmp.eq.s32.totalorder %s28, 5
      %p244 = por %p242, %p243
      %p245 = scmp.ne.s32.totalorder %s234, %s235
      %p246 = scmp.eq.s32.totalorder %s28, 0
      %p247 = por %p245, %p246
      %p248 = scmp.ne.s32.totalorder %s234, %s235
      %p249 = scmp.eq.s32.totalorder %s29, 5
      %p250 = por %p248, %p249
      %p252 = scmp.ne.s32.totalorder %s235, %s251
      %p253 = scmp.eq.s32.totalorder %s29, 0
      %p254 = por %p252, %p253
      %p255 = scmp.le.s32.totalorder 1, %s23
      %p256 = scmp.lt.s32.totalorder %s23, 7
      %p257 = pnand %p255, %p256
      %p258 = pneg %p257
      // Predicated region
      $region9: #{tpu_custom_call.1} parent=5 // pred_check
        _
      $region10: #{tpu_custom_call.1} parent=5 // pred_check_branch
        %260 = sbr.rel (%p257) target = $region12
      $region11: #{tpu_custom_call.1} parent=5 // pred_region
        %s261 = ssub.s32 %s23, 1
        // Predicated region
        $region13: #{tpu_custom_call.1} parent=11 // pred_check
          %p262 = pneg %p156
        $region14: #{tpu_custom_call.1} parent=11 // pred_check_branch
          %264 = sbr.rel (%p262) target = $region16
        $region15: #{tpu_custom_call.1} parent=11 // pred_region
          %s266 = ssub.s32 12288, 12288
          %267 = vsyncadd [#allocation11], %s266
          %s268 = sshll.u32 [#allocation10], 4
          %s269 = int_to_ptr.vmem [resolvable:$true] %s268
          %274 = dma.hbm_to_vmem [thread:$0]  %s3, 12288, %s269, [#allocation11], 128, 128, 8
        $region16: #{tpu_custom_call.1} parent=11 // pred_fallthru
          _
        // Predicated region
        $region17: #{tpu_custom_call.1} parent=11 // pred_check
          %p275 = pneg %p177
        $region18: #{tpu_custom_call.1} parent=11 // pred_check_branch
          %277 = sbr.rel (%p275) target = $region20
        $region19: #{tpu_custom_call.1} parent=11 // pred_region
          _
        $region20: #{tpu_custom_call.1} parent=11 // pred_fallthru
          _
        // Predicated region
        $region21: #{tpu_custom_call.1} parent=11 // pred_check
          %p278 = pneg %p198
        $region22: #{tpu_custom_call.1} parent=11 // pred_check_branch
          %280 = sbr.rel (%p278) target = $region24
        $region23: #{tpu_custom_call.1} parent=11 // pred_region
          %s282 = ssub.s32 12288, 12288
          %283 = vsyncadd [#allocation11], %s282
          %s284 = sshll.u32 [#allocation12], 4
          %s285 = int_to_ptr.vmem [resolvable:$true] %s284
          %290 = dma.hbm_to_vmem [thread:$0]  %s5, 12288, %s285, [#allocation11], 128, 128, 8
        $region24: #{tpu_custom_call.1} parent=11 // pred_fallthru
          _
        // Predicated region
        $region25: #{tpu_custom_call.1} parent=11 // pred_check
          %p291 = pneg %p219
        $region26: #{tpu_custom_call.1} parent=11 // pred_check_branch
          %293 = sbr.rel (%p291) target = $region28
        $region27: #{tpu_custom_call.1} parent=11 // pred_region
          _
        $region28: #{tpu_custom_call.1} parent=11 // pred_fallthru
          _
      $region12: #{tpu_custom_call.1} parent=5 // pred_fallthru
        _
      %p294 = scmp.lt.s32.totalorder %s23, 6
      // Predicated region
      $region29: #{tpu_custom_call.1} parent=5 // pred_check
        %p295 = pneg %p294
      $region30: #{tpu_custom_call.1} parent=5 // pred_check_branch
        %297 = sbr.rel (%p295) target = $region32
      $region31: #{tpu_custom_call.1} parent=5 // pred_region
        // Predicated region
        $region33: #{tpu_custom_call.1} parent=31 // pred_check
          %p298 = pneg %p57
        $region34: #{tpu_custom_call.1} parent=31 // pred_check_branch
          %300 = sbr.rel (%p298) target = $region36
        $region35: #{tpu_custom_call.1} parent=31 // pred_region
          %s301 = sand.u32 %s47, 1
          %s302 = scalar_lea.sflag [#allocation5], %s301
          %s303 = sand.u32 %s47, 1
          %s304 = smul.addr %s303, 64
          %s305 = scalar_lea.vmem [#allocation4], %s304
          %s306 = smul.u32 8, %s31
          %s308 = ssub.s32 1024, 1024
          %309 = vsyncadd %s302, %s308
          %s310 = smul.addr %s30, 24
          %s311 = sadd.s32 %s306, %s310
          %s312 = smul.addr %s311, 128
          %s313 = scalar_lea.hbm %s0, %s312
          %s314 = sshll.u32 %s305, 4
          %s315 = int_to_ptr.vmem [resolvable:$true] %s314
          %320 = dma.hbm_to_vmem [thread:$0]  %s313, 1024, %s315, %s302, 128, 128, 8
        $region36: #{tpu_custom_call.1} parent=31 // pred_fallthru
          _
        // Predicated region
        $region37: #{tpu_custom_call.1} parent=31 // pred_check
          %p321 = pneg %p93
        $region38: #{tpu_custom_call.1} parent=31 // pred_check_branch
          %323 = sbr.rel (%p321) target = $region40
        $region39: #{tpu_custom_call.1} parent=31 // pred_region
          %s324 = sand.u32 %s23, 1
          %s325 = scalar_lea.sflag [#allocation8], %s324
          %s326 = sand.u32 %s83, 1
          %s327 = smul.addr %s326, 16
          %s328 = scalar_lea.vmem [#allocation7], %s327
          %s329 = smul.u32 %s31, 4
          %s330 = ssub.s32 %s329, 1
          %p331 = scmp.gt.s32.totalorder %s330, 0
          %s332 = scalar_select %p331, %s330, 0
          %s333 = smul.u32 2, %s332
          %s335 = ssub.s32 256, 256
          %336 = vsyncadd %s325, %s335
          %s337 = smul.addr %s30, 24
          %s338 = sadd.s32 %s333, %s337
          %s339 = smul.addr %s338, 128
          %s340 = scalar_lea.hbm %s1, %s339
          %s341 = sshll.u32 %s328, 4
          %s342 = int_to_ptr.vmem [resolvable:$true] %s341
          %347 = dma.hbm_to_vmem [thread:$0]  %s340, 256, %s342, %s325, 128, 128, 8
        $region40: #{tpu_custom_call.1} parent=31 // pred_fallthru
          _
        // Predicated region
        $region41: #{tpu_custom_call.1} parent=31 // pred_check
          %p348 = pneg %p129
        $region42: #{tpu_custom_call.1} parent=31 // pred_check_branch
          %350 = sbr.rel (%p348) target = $region44
        $region43: #{tpu_custom_call.1} parent=31 // pred_region
          %s351 = sand.u32 %s23, 1
          %s352 = scalar_lea.sflag [#allocation8], %s351
          %s353 = sand.u32 %s119, 1
          %s354 = smul.addr %s353, 16
          %s355 = scalar_lea.vmem [#allocation9], %s354
          %s356 = sadd.s32 %s31, 1
          %s357 = smul.u32 %s356, 4
          %p358 = scmp.lt.s32.totalorder %s357, 11
          %s359 = scalar_select %p358, %s357, 11
          %s360 = smul.u32 2, %s359
          %s362 = ssub.s32 256, 256
          %363 = vsyncadd %s352, %s362
          %s364 = smul.addr %s30, 24
          %s365 = sadd.s32 %s360, %s364
          %s366 = smul.addr %s365, 128
          %s367 = scalar_lea.hbm %s2, %s366
          %s368 = sshll.u32 %s355, 4
          %s369 = int_to_ptr.vmem [resolvable:$true] %s368
          %374 = dma.hbm_to_vmem [thread:$0]  %s367, 256, %s369, %s352, 128, 128, 8
        $region44: #{tpu_custom_call.1} parent=31 // pred_fallthru
          _
      $region32: #{tpu_custom_call.1} parent=5 // pred_fallthru
        _
      %p375 = scmp.le.s32.totalorder 1, %s23
      %p376 = scmp.lt.s32.totalorder %s23, 7
      %p377 = pnand %p375, %p376
      %p378 = pneg %p377
      // Predicated region
      $region45: #{tpu_custom_call.1} parent=5 // pred_check
        _
      $region46: #{tpu_custom_call.1} parent=5 // pred_check_branch
        %380 = sbr.rel (%p377) target = $region48
      $region47: #{tpu_custom_call.1} parent=5 // pred_region
        %s381 = ssub.s32 %s23, 1
        %s382 = sand.u32 %s50, 1
        %s383 = scalar_lea.sflag [#allocation5], %s382
        %s384 = sand.u32 %s50, 1
        %s385 = smul.addr %s384, 64
        %s386 = scalar_lea.vmem [#allocation4], %s385
        // Predicated region
        $region49: #{tpu_custom_call.1} parent=47 // pred_check
          %p387 = pneg %p63
        $region50: #{tpu_custom_call.1} parent=47 // pred_check_branch
          %389 = sbr.rel (%p387) target = $region52
        $region51: #{tpu_custom_call.1} parent=47 // pred_region
          %390 = dma.done %s383, 1024
        $region52: #{tpu_custom_call.1} parent=47 // pred_fallthru
          _
        %s391 = sand.u32 %s28, 1
        %s392 = scalar_lea.sflag [#allocation8], %s391
        %s393 = sand.u32 %s86, 1
        %s394 = smul.addr %s393, 16
        %s395 = scalar_lea.vmem [#allocation7], %s394
        // Predicated region
        $region53: #{tpu_custom_call.1} parent=47 // pred_check
          %p396 = pneg %p99
        $region54: #{tpu_custom_call.1} parent=47 // pred_check_branch
          %398 = sbr.rel (%p396) target = $region56
        $region55: #{tpu_custom_call.1} parent=47 // pred_region
          %399 = dma.done %s392, 256
        $region56: #{tpu_custom_call.1} parent=47 // pred_fallthru
          _
        %s400 = sand.u32 %s28, 1
        %s401 = scalar_lea.sflag [#allocation8], %s400
        %s402 = sand.u32 %s122, 1
        %s403 = smul.addr %s402, 16
        %s404 = scalar_lea.vmem [#allocation9], %s403
        // Predicated region
        $region57: #{tpu_custom_call.1} parent=47 // pred_check
          %p405 = pneg %p135
        $region58: #{tpu_custom_call.1} parent=47 // pred_check_branch
          %407 = sbr.rel (%p405) target = $region60
        $region59: #{tpu_custom_call.1} parent=47 // pred_region
          %408 = dma.done %s401, 256
        $region60: #{tpu_custom_call.1} parent=47 // pred_fallthru
          _
        // Predicated region
        $region61: #{tpu_custom_call.1} parent=47 // pred_check
          %p409 = pneg %p156
        $region62: #{tpu_custom_call.1} parent=47 // pred_check_branch
          %411 = sbr.rel (%p409) target = $region64
        $region63: #{tpu_custom_call.1} parent=47 // pred_region
          %412 = dma.done [#allocation11], 12288
        $region64: #{tpu_custom_call.1} parent=47 // pred_fallthru
          _
        // Predicated region
        $region65: #{tpu_custom_call.1} parent=47 // pred_check
          %p413 = pneg %p198
        $region66: #{tpu_custom_call.1} parent=47 // pred_check_branch
          %415 = sbr.rel (%p413) target = $region68
        $region67: #{tpu_custom_call.1} parent=47 // pred_region
          %416 = dma.done [#allocation11], 12288
        $region68: #{tpu_custom_call.1} parent=47 // pred_fallthru
          _
        %s417 = sand.u32 %s50, 1
        %s418 = scalar_lea.sflag [#allocation5], %s417
        %s419 = sand.u32 %s50, 1
        %s420 = smul.addr %s419, 64
        %s421 = scalar_lea.vmem [#allocation4], %s420
        %p422 = pneg %p63
        %p423 = pneg %p60
        %s424 = sand.u32 %s28, 1
        %s425 = scalar_lea.sflag [#allocation8], %s424
        %s426 = sand.u32 %s86, 1
        %s427 = smul.addr %s426, 16
        %s428 = scalar_lea.vmem [#allocation7], %s427
        %p429 = pneg %p99
        %p430 = pneg %p96
        %s431 = sand.u32 %s28, 1
        %s432 = scalar_lea.sflag [#allocation8], %s431
        %s433 = sand.u32 %s122, 1
        %s434 = smul.addr %s433, 16
        %s435 = scalar_lea.vmem [#allocation9], %s434
        %p436 = pneg %p135
        %p437 = pneg %p132
        %p438 = pneg %p156
        %p439 = pneg %p153
        %p440 = pneg %p177
        %p441 = pneg %p174
        %p442 = pneg %p198
        %p443 = pneg %p195
        %p444 = pneg %p219
        %p445 = pneg %p216
        %p446 = pneg %p247
        %p447 = pneg %p244
        %s448 = sand.u32 %s234, 1
        %s449 = scalar_lea.sflag [#allocation6], %s448
        %s450 = sand.u32 %s234, 1
        %s451 = smul.addr %s450, 64
        %s452 = scalar_lea.vmem [#allocation13], %s451
        %s453 = smul.u32 8, %s33
        %s454 = smul.u32 %s33, 4
        %s455 = ssub.s32 %s454, 1
        %p456 = scmp.gt.s32.totalorder %s455, 0
        %s457 = scalar_select %p456, %s455, 0
        %s458 = smul.u32 2, %s457
        %s459 = sadd.s32 %s33, 1
        %s460 = smul.u32 %s459, 4
        %p461 = scmp.lt.s32.totalorder %s460, 11
        %s462 = scalar_select %p461, %s460, 11
        %s463 = smul.u32 2, %s462
        %s464 = smul.u32 8, %s33
        %v465 = vld [vmem:[%s395] sm:$0xff]
        %v466 = vld [vmem:[%s395 + $0x8] sm:$0xff]
        %v469 = vrot.slane %v465, 7
        %v470 = vrot.slane %v466, 7
        %471 = vrot.lane.b32.xlu0 %v469, 64
        %v472 = vpop.permute.xlu0 %471
        %473 = vrot.lane.b32.xlu0 %v470, 64
        %v474 = vpop.permute.xlu0 %473
        %vm477 = vcmask 1040384
        %v478 = vsel %vm477, 0.0, %v472
        %v479 = vsel %vm477, 0.0, %v474
        %481 = vrot.lane.b32.xlu0 %v465, 64
        %v482 = vpop.permute.xlu0 %481
        %483 = vrot.lane.b32.xlu0 0.0, 64
        %v484 = vpop.permute.xlu0 %483
        %485 = vrot.lane.b32.xlu0 %v466, 64
        %v486 = vpop.permute.xlu0 %485
        %vm490 = vcmask 523264
        %v491 = vsel %vm490, %v478, %v482
        %v492 = vsel %vm490, %v472, %v484
        %v493 = vsel %vm490, %v479, %v486
        %v494 = vsel %vm490, %v474, %v484
        %495 = vst [vmem:[#allocation2] sm:$0xff] %v491
        %496 = vst [vmem:[#allocation2 + $0x8] sm:$0x1] %v492
        %497 = vst [vmem:[#allocation2 + $0x10] sm:$0xff] %v493
        %498 = vst [vmem:[#allocation2 + $0x18] sm:$0x1] %v494
        %v499 = vld [vmem:[%s386] sm:$0xff]
        %v500 = vld [vmem:[%s386 + $0x8] sm:$0xff]
        %v501 = vld [vmem:[%s386 + $0x10] sm:$0xff]
        %v502 = vld [vmem:[%s386 + $0x18] sm:$0xff]
        %v503 = vld [vmem:[%s386 + $0x20] sm:$0xff]
        %v504 = vld [vmem:[%s386 + $0x28] sm:$0xff]
        %v505 = vld [vmem:[%s386 + $0x30] sm:$0xff]
        %v506 = vld [vmem:[%s386 + $0x38] sm:$0xff]
        %v515 = vrot.slane %v499, 7
        %v516 = vrot.slane %v500, 7
        %v517 = vrot.slane %v501, 7
        %v518 = vrot.slane %v502, 7
        %v519 = vrot.slane %v503, 7
        %v520 = vrot.slane %v504, 7
        %v521 = vrot.slane %v505, 7
        %v522 = vrot.slane %v506, 7
        %523 = vrot.lane.b32.xlu0 %v515, 64
        %v524 = vpop.permute.xlu0 %523
        %525 = vrot.lane.b32.xlu0 %v516, 64
        %v526 = vpop.permute.xlu0 %525
        %527 = vrot.lane.b32.xlu0 %v517, 64
        %v528 = vpop.permute.xlu0 %527
        %529 = vrot.lane.b32.xlu0 %v518, 64
        %v530 = vpop.permute.xlu0 %529
        %531 = vrot.lane.b32.xlu0 %v519, 64
        %v532 = vpop.permute.xlu0 %531
        %533 = vrot.lane.b32.xlu0 %v520, 64
        %v534 = vpop.permute.xlu0 %533
        %535 = vrot.lane.b32.xlu0 %v521, 64
        %v536 = vpop.permute.xlu0 %535
        %537 = vrot.lane.b32.xlu0 %v522, 64
        %v538 = vpop.permute.xlu0 %537
        %v547 = vsel %vm477, 0.0, %v524
        %v548 = vsel %vm477, 0.0, %v526
        %v549 = vsel %vm477, 0.0, %v528
        %v550 = vsel %vm477, 0.0, %v530
        %v551 = vsel %vm477, 0.0, %v532
        %v552 = vsel %vm477, 0.0, %v534
        %v553 = vsel %vm477, 0.0, %v536
        %v554 = vsel %vm477, 0.0, %v538
        %555 = vrot.lane.b32.xlu0 %v499, 64
        %v556 = vpop.permute.xlu0 %555
        %557 = vrot.lane.b32.xlu0 %v500, 64
        %v558 = vpop.permute.xlu0 %557
        %559 = vrot.lane.b32.xlu0 %v501, 64
        %v560 = vpop.permute.xlu0 %559
        %561 = vrot.lane.b32.xlu0 %v502, 64
        %v562 = vpop.permute.xlu0 %561
        %563 = vrot.lane.b32.xlu0 %v503, 64
        %v564 = vpop.permute.xlu0 %563
        %565 = vrot.lane.b32.xlu0 %v504, 64
        %v566 = vpop.permute.xlu0 %565
        %567 = vrot.lane.b32.xlu0 %v505, 64
        %v568 = vpop.permute.xlu0 %567
        %569 = vrot.lane.b32.xlu0 %v506, 64
        %v570 = vpop.permute.xlu0 %569
        %v579 = vsel %vm490, %v547, %v556
        %v580 = vsel %vm490, %v524, %v484
        %v581 = vsel %vm490, %v548, %v558
        %v582 = vsel %vm490, %v526, %v484
        %v583 = vsel %vm490, %v549, %v560
        %v584 = vsel %vm490, %v528, %v484
        %v585 = vsel %vm490, %v550, %v562
        %v586 = vsel %vm490, %v530, %v484
        %v587 = vsel %vm490, %v551, %v564
        %v588 = vsel %vm490, %v532, %v484
        %v589 = vsel %vm490, %v552, %v566
        %v590 = vsel %vm490, %v534, %v484
        %v591 = vsel %vm490, %v553, %v568
        %v592 = vsel %vm490, %v536, %v484
        %v593 = vsel %vm490, %v554, %v570
        %v594 = vsel %vm490, %v538, %v484
        %s595 = scalar_lea.vmem [#allocation2], 32
        %596 = vst [vmem:[%s595] sm:$0xff] %v579
        %597 = vst [vmem:[%s595 + $0x8] sm:$0x1] %v580
        %598 = vst [vmem:[%s595 + $0x10] sm:$0xff] %v581
        %599 = vst [vmem:[%s595 + $0x18] sm:$0x1] %v582
        %600 = vst [vmem:[%s595 + $0x20] sm:$0xff] %v583
        %601 = vst [vmem:[%s595 + $0x28] sm:$0x1] %v584
        %602 = vst [vmem:[%s595 + $0x30] sm:$0xff] %v585
        %603 = vst [vmem:[%s595 + $0x38] sm:$0x1] %v586
        %604 = vst [vmem:[%s595 + $0x40] sm:$0xff] %v587
        %605 = vst [vmem:[%s595 + $0x48] sm:$0x1] %v588
        %606 = vst [vmem:[%s595 + $0x50] sm:$0xff] %v589
        %607 = vst [vmem:[%s595 + $0x58] sm:$0x1] %v590
        %608 = vst [vmem:[%s595 + $0x60] sm:$0xff] %v591
        %609 = vst [vmem:[%s595 + $0x68] sm:$0x1] %v592
        %610 = vst [vmem:[%s595 + $0x70] sm:$0xff] %v593
        %611 = vst [vmem:[%s595 + $0x78] sm:$0x1] %v594
        %v612 = vld [vmem:[%s404] sm:$0xff]
        %v613 = vld [vmem:[%s404 + $0x8] sm:$0xff]
        %v616 = vrot.slane %v612, 7
        %v617 = vrot.slane %v613, 7
        %618 = vrot.lane.b32.xlu0 %v616, 64
        %v619 = vpop.permute.xlu0 %618
        %620 = vrot.lane.b32.xlu0 %v617, 64
        %v621 = vpop.permute.xlu0 %620
        %v624 = vsel %vm477, 0.0, %v619
        %v625 = vsel %vm477, 0.0, %v621
        %626 = vrot.lane.b32.xlu0 %v612, 64
        %v627 = vpop.permute.xlu0 %626
        %628 = vrot.lane.b32.xlu0 %v613, 64
        %v629 = vpop.permute.xlu0 %628
        %v632 = vsel %vm490, %v624, %v627
        %v633 = vsel %vm490, %v619, %v484
        %v634 = vsel %vm490, %v625, %v629
        %v635 = vsel %vm490, %v621, %v484
        %s636 = scalar_lea.vmem [#allocation2], 160
        %637 = vst [vmem:[%s636] sm:$0xff] %v632
        %638 = vst [vmem:[%s636 + $0x8] sm:$0x1] %v633
        %639 = vst [vmem:[%s636 + $0x10] sm:$0xff] %v634
        %640 = vst [vmem:[%s636 + $0x18] sm:$0x1] %v635
        %p641 = scmp.eq.s32.totalorder %s33, 0
        // Predicated region
        $region69: #{tpu_custom_call.1} parent=47 // pred_check
          %p642 = pneg %p641
        $region70: #{tpu_custom_call.1} parent=47 // pred_check_branch
          %644 = sbr.rel (%p642) target = $region72
        $region71: #{tpu_custom_call.1} parent=47 // pred_region
          %645 = vst [vmem:[#allocation2] sm:$0xff] 0.0
          %646 = vst [vmem:[#allocation2 + $0x8] sm:$0x1] 0.0
          %647 = vst [vmem:[#allocation2 + $0x10] sm:$0xff] 0.0
          %648 = vst [vmem:[#allocation2 + $0x18] sm:$0x1] 0.0
        $region72: #{tpu_custom_call.1} parent=47 // pred_fallthru
          _
        %p649 = scmp.eq.s32.totalorder %s33, 2
        // Predicated region
        $region73: #{tpu_custom_call.1} parent=47 // pred_check
          %p650 = pneg %p649
        $region74: #{tpu_custom_call.1} parent=47 // pred_check_branch
          %652 = sbr.rel (%p650) target = $region76
        $region75: #{tpu_custom_call.1} parent=47 // pred_region
          %653 = vst [vmem:[%s636] sm:$0xff] 0.0
          %654 = vst [vmem:[%s636 + $0x8] sm:$0x1] 0.0
          %655 = vst [vmem:[%s636 + $0x10] sm:$0xff] 0.0
          %656 = vst [vmem:[%s636 + $0x18] sm:$0x1] 0.0
        $region76: #{tpu_custom_call.1} parent=47 // pred_fallthru
          _
        %v657 = vld [vmem:[#allocation2] sm:$0xff]
        %v658 = vld [vmem:[#allocation2 + $0x10] sm:$0xff]
        %v659 = vld [vmem:[#allocation2 + $0x20] sm:$0xff]
        %v660 = vld [vmem:[#allocation2 + $0x30] sm:$0xff]
        %v661 = vld [vmem:[#allocation2 + $0x40] sm:$0xff]
        %v662 = vld [vmem:[#allocation2 + $0x50] sm:$0xff]
        %v663 = vld [vmem:[#allocation2 + $0x60] sm:$0xff]
        %v664 = vld [vmem:[#allocation2 + $0x70] sm:$0xff]
        %v665 = vld [vmem:[#allocation2 + $0x80] sm:$0xff]
        %v666 = vld [vmem:[#allocation2 + $0x90] sm:$0xff]
        %v667 = vld [vmem:[#allocation10] sm:$0xff]
        %v668 = vld [vmem:[#allocation10 + $0x8] sm:$0xff]
        %v669 = vld [vmem:[#allocation10 + $0x10] sm:$0xff]
        %v670 = vld [vmem:[#allocation10 + $0x18] sm:$0xff]
        %v671 = vld [vmem:[#allocation10 + $0x20] sm:$0xff]
        %v672 = vld [vmem:[#allocation10 + $0x28] sm:$0xff]
        %v673 = vld [vmem:[#allocation10 + $0x30] sm:$0xff]
        %v674 = vld [vmem:[#allocation10 + $0x38] sm:$0xff]
        %v675 = vld [vmem:[#allocation10 + $0x40] sm:$0xff]
        %v676 = vld [vmem:[#allocation10 + $0x48] sm:$0xff]
        %v677 = vld [vmem:[#allocation10 + $0x50] sm:$0xff]
        %v678 = vld [vmem:[#allocation10 + $0x58] sm:$0xff]
        %v679 = vld [vmem:[#allocation10 + $0x60] sm:$0xff]
        %v680 = vld [vmem:[#allocation10 + $0x68] sm:$0xff]
        %v681 = vld [vmem:[#allocation10 + $0x70] sm:$0xff]
        %v682 = vld [vmem:[#allocation10 + $0x78] sm:$0xff]
        %v683 = vld [vmem:[#allocation2 + $0x1] sm:$0xff]
        %v684 = vld [vmem:[#allocation2 + $0x11] sm:$0xff]
        %v685 = vld [vmem:[#allocation2 + $0x21] sm:$0xff]
        %v686 = vld [vmem:[#allocation2 + $0x31] sm:$0xff]
        %v687 = vld [vmem:[#allocation2 + $0x41] sm:$0xff]
        %v688 = vld [vmem:[#allocation2 + $0x51] sm:$0xff]
        %v689 = vld [vmem:[#allocation2 + $0x61] sm:$0xff]
        %v690 = vld [vmem:[#allocation2 + $0x71] sm:$0xff]
        %v691 = vld [vmem:[#allocation2 + $0x81] sm:$0xff]
        %v692 = vld [vmem:[#allocation2 + $0x91] sm:$0xff]
        %v693 = vld [vmem:[#allocation10 + $0x80] sm:$0xff]
        %v694 = vld [vmem:[#allocation10 + $0x88] sm:$0xff]
        %v695 = vld [vmem:[#allocation10 + $0x90] sm:$0xff]
        %v696 = vld [vmem:[#allocation10 + $0x98] sm:$0xff]
        %v697 = vld [vmem:[#allocation10 + $0xa0] sm:$0xff]
        %v698 = vld [vmem:[#allocation10 + $0xa8] sm:$0xff]
        %v699 = vld [vmem:[#allocation10 + $0xb0] sm:$0xff]
        %v700 = vld [vmem:[#allocation10 + $0xb8] sm:$0xff]
        %v701 = vld [vmem:[#allocation10 + $0xc0] sm:$0xff]
        %v702 = vld [vmem:[#allocation10 + $0xc8] sm:$0xff]
        %v703 = vld [vmem:[#allocation10 + $0xd0] sm:$0xff]
        %v704 = vld [vmem:[#allocation10 + $0xd8] sm:$0xff]
        %v705 = vld [vmem:[#allocation10 + $0xe0] sm:$0xff]
        %v706 = vld [vmem:[#allocation10 + $0xe8] sm:$0xff]
        %v707 = vld [vmem:[#allocation10 + $0xf0] sm:$0xff]
        %v708 = vld [vmem:[#allocation10 + $0xf8] sm:$0xff]
        %709 = vmatprep.subr.mxu0 0.0
        %710 = vmatpush1.msra.mxu0 %v693
        %711 = vmatprep.subr.mxu0 0.0
        %712 = vmatpush1.msra.mxu0 %v694
        %713 = vmatprep.subr.mxu0 0.0
        %714 = vmatpush1.msra.mxu0 %v695
        %715 = vmatprep.subr.mxu0 0.0
        %716 = vmatpush1.msra.mxu0 %v696
        %717 = vmatprep.subr.mxu0 0.0
        %718 = vmatpush1.msra.mxu0 %v697
        %719 = vmatprep.subr.mxu0 0.0
        %720 = vmatpush1.msra.mxu0 %v698
        %721 = vmatprep.subr.mxu0 0.0
        %722 = vmatpush1.msra.mxu0 %v699
        %723 = vmatprep.subr.mxu0 0.0
        %724 = vmatpush1.msra.mxu0 %v700
        %725 = vmatprep.subr.mxu0 0.0
        %726 = vmatpush1.msra.mxu0 %v701
        %727 = vmatprep.subr.mxu0 0.0
        %728 = vmatpush1.msra.mxu0 %v702
        %729 = vmatprep.subr.mxu0 0.0
        %730 = vmatpush1.msra.mxu0 %v703
        %731 = vmatprep.subr.mxu0 0.0
        %732 = vmatpush1.msra.mxu0 %v704
        %733 = vmatprep.subr.mxu0 0.0
        %734 = vmatpush1.msra.mxu0 %v705
        %735 = vmatprep.subr.mxu0 0.0
        %736 = vmatpush1.msra.mxu0 %v706
        %737 = vmatprep.subr.mxu0 0.0
        %738 = vmatpush1.msra.mxu0 %v707
        %739 = vmatprep.subr.mxu0 0.0
        %740 = vmatpush1.msra.mxu0 %v708
        %741 = vmatprep.subr.mxu0 0.0
        %742 = vmatpush1.msra.mxu0 0.0
        %743 = vmatprep.subr.mxu0 0.0
        %744 = vmatpush1.msra.mxu0 0.0
        %745 = vmatprep.subr.mxu0 0.0
        %746 = vmatpush1.msra.mxu0 0.0
        %747 = vmatprep.subr.mxu0 0.0
        %748 = vmatpush1.msra.mxu0 0.0
        %749 = vmatprep.subr.mxu0 0.0
        %750 = vmatpush1.msra.mxu0 0.0
        %751 = vmatprep.subr.mxu0 0.0
        %752 = vmatpush1.msra.mxu0 0.0
        %753 = vmatprep.subr.mxu0 0.0
        %754 = vmatpush1.msra.mxu0 0.0
        %755 = vmatprep.subr.mxu0 0.0
        %756 = vmatpush1.msra.mxu0 0.0
        %757 = vmatprep.subr.mxu0 0.0
        %758 = vmatpush1.msra.mxu0 0.0
        %759 = vmatprep.subr.mxu0 0.0
        %760 = vmatpush1.msra.mxu0 0.0
        %761 = vmatprep.subr.mxu0 0.0
        %762 = vmatpush1.msra.mxu0 0.0
        %763 = vmatprep.subr.mxu0 0.0
        %764 = vmatpush1.msra.mxu0 0.0
        %765 = vmatprep.subr.mxu0 0.0
        %766 = vmatpush1.msra.mxu0 0.0
        %767 = vmatprep.subr.mxu0 0.0
        %768 = vmatpush1.msra.mxu0 0.0
        %769 = vmatprep.subr.mxu0 0.0
        %770 = vmatpush1.msra.mxu0 0.0
        %771 = vmatprep.subr.mxu0 0.0
        %772 = vmatpush1.msra.mxu0 0.0
        %773 = vmatprep.mubr.f32.mxu0 0.0
        %774 = vmatmul.mubr.f32.gmra.mrb[0].mxu0 %v683
        %v775 = vpop.f32.mrb[0].mxu0
        %v776 = vadd.f32 0.0, %v775
        %v777 = vpop.f32.mrb[0].mxu0
        %778 = vmatprep.mubr.f32.mxu0 0.0
        %779 = vmatmul.mubr.f32.gmra.mrb[0].mxu0 %v684
        %v780 = vpop.f32.mrb[0].mxu0
        %v781 = vadd.f32 0.0, %v780
        %v782 = vpop.f32.mrb[0].mxu0
        %783 = vmatprep.mubr.f32.mxu0 0.0
        %784 = vmatmul.mubr.f32.gmra.mrb[0].mxu0 %v685
        %v785 = vpop.f32.mrb[0].mxu0
        %v786 = vadd.f32 0.0, %v785
        %v787 = vpop.f32.mrb[0].mxu0
        %788 = vmatprep.mubr.f32.mxu0 0.0
        %789 = vmatmul.mubr.f32.gmra.mrb[0].mxu0 %v686
        %v790 = vpop.f32.mrb[0].mxu0
        %v791 = vadd.f32 0.0, %v790
        %v792 = vpop.f32.mrb[0].mxu0
        %793 = vmatprep.mubr.f32.mxu0 0.0
        %794 = vmatmul.mubr.f32.gmra.mrb[0].mxu0 %v687
        %v795 = vpop.f32.mrb[0].mxu0
        %v796 = vadd.f32 0.0, %v795
        %v797 = vpop.f32.mrb[0].mxu0
        %798 = vmatprep.mubr.f32.mxu0 0.0
        %799 = vmatmul.mubr.f32.gmra.mrb[0].mxu0 %v688
        %v800 = vpop.f32.mrb[0].mxu0
        %v801 = vadd.f32 0.0, %v800
        %v802 = vpop.f32.mrb[0].mxu0
        %803 = vmatprep.mubr.f32.mxu0 0.0
        %804 = vmatmul.mubr.f32.gmra.mrb[0].mxu0 %v689
        %v805 = vpop.f32.mrb[0].mxu0
        %v806 = vadd.f32 0.0, %v805
        %v807 = vpop.f32.mrb[0].mxu0
        %808 = vmatprep.mubr.f32.mxu0 0.0
        %809 = vmatmul.mubr.f32.gmra.mrb[0].mxu0 %v690
        %v810 = vpop.f32.mrb[0].mxu0
        %v811 = vadd.f32 0.0, %v810
        %v812 = vpop.f32.mrb[0].mxu0
        %813 = vmatprep.mubr.f32.mxu0 0.0
        %814 = vmatmul.mubr.f32.gmra.mrb[0].mxu0 %v691
        %v815 = vpop.f32.mrb[0].mxu0
        %v816 = vadd.f32 0.0, %v815
        %v817 = vpop.f32.mrb[0].mxu0
        %818 = vmatprep.mubr.f32.mxu0 0.0
        %819 = vmatmul.mubr.f32.gmra.mrb[0].mxu0 %v692
        %v820 = vpop.f32.mrb[0].mxu0
        %v821 = vadd.f32 0.0, %v820
        %v822 = vpop.f32.mrb[0].mxu0
        %823 = vdwg.mxu0
        %824 = vmatprep.subr.mxu0 0.0
        %825 = vmatpush1.msra.mxu0 %v667
        %826 = vmatprep.subr.mxu0 0.0
        %827 = vmatpush1.msra.mxu0 %v668
        %828 = vmatprep.subr.mxu0 0.0
        %829 = vmatpush1.msra.mxu0 %v669
        %830 = vmatprep.subr.mxu0 0.0
        %831 = vmatpush1.msra.mxu0 %v670
        %832 = vmatprep.subr.mxu0 0.0
        %833 = vmatpush1.msra.mxu0 %v671
        %834 = vmatprep.subr.mxu0 0.0
        %835 = vmatpush1.msra.mxu0 %v672
        %836 = vmatprep.subr.mxu0 0.0
        %837 = vmatpush1.msra.mxu0 %v673
        %838 = vmatprep.subr.mxu0 0.0
        %839 = vmatpush1.msra.mxu0 %v674
        %840 = vmatprep.subr.mxu0 0.0
        %841 = vmatpush1.msra.mxu0 %v675
        %842 = vmatprep.subr.mxu0 0.0
        %843 = vmatpush1.msra.mxu0 %v676
        %844 = vmatprep.subr.mxu0 0.0
        %845 = vmatpush1.msra.mxu0 %v677
        %846 = vmatprep.subr.mxu0 0.0
        %847 = vmatpush1.msra.mxu0 %v678
        %848 = vmatprep.subr.mxu0 0.0
        %849 = vmatpush1.msra.mxu0 %v679
        %850 = vmatprep.subr.mxu0 0.0
        %851 = vmatpush1.msra.mxu0 %v680
        %852 = vmatprep.subr.mxu0 0.0
        %853 = vmatpush1.msra.mxu0 %v681
        %854 = vmatprep.subr.mxu0 0.0
        %855 = vmatpush1.msra.mxu0 %v682
        %856 = vmatprep.subr.mxu0 0.0
        %857 = vmatpush1.msra.mxu0 0.0
        %858 = vmatprep.subr.mxu0 0.0
        %859 = vmatpush1.msra.mxu0 0.0
        %860 = vmatprep.subr.mxu0 0.0
        %861 = vmatpush1.msra.mxu0 0.0
        %862 = vmatprep.subr.mxu0 0.0
        %863 = vmatpush1.msra.mxu0 0.0
        %864 = vmatprep.subr.mxu0 0.0
        %865 = vmatpush1.msra.mxu0 0.0
        %866 = vmatprep.subr.mxu0 0.0
        %867 = vmatpush1.msra.mxu0 0.0
        %868 = vmatprep.subr.mxu0 0.0
        %869 = vmatpush1.msra.mxu0 0.0
        %870 = vmatprep.subr.mxu0 0.0
        %871 = vmatpush1.msra.mxu0 0.0
        %872 = vmatprep.subr.mxu0 0.0
        %873 = vmatpush1.msra.mxu0 0.0
        %874 = vmatprep.subr.mxu0 0.0
        %875 = vmatpush1.msra.mxu0 0.0
        %876 = vmatprep.subr.mxu0 0.0
        %877 = vmatpush1.msra.mxu0 0.0
        %878 = vmatprep.subr.mxu0 0.0
        %879 = vmatpush1.msra.mxu0 0.0
        %880 = vmatprep.subr.mxu0 0.0
        %881 = vmatpush1.msra.mxu0 0.0
        %882 = vmatprep.subr.mxu0 0.0
        %883 = vmatpush1.msra.mxu0 0.0
        %884 = vmatprep.subr.mxu0 0.0
        %885 = vmatpush1.msra.mxu0 0.0
        %886 = vmatprep.subr.mxu0 0.0
        %887 = vmatpush1.msra.mxu0 0.0
        %888 = vmatprep.mubr.f32.mxu0 0.0
        %889 = vmatmul.mubr.f32.gmra.mrb[0].mxu0 %v657
        %v890 = vpop.f32.mrb[0].mxu0
        %v891 = vadd.f32 %v776, %v890
        %v892 = vpop.f32.mrb[0].mxu0
        %893 = vmatprep.mubr.f32.mxu0 0.0
        %894 = vmatmul.mubr.f32.gmra.mrb[0].mxu0 %v658
        %v895 = vpop.f32.mrb[0].mxu0
        %v896 = vadd.f32 %v781, %v895
        %v897 = vpop.f32.mrb[0].mxu0
        %898 = vmatprep.mubr.f32.mxu0 0.0
        %899 = vmatmul.mubr.f32.gmra.mrb[0].mxu0 %v659
        %v900 = vpop.f32.mrb[0].mxu0
        %v901 = vadd.f32 %v786, %v900
        %v902 = vpop.f32.mrb[0].mxu0
        %903 = vmatprep.mubr.f32.mxu0 0.0
        %904 = vmatmul.mubr.f32.gmra.mrb[0].mxu0 %v660
        %v905 = vpop.f32.mrb[0].mxu0
        %v906 = vadd.f32 %v791, %v905
        %v907 = vpop.f32.mrb[0].mxu0
        %908 = vmatprep.mubr.f32.mxu0 0.0
        %909 = vmatmul.mubr.f32.gmra.mrb[0].mxu0 %v661
        %v910 = vpop.f32.mrb[0].mxu0
        %v911 = vadd.f32 %v796, %v910
        %v912 = vpop.f32.mrb[0].mxu0
        %913 = vmatprep.mubr.f32.mxu0 0.0
        %914 = vmatmul.mubr.f32.gmra.mrb[0].mxu0 %v662
        %v915 = vpop.f32.mrb[0].mxu0
        %v916 = vadd.f32 %v801, %v915
        %v917 = vpop.f32.mrb[0].mxu0
        %918 = vmatprep.mubr.f32.mxu0 0.0
        %919 = vmatmul.mubr.f32.gmra.mrb[0].mxu0 %v663
        %v920 = vpop.f32.mrb[0].mxu0
        %v921 = vadd.f32 %v806, %v920
        %v922 = vpop.f32.mrb[0].mxu0
        %923 = vmatprep.mubr.f32.mxu0 0.0
        %924 = vmatmul.mubr.f32.gmra.mrb[0].mxu0 %v664
        %v925 = vpop.f32.mrb[0].mxu0
        %v926 = vadd.f32 %v811, %v925
        %v927 = vpop.f32.mrb[0].mxu0
        %928 = vmatprep.mubr.f32.mxu0 0.0
        %929 = vmatmul.mubr.f32.gmra.mrb[0].mxu0 %v665
        %v930 = vpop.f32.mrb[0].mxu0
        %v931 = vadd.f32 %v816, %v930
        %v932 = vpop.f32.mrb[0].mxu0
        %933 = vmatprep.mubr.f32.mxu0 0.0
        %934 = vmatmul.mubr.f32.gmra.mrb[0].mxu0 %v666
        %v935 = vpop.f32.mrb[0].mxu0
        %v936 = vadd.f32 %v821, %v935
        %v937 = vpop.f32.mrb[0].mxu0
        %938 = vdwg.mxu0
        %s939 = scalar_lea.vmem [#allocation2], 16
        %v940 = vld [vmem:[%s939] sm:$0xff]
        %v941 = vld [vmem:[%s939 + $0x10] sm:$0xff]
        %v942 = vld [vmem:[%s939 + $0x20] sm:$0xff]
        %v943 = vld [vmem:[%s939 + $0x30] sm:$0xff]
        %v944 = vld [vmem:[%s939 + $0x40] sm:$0xff]
        %v945 = vld [vmem:[%s939 + $0x50] sm:$0xff]
        %v946 = vld [vmem:[%s939 + $0x60] sm:$0xff]
        %v947 = vld [vmem:[%s939 + $0x70] sm:$0xff]
        %v948 = vld [vmem:[%s939 + $0x80] sm:$0xff]
        %v949 = vld [vmem:[%s939 + $0x90] sm:$0xff]
        %v950 = vld [vmem:[#allocation10 + $0x100] sm:$0xff]
        %v951 = vld [vmem:[#allocation10 + $0x108] sm:$0xff]
        %v952 = vld [vmem:[#allocation10 + $0x110] sm:$0xff]
        %v953 = vld [vmem:[#allocation10 + $0x118] sm:$0xff]
        %v954 = vld [vmem:[#allocation10 + $0x120] sm:$0xff]
        %v955 = vld [vmem:[#allocation10 + $0x128] sm:$0xff]
        %v956 = vld [vmem:[#allocation10 + $0x130] sm:$0xff]
        %v957 = vld [vmem:[#allocation10 + $0x138] sm:$0xff]
        %v958 = vld [vmem:[#allocation10 + $0x140] sm:$0xff]
        %v959 = vld [vmem:[#allocation10 + $0x148] sm:$0xff]
        %v960 = vld [vmem:[#allocation10 + $0x150] sm:$0xff]
        %v961 = vld [vmem:[#allocation10 + $0x158] sm:$0xff]
        %v962 = vld [vmem:[#allocation10 + $0x160] sm:$0xff]
        %v963 = vld [vmem:[#allocation10 + $0x168] sm:$0xff]
        %v964 = vld [vmem:[#allocation10 + $0x170] sm:$0xff]
        %v965 = vld [vmem:[#allocation10 + $0x178] sm:$0xff]
        %966 = vmatprep.subr.mxu0 0.0
        %967 = vmatpush1.msra.mxu0 %v950
        %968 = vmatprep.subr.mxu0 0.0
        %969 = vmatpush1.msra.mxu0 %v951
        %970 = vmatprep.subr.mxu0 0.0
        %971 = vmatpush1.msra.mxu0 %v952
        %972 = vmatprep.subr.mxu0 0.0
        %973 = vmatpush1.msra.mxu0 %v953
        %974 = vmatprep.subr.mxu0 0.0
        %975 = vmatpush1.msra.mxu0 %v954
        %976 = vmatprep.subr.mxu0 0.0
        %977 = vmatpush1.msra.mxu0 %v955
        %978 = vmatprep.subr.mxu0 0.0
        %979 = vmatpush1.msra.mxu0 %v956
        %980 = vmatprep.subr.mxu0 0.0
        %981 = vmatpush1.msra.mxu0 %v957
        %982 = vmatprep.subr.mxu0 0.0
        %983 = vmatpush1.msra.mxu0 %v958
        %984 = vmatprep.subr.mxu0 0.0
        %985 = vmatpush1.msra.mxu0 %v959
        %986 = vmatprep.subr.mxu0 0.0
        %987 = vmatpush1.msra.mxu0 %v960
        %988 = vmatprep.subr.mxu0 0.0
        %989 = vmatpush1.msra.mxu0 %v961
        %990 = vmatprep.subr.mxu0 0.0
        %991 = vmatpush1.msra.mxu0 %v962
        %992 = vmatprep.subr.mxu0 0.0
        %993 = vmatpush1.msra.mxu0 %v963
        %994 = vmatprep.subr.mxu0 0.0
        %995 = vmatpush1.msra.mxu0 %v964
        %996 = vmatprep.subr.mxu0 0.0
        %997 = vmatpush1.msra.mxu0 %v965
        %998 = vmatprep.subr.mxu0 0.0
        %999 = vmatpush1.msra.mxu0 0.0
        %1000 = vmatprep.subr.mxu0 0.0
        %1001 = vmatpush1.msra.mxu0 0.0
        %1002 = vmatprep.subr.mxu0 0.0
        %1003 = vmatpush1.msra.mxu0 0.0
        %1004 = vmatprep.subr.mxu0 0.0
        %1005 = vmatpush1.msra.mxu0 0.0
        %1006 = vmatprep.subr.mxu0 0.0
        %1007 = vmatpush1.msra.mxu0 0.0
        %1008 = vmatprep.subr.mxu0 0.0
        %1009 = vmatpush1.msra.mxu0 0.0
        %1010 = vmatprep.subr.mxu0 0.0
        %1011 = vmatpush1.msra.mxu0 0.0
        %1012 = vmatprep.subr.mxu0 0.0
        %1013 = vmatpush1.msra.mxu0 0.0
        %1014 = vmatprep.subr.mxu0 0.0
        %1015 = vmatpush1.msra.mxu0 0.0
        %1016 = vmatprep.subr.mxu0 0.0
        %1017 = vmatpush1.msra.mxu0 0.0
        %1018 = vmatprep.subr.mxu0 0.0
        %1019 = vmatpush1.msra.mxu0 0.0
        %1020 = vmatprep.subr.mxu0 0.0
        %1021 = vmatpush1.msra.mxu0 0.0
        %1022 = vmatprep.subr.mxu0 0.0
        %1023 = vmatpush1.msra.mxu0 0.0
        %1024 = vmatprep.subr.mxu0 0.0
        %1025 = vmatpush1.msra.mxu0 0.0
        %1026 = vmatprep.subr.mxu0 0.0
        %1027 = vmatpush1.msra.mxu0 0.0
        %1028 = vmatprep.subr.mxu0 0.0
        %1029 = vmatpush1.msra.mxu0 0.0
        %1030 = vmatprep.mubr.f32.mxu0 0.0
        %1031 = vmatmul.mubr.f32.gmra.mrb[0].mxu0 %v940
        %v1032 = vpop.f32.mrb[0].mxu0
        %v1033 = vadd.f32 0.0, %v1032
        %v1034 = vpop.f32.mrb[0].mxu0
        %1035 = vmatprep.mubr.f32.mxu0 0.0
        %1036 = vmatmul.mubr.f32.gmra.mrb[0].mxu0 %v941
        %v1037 = vpop.f32.mrb[0].mxu0
        %v1038 = vadd.f32 0.0, %v1037
        %v1039 = vpop.f32.mrb[0].mxu0
        %1040 = vmatprep.mubr.f32.mxu0 0.0
        %1041 = vmatmul.mubr.f32.gmra.mrb[0].mxu0 %v942
        %v1042 = vpop.f32.mrb[0].mxu0
        %v1043 = vadd.f32 0.0, %v1042
        %v1044 = vpop.f32.mrb[0].mxu0
        %1045 = vmatprep.mubr.f32.mxu0 0.0
        %1046 = vmatmul.mubr.f32.gmra.mrb[0].mxu0 %v943
        %v1047 = vpop.f32.mrb[0].mxu0
        %v1048 = vadd.f32 0.0, %v1047
        %v1049 = vpop.f32.mrb[0].mxu0
        %1050 = vmatprep.mubr.f32.mxu0 0.0
        %1051 = vmatmul.mubr.f32.gmra.mrb[0].mxu0 %v944
        %v1052 = vpop.f32.mrb[0].mxu0
        %v1053 = vadd.f32 0.0, %v1052
        %v1054 = vpop.f32.mrb[0].mxu0
        %1055 = vmatprep.mubr.f32.mxu0 0.0
        %1056 = vmatmul.mubr.f32.gmra.mrb[0].mxu0 %v945
        %v1057 = vpop.f32.mrb[0].mxu0
        %v1058 = vadd.f32 0.0, %v1057
        %v1059 = vpop.f32.mrb[0].mxu0
        %1060 = vmatprep.mubr.f32.mxu0 0.0
        %1061 = vmatmul.mubr.f32.gmra.mrb[0].mxu0 %v946
        %v1062 = vpop.f32.mrb[0].mxu0
        %v1063 = vadd.f32 0.0, %v1062
        %v1064 = vpop.f32.mrb[0].mxu0
        %1065 = vmatprep.mubr.f32.mxu0 0.0
        %1066 = vmatmul.mubr.f32.gmra.mrb[0].mxu0 %v947
        %v1067 = vpop.f32.mrb[0].mxu0
        %v1068 = vadd.f32 0.0, %v1067
        %v1069 = vpop.f32.mrb[0].mxu0
        %1070 = vmatprep.mubr.f32.mxu0 0.0
        %1071 = vmatmul.mubr.f32.gmra.mrb[0].mxu0 %v948
        %v1072 = vpop.f32.mrb[0].mxu0
        %v1073 = vadd.f32 0.0, %v1072
        %v1074 = vpop.f32.mrb[0].mxu0
        %1075 = vmatprep.mubr.f32.mxu0 0.0
        %1076 = vmatmul.mubr.f32.gmra.mrb[0].mxu0 %v949
        %v1077 = vpop.f32.mrb[0].mxu0
        %v1078 = vadd.f32 0.0, %v1077
        %v1079 = vpop.f32.mrb[0].mxu0
        %1080 = vdwg.mxu0
        %v1081 = vadd.f32 %v891, %v1033
        %v1082 = vadd.f32 %v896, %v1038
        %v1083 = vadd.f32 %v901, %v1043
        %v1084 = vadd.f32 %v906, %v1048
        %v1085 = vadd.f32 %v911, %v1053
        %v1086 = vadd.f32 %v916, %v1058
        %v1087 = vadd.f32 %v921, %v1063
        %v1088 = vadd.f32 %v926, %v1068
        %v1089 = vadd.f32 %v931, %v1073
        %v1090 = vadd.f32 %v936, %v1078
        %v1091 = vld [vmem:[%s939 + $0x1] sm:$0xff]
        %v1092 = vld [vmem:[%s939 + $0x11] sm:$0xff]
        %v1093 = vld [vmem:[%s939 + $0x21] sm:$0xff]
        %v1094 = vld [vmem:[%s939 + $0x31] sm:$0xff]
        %v1095 = vld [vmem:[%s939 + $0x41] sm:$0xff]
        %v1096 = vld [vmem:[%s939 + $0x51] sm:$0xff]
        %v1097 = vld [vmem:[%s939 + $0x61] sm:$0xff]
        %v1098 = vld [vmem:[%s939 + $0x71] sm:$0xff]
        %v1099 = vld [vmem:[%s939 + $0x81] sm:$0xff]
        %v1100 = vld [vmem:[%s939 + $0x91] sm:$0xff]
        %v1101 = vld [vmem:[#allocation10 + $0x180] sm:$0xff]
        %v1102 = vld [vmem:[#allocation10 + $0x188] sm:$0xff]
        %v1103 = vld [vmem:[#allocation10 + $0x190] sm:$0xff]
        %v1104 = vld [vmem:[#allocation10 + $0x198] sm:$0xff]
        %v1105 = vld [vmem:[#allocation10 + $0x1a0] sm:$0xff]
        %v1106 = vld [vmem:[#allocation10 + $0x1a8] sm:$0xff]
        %v1107 = vld [vmem:[#allocation10 + $0x1b0] sm:$0xff]
        %v1108 = vld [vmem:[#allocation10 + $0x1b8] sm:$0xff]
        %v1109 = vld [vmem:[#allocation10 + $0x1c0] sm:$0xff]
        %v1110 = vld [vmem:[#allocation10 + $0x1c8] sm:$0xff]
        %v1111 = vld [vmem:[#allocation10 + $0x1d0] sm:$0xff]
        %v1112 = vld [vmem:[#allocation10 + $0x1d8] sm:$0xff]
        %v1113 = vld [vmem:[#allocation10 + $0x1e0] sm:$0xff]
        %v1114 = vld [vmem:[#allocation10 + $0x1e8] sm:$0xff]
        %v1115 = vld [vmem:[#allocation10 + $0x1f0] sm:$0xff]
        %v1116 = vld [vmem:[#allocation10 + $0x1f8] sm:$0xff]
        %1117 = vmatprep.subr.mxu0 0.0
        %1118 = vmatpush1.msra.mxu0 %v1101
        %1119 = vmatprep.subr.mxu0 0.0
        %1120 = vmatpush1.msra.mxu0 %v1102
        %1121 = vmatprep.subr.mxu0 0.0
        %1122 = vmatpush1.msra.mxu0 %v1103
        %1123 = vmatprep.subr.mxu0 0.0
        %1124 = vmatpush1.msra.mxu0 %v1104
        %1125 = vmatprep.subr.mxu0 0.0
        %1126 = vmatpush1.msra.mxu0 %v1105
        %1127 = vmatprep.subr.mxu0 0.0
        %1128 = vmatpush1.msra.mxu0 %v1106
        %1129 = vmatprep.subr.mxu0 0.0
        %1130 = vmatpush1.msra.mxu0 %v1107
        %1131 = vmatprep.subr.mxu0 0.0
        %1132 = vmatpush1.msra.mxu0 %v1108
        %1133 = vmatprep.subr.mxu0 0.0
        %1134 = vmatpush1.msra.mxu0 %v1109
        %1135 = vmatprep.subr.mxu0 0.0
        %1136 = vmatpush1.msra.mxu0 %v1110
        %1137 = vmatprep.subr.mxu0 0.0
        %1138 = vmatpush1.msra.mxu0 %v1111
        %1139 = vmatprep.subr.mxu0 0.0
        %1140 = vmatpush1.msra.mxu0 %v1112
        %1141 = vmatprep.subr.mxu0 0.0
        %1142 = vmatpush1.msra.mxu0 %v1113
        %1143 = vmatprep.subr.mxu0 0.0
        %1144 = vmatpush1.msra.mxu0 %v1114
        %1145 = vmatprep.subr.mxu0 0.0
        %1146 = vmatpush1.msra.mxu0 %v1115
        %1147 = vmatprep.subr.mxu0 0.0
        %1148 = vmatpush1.msra.mxu0 %v1116
        %1149 = vmatprep.subr.mxu0 0.0
        %1150 = vmatpush1.msra.mxu0 0.0
        %1151 = vmatprep.subr.mxu0 0.0
        %1152 = vmatpush1.msra.mxu0 0.0
        %1153 = vmatprep.subr.mxu0 0.0
        %1154 = vmatpush1.msra.mxu0 0.0
        %1155 = vmatprep.subr.mxu0 0.0
        %1156 = vmatpush1.msra.mxu0 0.0
        %1157 = vmatprep.subr.mxu0 0.0
        %1158 = vmatpush1.msra.mxu0 0.0
        %1159 = vmatprep.subr.mxu0 0.0
        %1160 = vmatpush1.msra.mxu0 0.0
        %1161 = vmatprep.subr.mxu0 0.0
        %1162 = vmatpush1.msra.mxu0 0.0
        %1163 = vmatprep.subr.mxu0 0.0
        %1164 = vmatpush1.msra.mxu0 0.0
        %1165 = vmatprep.subr.mxu0 0.0
        %1166 = vmatpush1.msra.mxu0 0.0
        %1167 = vmatprep.subr.mxu0 0.0
        %1168 = vmatpush1.msra.mxu0 0.0
        %1169 = vmatprep.subr.mxu0 0.0
        %1170 = vmatpush1.msra.mxu0 0.0
        %1171 = vmatprep.subr.mxu0 0.0
        %1172 = vmatpush1.msra.mxu0 0.0
        %1173 = vmatprep.subr.mxu0 0.0
        %1174 = vmatpush1.msra.mxu0 0.0
        %1175 = vmatprep.subr.mxu0 0.0
        %1176 = vmatpush1.msra.mxu0 0.0
        %1177 = vmatprep.subr.mxu0 0.0
        %1178 = vmatpush1.msra.mxu0 0.0
        %1179 = vmatprep.subr.mxu0 0.0
        %1180 = vmatpush1.msra.mxu0 0.0
        %1181 = vmatprep.mubr.f32.mxu0 0.0
        %1182 = vmatmul.mubr.f32.gmra.mrb[0].mxu0 %v1091
        %v1183 = vpop.f32.mrb[0].mxu0
        %v1184 = vadd.f32 0.0, %v1183
        %v1185 = vpop.f32.mrb[0].mxu0
        %1186 = vmatprep.mubr.f32.mxu0 0.0
        %1187 = vmatmul.mubr.f32.gmra.mrb[0].mxu0 %v1092
        %v1188 = vpop.f32.mrb[0].mxu0
        %v1189 = vadd.f32 0.0, %v1188
        %v1190 = vpop.f32.mrb[0].mxu0
        %1191 = vmatprep.mubr.f32.mxu0 0.0
        %1192 = vmatmul.mubr.f32.gmra.mrb[0].mxu0 %v1093
        %v1193 = vpop.f32.mrb[0].mxu0
        %v1194 = vadd.f32 0.0, %v1193
        %v1195 = vpop.f32.mrb[0].mxu0
        %1196 = vmatprep.mubr.f32.mxu0 0.0
        %1197 = vmatmul.mubr.f32.gmra.mrb[0].mxu0 %v1094
        %v1198 = vpop.f32.mrb[0].mxu0
        %v1199 = vadd.f32 0.0, %v1198
        %v1200 = vpop.f32.mrb[0].mxu0
        %1201 = vmatprep.mubr.f32.mxu0 0.0
        %1202 = vmatmul.mubr.f32.gmra.mrb[0].mxu0 %v1095
        %v1203 = vpop.f32.mrb[0].mxu0
        %v1204 = vadd.f32 0.0, %v1203
        %v1205 = vpop.f32.mrb[0].mxu0
        %1206 = vmatprep.mubr.f32.mxu0 0.0
        %1207 = vmatmul.mubr.f32.gmra.mrb[0].mxu0 %v1096
        %v1208 = vpop.f32.mrb[0].mxu0
        %v1209 = vadd.f32 0.0, %v1208
        %v1210 = vpop.f32.mrb[0].mxu0
        %1211 = vmatprep.mubr.f32.mxu0 0.0
        %1212 = vmatmul.mubr.f32.gmra.mrb[0].mxu0 %v1097
        %v1213 = vpop.f32.mrb[0].mxu0
        %v1214 = vadd.f32 0.0, %v1213
        %v1215 = vpop.f32.mrb[0].mxu0
        %1216 = vmatprep.mubr.f32.mxu0 0.0
        %1217 = vmatmul.mubr.f32.gmra.mrb[0].mxu0 %v1098
        %v1218 = vpop.f32.mrb[0].mxu0
        %v1219 = vadd.f32 0.0, %v1218
        %v1220 = vpop.f32.mrb[0].mxu0
        %1221 = vmatprep.mubr.f32.mxu0 0.0
        %1222 = vmatmul.mubr.f32.gmra.mrb[0].mxu0 %v1099
        %v1223 = vpop.f32.mrb[0].mxu0
        %v1224 = vadd.f32 0.0, %v1223
        %v1225 = vpop.f32.mrb[0].mxu0
        %1226 = vmatprep.mubr.f32.mxu0 0.0
        %1227 = vmatmul.mubr.f32.gmra.mrb[0].mxu0 %v1100
        %v1228 = vpop.f32.mrb[0].mxu0
        %v1229 = vadd.f32 0.0, %v1228
        %v1230 = vpop.f32.mrb[0].mxu0
        %1231 = vdwg.mxu0
        %v1232 = vadd.f32 %v1081, %v1184
        %v1233 = vadd.f32 %v1082, %v1189
        %v1234 = vadd.f32 %v1083, %v1194
        %v1235 = vadd.f32 %v1084, %v1199
        %v1236 = vadd.f32 %v1085, %v1204
        %v1237 = vadd.f32 %v1086, %v1209
        %v1238 = vadd.f32 %v1087, %v1214
        %v1239 = vadd.f32 %v1088, %v1219
        %v1240 = vadd.f32 %v1089, %v1224
        %v1241 = vadd.f32 %v1090, %v1229
        %v1242 = vld [vmem:[%s595] sm:$0xff]
        %v1243 = vld [vmem:[%s595 + $0x10] sm:$0xff]
        %v1244 = vld [vmem:[%s595 + $0x20] sm:$0xff]
        %v1245 = vld [vmem:[%s595 + $0x30] sm:$0xff]
        %v1246 = vld [vmem:[%s595 + $0x40] sm:$0xff]
        %v1247 = vld [vmem:[%s595 + $0x50] sm:$0xff]
        %v1248 = vld [vmem:[%s595 + $0x60] sm:$0xff]
        %v1249 = vld [vmem:[%s595 + $0x70] sm:$0xff]
        %v1250 = vld [vmem:[%s595 + $0x80] sm:$0xff]
        %v1251 = vld [vmem:[%s595 + $0x90] sm:$0xff]
        %v1252 = vld [vmem:[#allocation10 + $0x200] sm:$0xff]
        %v1253 = vld [vmem:[#allocation10 + $0x208] sm:$0xff]
        %v1254 = vld [vmem:[#allocation10 + $0x210] sm:$0xff]
        %v1255 = vld [vmem:[#allocation10 + $0x218] sm:$0xff]
        %v1256 = vld [vmem:[#allocation10 + $0x220] sm:$0xff]
        %v1257 = vld [vmem:[#allocation10 + $0x228] sm:$0xff]
        %v1258 = vld [vmem:[#allocation10 + $0x230] sm:$0xff]
        %v1259 = vld [vmem:[#allocation10 + $0x238] sm:$0xff]
        %v1260 = vld [vmem:[#allocation10 + $0x240] sm:$0xff]
        %v1261 = vld [vmem:[#allocation10 + $0x248] sm:$0xff]
        %v1262 = vld [vmem:[#allocation10 + $0x250] sm:$0xff]
        %v1263 = vld [vmem:[#allocation10 + $0x258] sm:$0xff]
        %v1264 = vld [vmem:[#allocation10 + $0x260] sm:$0xff]
        %v1265 = vld [vmem:[#allocation10 + $0x268] sm:$0xff]
        %v1266 = vld [vmem:[#allocation10 + $0x270] sm:$0xff]
        %v1267 = vld [vmem:[#allocation10 + $0x278] sm:$0xff]
        %1268 = vmatprep.subr.mxu0 0.0
        %1269 = vmatpush1.msra.mxu0 %v1252
        %1270 = vmatprep.subr.mxu0 0.0
        %1271 = vmatpush1.msra.mxu0 %v1253
        %1272 = vmatprep.subr.mxu0 0.0
        %1273 = vmatpush1.msra.mxu0 %v1254
        %1274 = vmatprep.subr.mxu0 0.0
        %1275 = vmatpush1.msra.mxu0 %v1255
        %1276 = vmatprep.subr.mxu0 0.0
        %1277 = vmatpush1.msra.mxu0 %v1256
        %1278 = vmatprep.subr.mxu0 0.0
        %1279 = vmatpush1.msra.mxu0 %v1257
        %1280 = vmatprep.subr.mxu0 0.0
        %1281 = vmatpush1.msra.mxu0 %v1258
        %1282 = vmatprep.subr.mxu0 0.0
        %1283 = vmatpush1.msra.mxu0 %v1259
        %1284 = vmatprep.subr.mxu0 0.0
        %1285 = vmatpush1.msra.mxu0 %v1260
        %1286 = vmatprep.subr.mxu0 0.0
        %1287 = vmatpush1.msra.mxu0 %v1261
        %1288 = vmatprep.subr.mxu0 0.0
        %1289 = vmatpush1.msra.mxu0 %v1262
        %1290 = vmatprep.subr.mxu0 0.0
        %1291 = vmatpush1.msra.mxu0 %v1263
        %1292 = vmatprep.subr.mxu0 0.0
        %1293 = vmatpush1.msra.mxu0 %v1264
        %1294 = vmatprep.subr.mxu0 0.0
        %1295 = vmatpush1.msra.mxu0 %v1265
        %1296 = vmatprep.subr.mxu0 0.0
        %1297 = vmatpush1.msra.mxu0 %v1266
        %1298 = vmatprep.subr.mxu0 0.0
        %1299 = vmatpush1.msra.mxu0 %v1267
        %1300 = vmatprep.subr.mxu0 0.0
        %1301 = vmatpush1.msra.mxu0 0.0
        %1302 = vmatprep.subr.mxu0 0.0
        %1303 = vmatpush1.msra.mxu0 0.0
        %1304 = vmatprep.subr.mxu0 0.0
        %1305 = vmatpush1.msra.mxu0 0.0
        %1306 = vmatprep.subr.mxu0 0.0
        %1307 = vmatpush1.msra.mxu0 0.0
        %1308 = vmatprep.subr.mxu0 0.0
        %1309 = vmatpush1.msra.mxu0 0.0
        %1310 = vmatprep.subr.mxu0 0.0
        %1311 = vmatpush1.msra.mxu0 0.0
        %1312 = vmatprep.subr.mxu0 0.0
        %1313 = vmatpush1.msra.mxu0 0.0
        %1314 = vmatprep.subr.mxu0 0.0
        %1315 = vmatpush1.msra.mxu0 0.0
        %1316 = vmatprep.subr.mxu0 0.0
        %1317 = vmatpush1.msra.mxu0 0.0
        %1318 = vmatprep.subr.mxu0 0.0
        %1319 = vmatpush1.msra.mxu0 0.0
        %1320 = vmatprep.subr.mxu0 0.0
        %1321 = vmatpush1.msra.mxu0 0.0
        %1322 = vmatprep.subr.mxu0 0.0
        %1323 = vmatpush1.msra.mxu0 0.0
        %1324 = vmatprep.subr.mxu0 0.0
        %1325 = vmatpush1.msra.mxu0 0.0
        %1326 = vmatprep.subr.mxu0 0.0
        %1327 = vmatpush1.msra.mxu0 0.0
        %1328 = vmatprep.subr.mxu0 0.0
        %1329 = vmatpush1.msra.mxu0 0.0
        %1330 = vmatprep.subr.mxu0 0.0
        %1331 = vmatpush1.msra.mxu0 0.0
        %1332 = vmatprep.mubr.f32.mxu0 0.0
        %1333 = vmatmul.mubr.f32.gmra.mrb[0].mxu0 %v1242
        %v1334 = vpop.f32.mrb[0].mxu0
        %v1335 = vadd.f32 0.0, %v1334
        %v1336 = vpop.f32.mrb[0].mxu0
        %1337 = vmatprep.mubr.f32.mxu0 0.0
        %1338 = vmatmul.mubr.f32.gmra.mrb[0].mxu0 %v1243
        %v1339 = vpop.f32.mrb[0].mxu0
        %v1340 = vadd.f32 0.0, %v1339
        %v1341 = vpop.f32.mrb[0].mxu0
        %1342 = vmatprep.mubr.f32.mxu0 0.0
        %1343 = vmatmul.mubr.f32.gmra.mrb[0].mxu0 %v1244
        %v1344 = vpop.f32.mrb[0].mxu0
        %v1345 = vadd.f32 0.0, %v1344
        %v1346 = vpop.f32.mrb[0].mxu0
        %1347 = vmatprep.mubr.f32.mxu0 0.0
        %1348 = vmatmul.mubr.f32.gmra.mrb[0].mxu0 %v1245
        %v1349 = vpop.f32.mrb[0].mxu0
        %v1350 = vadd.f32 0.0, %v1349
        %v1351 = vpop.f32.mrb[0].mxu0
        %1352 = vmatprep.mubr.f32.mxu0 0.0
        %1353 = vmatmul.mubr.f32.gmra.mrb[0].mxu0 %v1246
        %v1354 = vpop.f32.mrb[0].mxu0
        %v1355 = vadd.f32 0.0, %v1354
        %v1356 = vpop.f32.mrb[0].mxu0
        %1357 = vmatprep.mubr.f32.mxu0 0.0
        %1358 = vmatmul.mubr.f32.gmra.mrb[0].mxu0 %v1247
        %v1359 = vpop.f32.mrb[0].mxu0
        %v1360 = vadd.f32 0.0, %v1359
        %v1361 = vpop.f32.mrb[0].mxu0
        %1362 = vmatprep.mubr.f32.mxu0 0.0
        %1363 = vmatmul.mubr.f32.gmra.mrb[0].mxu0 %v1248
        %v1364 = vpop.f32.mrb[0].mxu0
        %v1365 = vadd.f32 0.0, %v1364
        %v1366 = vpop.f32.mrb[0].mxu0
        %1367 = vmatprep.mubr.f32.mxu0 0.0
        %1368 = vmatmul.mubr.f32.gmra.mrb[0].mxu0 %v1249
        %v1369 = vpop.f32.mrb[0].mxu0
        %v1370 = vadd.f32 0.0, %v1369
        %v1371 = vpop.f32.mrb[0].mxu0
        %1372 = vmatprep.mubr.f32.mxu0 0.0
        %1373 = vmatmul.mubr.f32.gmra.mrb[0].mxu0 %v1250
        %v1374 = vpop.f32.mrb[0].mxu0
        %v1375 = vadd.f32 0.0, %v1374
        %v1376 = vpop.f32.mrb[0].mxu0
        %1377 = vmatprep.mubr.f32.mxu0 0.0
        %1378 = vmatmul.mubr.f32.gmra.mrb[0].mxu0 %v1251
        %v1379 = vpop.f32.mrb[0].mxu0
        %v1380 = vadd.f32 0.0, %v1379
        %v1381 = vpop.f32.mrb[0].mxu0
        %1382 = vdwg.mxu0
        %v1383 = vadd.f32 %v1232, %v1335
        %v1384 = vadd.f32 %v1233, %v1340
        %v1385 = vadd.f32 %v1234, %v1345
        %v1386 = vadd.f32 %v1235, %v1350
        %v1387 = vadd.f32 %v1236, %v1355
        %v1388 = vadd.f32 %v1237, %v1360
        %v1389 = vadd.f32 %v1238, %v1365
        %v1390 = vadd.f32 %v1239, %v1370
        %v1391 = vadd.f32 %v1240, %v1375
        %v1392 = vadd.f32 %v1241, %v1380
        %v1393 = vld [vmem:[%s595 + $0x1] sm:$0xff]
        %v1394 = vld [vmem:[%s595 + $0x11] sm:$0xff]
        %v1395 = vld [vmem:[%s595 + $0x21] sm:$0xff]
        %v1396 = vld [vmem:[%s595 + $0x31] sm:$0xff]
        %v1397 = vld [vmem:[%s595 + $0x41] sm:$0xff]
        %v1398 = vld [vmem:[%s595 + $0x51] sm:$0xff]
        %v1399 = vld [vmem:[%s595 + $0x61] sm:$0xff]
        %v1400 = vld [vmem:[%s595 + $0x71] sm:$0xff]
        %v1401 = vld [vmem:[%s595 + $0x81] sm:$0xff]
        %v1402 = vld [vmem:[%s595 + $0x91] sm:$0xff]
        %v1403 = vld [vmem:[#allocation10 + $0x280] sm:$0xff]
        %v1404 = vld [vmem:[#allocation10 + $0x288] sm:$0xff]
        %v1405 = vld [vmem:[#allocation10 + $0x290] sm:$0xff]
        %v1406 = vld [vmem:[#allocation10 + $0x298] sm:$0xff]
        %v1407 = vld [vmem:[#allocation10 + $0x2a0] sm:$0xff]
        %v1408 = vld [vmem:[#allocation10 + $0x2a8] sm:$0xff]
        %v1409 = vld [vmem:[#allocation10 + $0x2b0] sm:$0xff]
        %v1410 = vld [vmem:[#allocation10 + $0x2b8] sm:$0xff]
        %v1411 = vld [vmem:[#allocation10 + $0x2c0] sm:$0xff]
        %v1412 = vld [vmem:[#allocation10 + $0x2c8] sm:$0xff]
        %v1413 = vld [vmem:[#allocation10 + $0x2d0] sm:$0xff]
        %v1414 = vld [vmem:[#allocation10 + $0x2d8] sm:$0xff]
        %v1415 = vld [vmem:[#allocation10 + $0x2e0] sm:$0xff]
        %v1416 = vld [vmem:[#allocation10 + $0x2e8] sm:$0xff]
        %v1417 = vld [vmem:[#allocation10 + $0x2f0] sm:$0xff]
        %v1418 = vld [vmem:[#allocation10 + $0x2f8] sm:$0xff]
        %1419 = vmatprep.subr.mxu0 0.0
        %1420 = vmatpush1.msra.mxu0 %v1403
        %1421 = vmatprep.subr.mxu0 0.0
        %1422 = vmatpush1.msra.mxu0 %v1404
        %1423 = vmatprep.subr.mxu0 0.0
        %1424 = vmatpush1.msra.mxu0 %v1405
        %1425 = vmatprep.subr.mxu0 0.0
        %1426 = vmatpush1.msra.mxu0 %v1406
        %1427 = vmatprep.subr.mxu0 0.0
        %1428 = vmatpush1.msra.mxu0 %v1407
        %1429 = vmatprep.subr.mxu0 0.0
        %1430 = vmatpush1.msra.mxu0 %v1408
        %1431 = vmatprep.subr.mxu0 0.0
        %1432 = vmatpush1.msra.mxu0 %v1409
        %1433 = vmatprep.subr.mxu0 0.0
        %1434 = vmatpush1.msra.mxu0 %v1410
        %1435 = vmatprep.subr.mxu0 0.0
        %1436 = vmatpush1.msra.mxu0 %v1411
        %1437 = vmatprep.subr.mxu0 0.0
        %1438 = vmatpush1.msra.mxu0 %v1412
        %1439 = vmatprep.subr.mxu0 0.0
        %1440 = vmatpush1.msra.mxu0 %v1413
        %1441 = vmatprep.subr.mxu0 0.0
        %1442 = vmatpush1.msra.mxu0 %v1414
        %1443 = vmatprep.subr.mxu0 0.0
        %1444 = vmatpush1.msra.mxu0 %v1415
        %1445 = vmatprep.subr.mxu0 0.0
        %1446 = vmatpush1.msra.mxu0 %v1416
        %1447 = vmatprep.subr.mxu0 0.0
        %1448 = vmatpush1.msra.mxu0 %v1417
        %1449 = vmatprep.subr.mxu0 0.0
        %1450 = vmatpush1.msra.mxu0 %v1418
        %1451 = vmatprep.subr.mxu0 0.0
        %1452 = vmatpush1.msra.mxu0 0.0
        %1453 = vmatprep.subr.mxu0 0.0
        %1454 = vmatpush1.msra.mxu0 0.0
        %1455 = vmatprep.subr.mxu0 0.0
        %1456 = vmatpush1.msra.mxu0 0.0
        %1457 = vmatprep.subr.mxu0 0.0
        %1458 = vmatpush1.msra.mxu0 0.0
        %1459 = vmatprep.subr.mxu0 0.0
        %1460 = vmatpush1.msra.mxu0 0.0
        %1461 = vmatprep.subr.mxu0 0.0
        %1462 = vmatpush1.msra.mxu0 0.0
        %1463 = vmatprep.subr.mxu0 0.0
        %1464 = vmatpush1.msra.mxu0 0.0
        %1465 = vmatprep.subr.mxu0 0.0
        %1466 = vmatpush1.msra.mxu0 0.0
        %1467 = vmatprep.subr.mxu0 0.0
        %1468 = vmatpush1.msra.mxu0 0.0
        %1469 = vmatprep.subr.mxu0 0.0
        %1470 = vmatpush1.msra.mxu0 0.0
        %1471 = vmatprep.subr.mxu0 0.0
        %1472 = vmatpush1.msra.mxu0 0.0
        %1473 = vmatprep.subr.mxu0 0.0
        %1474 = vmatpush1.msra.mxu0 0.0
        %1475 = vmatprep.subr.mxu0 0.0
        %1476 = vmatpush1.msra.mxu0 0.0
        %1477 = vmatprep.subr.mxu0 0.0
        %1478 = vmatpush1.msra.mxu0 0.0
        %1479 = vmatprep.subr.mxu0 0.0
        %1480 = vmatpush1.msra.mxu0 0.0
        %1481 = vmatprep.subr.mxu0 0.0
        %1482 = vmatpush1.msra.mxu0 0.0
        %1483 = vmatprep.mubr.f32.mxu0 0.0
        %1484 = vmatmul.mubr.f32.gmra.mrb[0].mxu0 %v1393
        %v1485 = vpop.f32.mrb[0].mxu0
        %v1486 = vadd.f32 0.0, %v1485
        %v1487 = vpop.f32.mrb[0].mxu0
        %1488 = vmatprep.mubr.f32.mxu0 0.0
        %1489 = vmatmul.mubr.f32.gmra.mrb[0].mxu0 %v1394
        %v1490 = vpop.f32.mrb[0].mxu0
        %v1491 = vadd.f32 0.0, %v1490
        %v1492 = vpop.f32.mrb[0].mxu0
        %1493 = vmatprep.mubr.f32.mxu0 0.0
        %1494 = vmatmul.mubr.f32.gmra.mrb[0].mxu0 %v1395
        %v1495 = vpop.f32.mrb[0].mxu0
        %v1496 = vadd.f32 0.0, %v1495
        %v1497 = vpop.f32.mrb[0].mxu0
        %1498 = vmatprep.mubr.f32.mxu0 0.0
        %1499 = vmatmul.mubr.f32.gmra.mrb[0].mxu0 %v1396
        %v1500 = vpop.f32.mrb[0].mxu0
        %v1501 = vadd.f32 0.0, %v1500
        %v1502 = vpop.f32.mrb[0].mxu0
        %1503 = vmatprep.mubr.f32.mxu0 0.0
        %1504 = vmatmul.mubr.f32.gmra.mrb[0].mxu0 %v1397
        %v1505 = vpop.f32.mrb[0].mxu0
        %v1506 = vadd.f32 0.0, %v1505
        %v1507 = vpop.f32.mrb[0].mxu0
        %1508 = vmatprep.mubr.f32.mxu0 0.0
        %1509 = vmatmul.mubr.f32.gmra.mrb[0].mxu0 %v1398
        %v1510 = vpop.f32.mrb[0].mxu0
        %v1511 = vadd.f32 0.0, %v1510
        %v1512 = vpop.f32.mrb[0].mxu0
        %1513 = vmatprep.mubr.f32.mxu0 0.0
        %1514 = vmatmul.mubr.f32.gmra.mrb[0].mxu0 %v1399
        %v1515 = vpop.f32.mrb[0].mxu0
        %v1516 = vadd.f32 0.0, %v1515
        %v1517 = vpop.f32.mrb[0].mxu0
        %1518 = vmatprep.mubr.f32.mxu0 0.0
        %1519 = vmatmul.mubr.f32.gmra.mrb[0].mxu0 %v1400
        %v1520 = vpop.f32.mrb[0].mxu0
        %v1521 = vadd.f32 0.0, %v1520
        %v1522 = vpop.f32.mrb[0].mxu0
        %1523 = vmatprep.mubr.f32.mxu0 0.0
        %1524 = vmatmul.mubr.f32.gmra.mrb[0].mxu0 %v1401
        %v1525 = vpop.f32.mrb[0].mxu0
        %v1526 = vadd.f32 0.0, %v1525
        %v1527 = vpop.f32.mrb[0].mxu0
        %1528 = vmatprep.mubr.f32.mxu0 0.0
        %1529 = vmatmul.mubr.f32.gmra.mrb[0].mxu0 %v1402
        %v1530 = vpop.f32.mrb[0].mxu0
        %v1531 = vadd.f32 0.0, %v1530
        %v1532 = vpop.f32.mrb[0].mxu0
        %1533 = vdwg.mxu0
        %v1534 = vadd.f32 %v1383, %v1486
        %v1535 = vadd.f32 %v1384, %v1491
        %v1536 = vadd.f32 %v1385, %v1496
        %v1537 = vadd.f32 %v1386, %v1501
        %v1538 = vadd.f32 %v1387, %v1506
        %v1539 = vadd.f32 %v1388, %v1511
        %v1540 = vadd.f32 %v1389, %v1516
        %v1541 = vadd.f32 %v1390, %v1521
        %v1542 = vadd.f32 %v1391, %v1526
        %v1543 = vadd.f32 %v1392, %v1531
        %v1544 = vld [vmem:[%s4] sm:$0x1]
        %v1546 = vlaneseq
        %v1547 = vshrl.u32 %v1546, 7
        %v1548 = vsub.s32 0, %v1547
        %v1549 = vrot.slane %v1544, %v1548
        %v1551 = vadd.f32 %v1534, %v1549
        %v1552 = vadd.f32 %v1535, %v1549
        %v1553 = vadd.f32 %v1536, %v1549
        %v1554 = vadd.f32 %v1537, %v1549
        %v1555 = vadd.f32 %v1538, %v1549
        %v1556 = vadd.f32 %v1539, %v1549
        %v1557 = vadd.f32 %v1540, %v1549
        %v1558 = vadd.f32 %v1541, %v1549
        %v1559 = vadd.f32 %v1542, %v1549
        %v1560 = vadd.f32 %v1543, %v1549
        %v1561 = vmax.f32 %v1551, 0.0
        %v1562 = vmax.f32 %v1552, 0.0
        %v1563 = vmax.f32 %v1553, 0.0
        %v1564 = vmax.f32 %v1554, 0.0
        %v1565 = vmax.f32 %v1555, 0.0
        %v1566 = vmax.f32 %v1556, 0.0
        %v1567 = vmax.f32 %v1557, 0.0
        %v1568 = vmax.f32 %v1558, 0.0
        %v1569 = vmax.f32 %v1559, 0.0
        %v1570 = vmax.f32 %v1560, 0.0
        %v1581 = vrot.slane %v1561, 7
        %v1582 = vrot.slane %v1562, 7
        %v1583 = vrot.slane %v1563, 7
        %v1584 = vrot.slane %v1564, 7
        %v1585 = vrot.slane %v1565, 7
        %v1586 = vrot.slane %v1566, 7
        %v1587 = vrot.slane %v1567, 7
        %v1588 = vrot.slane %v1568, 7
        %v1589 = vrot.slane %v1569, 7
        %v1590 = vrot.slane %v1570, 7
        %1591 = vrot.lane.b32.xlu0 %v1581, 64
        %v1592 = vpop.permute.xlu0 %1591
        %1593 = vrot.lane.b32.xlu0 %v1582, 64
        %v1594 = vpop.permute.xlu0 %1593
        %1595 = vrot.lane.b32.xlu0 %v1583, 64
        %v1596 = vpop.permute.xlu0 %1595
        %1597 = vrot.lane.b32.xlu0 %v1584, 64
        %v1598 = vpop.permute.xlu0 %1597
        %1599 = vrot.lane.b32.xlu0 %v1585, 64
        %v1600 = vpop.permute.xlu0 %1599
        %1601 = vrot.lane.b32.xlu0 %v1586, 64
        %v1602 = vpop.permute.xlu0 %1601
        %1603 = vrot.lane.b32.xlu0 %v1587, 64
        %v1604 = vpop.permute.xlu0 %1603
        %1605 = vrot.lane.b32.xlu0 %v1588, 64
        %v1606 = vpop.permute.xlu0 %1605
        %1607 = vrot.lane.b32.xlu0 %v1589, 64
        %v1608 = vpop.permute.xlu0 %1607
        %1609 = vrot.lane.b32.xlu0 %v1590, 64
        %v1610 = vpop.permute.xlu0 %1609
        %v1621 = vsel %vm477, 0.0, %v1592
        %v1622 = vsel %vm477, 0.0, %v1594
        %v1623 = vsel %vm477, 0.0, %v1596
        %v1624 = vsel %vm477, 0.0, %v1598
        %v1625 = vsel %vm477, 0.0, %v1600
        %v1626 = vsel %vm477, 0.0, %v1602
        %v1627 = vsel %vm477, 0.0, %v1604
        %v1628 = vsel %vm477, 0.0, %v1606
        %v1629 = vsel %vm477, 0.0, %v1608
        %v1630 = vsel %vm477, 0.0, %v1610
        %1631 = vrot.lane.b32.xlu0 %v1561, 64
        %v1632 = vpop.permute.xlu0 %1631
        %1633 = vrot.lane.b32.xlu0 %v1562, 64
        %v1634 = vpop.permute.xlu0 %1633
        %1635 = vrot.lane.b32.xlu0 %v1563, 64
        %v1636 = vpop.permute.xlu0 %1635
        %1637 = vrot.lane.b32.xlu0 %v1564, 64
        %v1638 = vpop.permute.xlu0 %1637
        %1639 = vrot.lane.b32.xlu0 %v1565, 64
        %v1640 = vpop.permute.xlu0 %1639
        %1641 = vrot.lane.b32.xlu0 %v1566, 64
        %v1642 = vpop.permute.xlu0 %1641
        %1643 = vrot.lane.b32.xlu0 %v1567, 64
        %v1644 = vpop.permute.xlu0 %1643
        %1645 = vrot.lane.b32.xlu0 %v1568, 64
        %v1646 = vpop.permute.xlu0 %1645
        %1647 = vrot.lane.b32.xlu0 %v1569, 64
        %v1648 = vpop.permute.xlu0 %1647
        %1649 = vrot.lane.b32.xlu0 %v1570, 64
        %v1650 = vpop.permute.xlu0 %1649
        %v1661 = vsel %vm490, %v1621, %v1632
        %v1662 = vsel %vm490, %v1592, %v484
        %v1663 = vsel %vm490, %v1622, %v1634
        %v1664 = vsel %vm490, %v1594, %v484
        %v1665 = vsel %vm490, %v1623, %v1636
        %v1666 = vsel %vm490, %v1596, %v484
        %v1667 = vsel %vm490, %v1624, %v1638
        %v1668 = vsel %vm490, %v1598, %v484
        %v1669 = vsel %vm490, %v1625, %v1640
        %v1670 = vsel %vm490, %v1600, %v484
        %v1671 = vsel %vm490, %v1626, %v1642
        %v1672 = vsel %vm490, %v1602, %v484
        %v1673 = vsel %vm490, %v1627, %v1644
        %v1674 = vsel %vm490, %v1604, %v484
        %v1675 = vsel %vm490, %v1628, %v1646
        %v1676 = vsel %vm490, %v1606, %v484
        %v1677 = vsel %vm490, %v1629, %v1648
        %v1678 = vsel %vm490, %v1608, %v484
        %v1679 = vsel %vm490, %v1630, %v1650
        %v1680 = vsel %vm490, %v1610, %v484
        %1681 = vst [vmem:[#allocation3] sm:$0xff] %v1661
        %1682 = vst [vmem:[#allocation3 + $0x8] sm:$0x1] %v1662
        %1683 = vst [vmem:[#allocation3 + $0x10] sm:$0xff] %v1663
        %1684 = vst [vmem:[#allocation3 + $0x18] sm:$0x1] %v1664
        %1685 = vst [vmem:[#allocation3 + $0x20] sm:$0xff] %v1665
        %1686 = vst [vmem:[#allocation3 + $0x28] sm:$0x1] %v1666
        %1687 = vst [vmem:[#allocation3 + $0x30] sm:$0xff] %v1667
        %1688 = vst [vmem:[#allocation3 + $0x38] sm:$0x1] %v1668
        %1689 = vst [vmem:[#allocation3 + $0x40] sm:$0xff] %v1669
        %1690 = vst [vmem:[#allocation3 + $0x48] sm:$0x1] %v1670
        %1691 = vst [vmem:[#allocation3 + $0x50] sm:$0xff] %v1671
        %1692 = vst [vmem:[#allocation3 + $0x58] sm:$0x1] %v1672
        %1693 = vst [vmem:[#allocation3 + $0x60] sm:$0xff] %v1673
        %1694 = vst [vmem:[#allocation3 + $0x68] sm:$0x1] %v1674
        %1695 = vst [vmem:[#allocation3 + $0x70] sm:$0xff] %v1675
        %1696 = vst [vmem:[#allocation3 + $0x78] sm:$0x1] %v1676
        %1697 = vst [vmem:[#allocation3 + $0x80] sm:$0xff] %v1677
        %1698 = vst [vmem:[#allocation3 + $0x88] sm:$0x1] %v1678
        %1699 = vst [vmem:[#allocation3 + $0x90] sm:$0xff] %v1679
        %1700 = vst [vmem:[#allocation3 + $0x98] sm:$0x1] %v1680
        // Predicated region
        $region77: #{tpu_custom_call.1} parent=47 // pred_check
          %p1701 = pneg %p641
        $region78: #{tpu_custom_call.1} parent=47 // pred_check_branch
          %1703 = sbr.rel (%p1701) target = $region80
        $region79: #{tpu_custom_call.1} parent=47 // pred_region
          %1704 = vst [vmem:[#allocation3] sm:$0xff] 0.0
          %1705 = vst [vmem:[#allocation3 + $0x8] sm:$0x1] 0.0
        $region80: #{tpu_custom_call.1} parent=47 // pred_fallthru
          _
        // Predicated region
        $region81: #{tpu_custom_call.1} parent=47 // pred_check
          %p1706 = pneg %p649
        $region82: #{tpu_custom_call.1} parent=47 // pred_check_branch
          %1708 = sbr.rel (%p1706) target = $region84
        $region83: #{tpu_custom_call.1} parent=47 // pred_region
          %s1709 = scalar_lea.vmem [#allocation3], 144
          %1710 = vst [vmem:[%s1709] sm:$0xff] 0.0
          %1711 = vst [vmem:[%s1709 + $0x8] sm:$0x1] 0.0
        $region84: #{tpu_custom_call.1} parent=47 // pred_fallthru
          _
        %v1712 = vld [vmem:[#allocation3] sm:$0xff]
        %v1713 = vld [vmem:[#allocation3 + $0x10] sm:$0xff]
        %v1714 = vld [vmem:[#allocation3 + $0x20] sm:$0xff]
        %v1715 = vld [vmem:[#allocation3 + $0x30] sm:$0xff]
        %v1716 = vld [vmem:[#allocation3 + $0x40] sm:$0xff]
        %v1717 = vld [vmem:[#allocation3 + $0x50] sm:$0xff]
        %v1718 = vld [vmem:[#allocation3 + $0x60] sm:$0xff]
        %v1719 = vld [vmem:[#allocation3 + $0x70] sm:$0xff]
        %v1720 = vld [vmem:[#allocation12] sm:$0xff]
        %v1721 = vld [vmem:[#allocation12 + $0x8] sm:$0xff]
        %v1722 = vld [vmem:[#allocation12 + $0x10] sm:$0xff]
        %v1723 = vld [vmem:[#allocation12 + $0x18] sm:$0xff]
        %v1724 = vld [vmem:[#allocation12 + $0x20] sm:$0xff]
        %v1725 = vld [vmem:[#allocation12 + $0x28] sm:$0xff]
        %v1726 = vld [vmem:[#allocation12 + $0x30] sm:$0xff]
        %v1727 = vld [vmem:[#allocation12 + $0x38] sm:$0xff]
        %v1728 = vld [vmem:[#allocation12 + $0x40] sm:$0xff]
        %v1729 = vld [vmem:[#allocation12 + $0x48] sm:$0xff]
        %v1730 = vld [vmem:[#allocation12 + $0x50] sm:$0xff]
        %v1731 = vld [vmem:[#allocation12 + $0x58] sm:$0xff]
        %v1732 = vld [vmem:[#allocation12 + $0x60] sm:$0xff]
        %v1733 = vld [vmem:[#allocation12 + $0x68] sm:$0xff]
        %v1734 = vld [vmem:[#allocation12 + $0x70] sm:$0xff]
        %v1735 = vld [vmem:[#allocation12 + $0x78] sm:$0xff]
        %v1736 = vld [vmem:[#allocation3 + $0x1] sm:$0xff]
        %v1737 = vld [vmem:[#allocation3 + $0x11] sm:$0xff]
        %v1738 = vld [vmem:[#allocation3 + $0x21] sm:$0xff]
        %v1739 = vld [vmem:[#allocation3 + $0x31] sm:$0xff]
        %v1740 = vld [vmem:[#allocation3 + $0x41] sm:$0xff]
        %v1741 = vld [vmem:[#allocation3 + $0x51] sm:$0xff]
        %v1742 = vld [vmem:[#allocation3 + $0x61] sm:$0xff]
        %v1743 = vld [vmem:[#allocation3 + $0x71] sm:$0xff]
        %v1744 = vld [vmem:[#allocation12 + $0x80] sm:$0xff]
        %v1745 = vld [vmem:[#allocation12 + $0x88] sm:$0xff]
        %v1746 = vld [vmem:[#allocation12 + $0x90] sm:$0xff]
        %v1747 = vld [vmem:[#allocation12 + $0x98] sm:$0xff]
        %v1748 = vld [vmem:[#allocation12 + $0xa0] sm:$0xff]
        %v1749 = vld [vmem:[#allocation12 + $0xa8] sm:$0xff]
        %v1750 = vld [vmem:[#allocation12 + $0xb0] sm:$0xff]
        %v1751 = vld [vmem:[#allocation12 + $0xb8] sm:$0xff]
        %v1752 = vld [vmem:[#allocation12 + $0xc0] sm:$0xff]
        %v1753 = vld [vmem:[#allocation12 + $0xc8] sm:$0xff]
        %v1754 = vld [vmem:[#allocation12 + $0xd0] sm:$0xff]
        %v1755 = vld [vmem:[#allocation12 + $0xd8] sm:$0xff]
        %v1756 = vld [vmem:[#allocation12 + $0xe0] sm:$0xff]
        %v1757 = vld [vmem:[#allocation12 + $0xe8] sm:$0xff]
        %v1758 = vld [vmem:[#allocation12 + $0xf0] sm:$0xff]
        %v1759 = vld [vmem:[#allocation12 + $0xf8] sm:$0xff]
        %1760 = vmatprep.subr.mxu0 0.0
        %1761 = vmatpush1.msra.mxu0 %v1744
        %1762 = vmatprep.subr.mxu0 0.0
        %1763 = vmatpush1.msra.mxu0 %v1745
        %1764 = vmatprep.subr.mxu0 0.0
        %1765 = vmatpush1.msra.mxu0 %v1746
        %1766 = vmatprep.subr.mxu0 0.0
        %1767 = vmatpush1.msra.mxu0 %v1747
        %1768 = vmatprep.subr.mxu0 0.0
        %1769 = vmatpush1.msra.mxu0 %v1748
        %1770 = vmatprep.subr.mxu0 0.0
        %1771 = vmatpush1.msra.mxu0 %v1749
        %1772 = vmatprep.subr.mxu0 0.0
        %1773 = vmatpush1.msra.mxu0 %v1750
        %1774 = vmatprep.subr.mxu0 0.0
        %1775 = vmatpush1.msra.mxu0 %v1751
        %1776 = vmatprep.subr.mxu0 0.0
        %1777 = vmatpush1.msra.mxu0 %v1752
        %1778 = vmatprep.subr.mxu0 0.0
        %1779 = vmatpush1.msra.mxu0 %v1753
        %1780 = vmatprep.subr.mxu0 0.0
        %1781 = vmatpush1.msra.mxu0 %v1754
        %1782 = vmatprep.subr.mxu0 0.0
        %1783 = vmatpush1.msra.mxu0 %v1755
        %1784 = vmatprep.subr.mxu0 0.0
        %1785 = vmatpush1.msra.mxu0 %v1756
        %1786 = vmatprep.subr.mxu0 0.0
        %1787 = vmatpush1.msra.mxu0 %v1757
        %1788 = vmatprep.subr.mxu0 0.0
        %1789 = vmatpush1.msra.mxu0 %v1758
        %1790 = vmatprep.subr.mxu0 0.0
        %1791 = vmatpush1.msra.mxu0 %v1759
        %1792 = vmatprep.subr.mxu0 0.0
        %1793 = vmatpush1.msra.mxu0 0.0
        %1794 = vmatprep.subr.mxu0 0.0
        %1795 = vmatpush1.msra.mxu0 0.0
        %1796 = vmatprep.subr.mxu0 0.0
        %1797 = vmatpush1.msra.mxu0 0.0
        %1798 = vmatprep.subr.mxu0 0.0
        %1799 = vmatpush1.msra.mxu0 0.0
        %1800 = vmatprep.subr.mxu0 0.0
        %1801 = vmatpush1.msra.mxu0 0.0
        %1802 = vmatprep.subr.mxu0 0.0
        %1803 = vmatpush1.msra.mxu0 0.0
        %1804 = vmatprep.subr.mxu0 0.0
        %1805 = vmatpush1.msra.mxu0 0.0
        %1806 = vmatprep.subr.mxu0 0.0
        %1807 = vmatpush1.msra.mxu0 0.0
        %1808 = vmatprep.subr.mxu0 0.0
        %1809 = vmatpush1.msra.mxu0 0.0
        %1810 = vmatprep.subr.mxu0 0.0
        %1811 = vmatpush1.msra.mxu0 0.0
        %1812 = vmatprep.subr.mxu0 0.0
        %1813 = vmatpush1.msra.mxu0 0.0
        %1814 = vmatprep.subr.mxu0 0.0
        %1815 = vmatpush1.msra.mxu0 0.0
        %1816 = vmatprep.subr.mxu0 0.0
        %1817 = vmatpush1.msra.mxu0 0.0
        %1818 = vmatprep.subr.mxu0 0.0
        %1819 = vmatpush1.msra.mxu0 0.0
        %1820 = vmatprep.subr.mxu0 0.0
        %1821 = vmatpush1.msra.mxu0 0.0
        %1822 = vmatprep.subr.mxu0 0.0
        %1823 = vmatpush1.msra.mxu0 0.0
        %1824 = vmatprep.mubr.f32.mxu0 0.0
        %1825 = vmatmul.mubr.f32.gmra.mrb[0].mxu0 %v1736
        %v1826 = vpop.f32.mrb[0].mxu0
        %v1827 = vadd.f32 0.0, %v1826
        %v1828 = vpop.f32.mrb[0].mxu0
        %1829 = vmatprep.mubr.f32.mxu0 0.0
        %1830 = vmatmul.mubr.f32.gmra.mrb[0].mxu0 %v1737
        %v1831 = vpop.f32.mrb[0].mxu0
        %v1832 = vadd.f32 0.0, %v1831
        %v1833 = vpop.f32.mrb[0].mxu0
        %1834 = vmatprep.mubr.f32.mxu0 0.0
        %1835 = vmatmul.mubr.f32.gmra.mrb[0].mxu0 %v1738
        %v1836 = vpop.f32.mrb[0].mxu0
        %v1837 = vadd.f32 0.0, %v1836
        %v1838 = vpop.f32.mrb[0].mxu0
        %1839 = vmatprep.mubr.f32.mxu0 0.0
        %1840 = vmatmul.mubr.f32.gmra.mrb[0].mxu0 %v1739
        %v1841 = vpop.f32.mrb[0].mxu0
        %v1842 = vadd.f32 0.0, %v1841
        %v1843 = vpop.f32.mrb[0].mxu0
        %1844 = vmatprep.mubr.f32.mxu0 0.0
        %1845 = vmatmul.mubr.f32.gmra.mrb[0].mxu0 %v1740
        %v1846 = vpop.f32.mrb[0].mxu0
        %v1847 = vadd.f32 0.0, %v1846
        %v1848 = vpop.f32.mrb[0].mxu0
        %1849 = vmatprep.mubr.f32.mxu0 0.0
        %1850 = vmatmul.mubr.f32.gmra.mrb[0].mxu0 %v1741
        %v1851 = vpop.f32.mrb[0].mxu0
        %v1852 = vadd.f32 0.0, %v1851
        %v1853 = vpop.f32.mrb[0].mxu0
        %1854 = vmatprep.mubr.f32.mxu0 0.0
        %1855 = vmatmul.mubr.f32.gmra.mrb[0].mxu0 %v1742
        %v1856 = vpop.f32.mrb[0].mxu0
        %v1857 = vadd.f32 0.0, %v1856
        %v1858 = vpop.f32.mrb[0].mxu0
        %1859 = vmatprep.mubr.f32.mxu0 0.0
        %1860 = vmatmul.mubr.f32.gmra.mrb[0].mxu0 %v1743
        %v1861 = vpop.f32.mrb[0].mxu0
        %v1862 = vadd.f32 0.0, %v1861
        %v1863 = vpop.f32.mrb[0].mxu0
        %1864 = vdwg.mxu0
        %1865 = vmatprep.subr.mxu0 0.0
        %1866 = vmatpush1.msra.mxu0 %v1720
        %1867 = vmatprep.subr.mxu0 0.0
        %1868 = vmatpush1.msra.mxu0 %v1721
        %1869 = vmatprep.subr.mxu0 0.0
        %1870 = vmatpush1.msra.mxu0 %v1722
        %1871 = vmatprep.subr.mxu0 0.0
        %1872 = vmatpush1.msra.mxu0 %v1723
        %1873 = vmatprep.subr.mxu0 0.0
        %1874 = vmatpush1.msra.mxu0 %v1724
        %1875 = vmatprep.subr.mxu0 0.0
        %1876 = vmatpush1.msra.mxu0 %v1725
        %1877 = vmatprep.subr.mxu0 0.0
        %1878 = vmatpush1.msra.mxu0 %v1726
        %1879 = vmatprep.subr.mxu0 0.0
        %1880 = vmatpush1.msra.mxu0 %v1727
        %1881 = vmatprep.subr.mxu0 0.0
        %1882 = vmatpush1.msra.mxu0 %v1728
        %1883 = vmatprep.subr.mxu0 0.0
        %1884 = vmatpush1.msra.mxu0 %v1729
        %1885 = vmatprep.subr.mxu0 0.0
        %1886 = vmatpush1.msra.mxu0 %v1730
        %1887 = vmatprep.subr.mxu0 0.0
        %1888 = vmatpush1.msra.mxu0 %v1731
        %1889 = vmatprep.subr.mxu0 0.0
        %1890 = vmatpush1.msra.mxu0 %v1732
        %1891 = vmatprep.subr.mxu0 0.0
        %1892 = vmatpush1.msra.mxu0 %v1733
        %1893 = vmatprep.subr.mxu0 0.0
        %1894 = vmatpush1.msra.mxu0 %v1734
        %1895 = vmatprep.subr.mxu0 0.0
        %1896 = vmatpush1.msra.mxu0 %v1735
        %1897 = vmatprep.subr.mxu0 0.0
        %1898 = vmatpush1.msra.mxu0 0.0
        %1899 = vmatprep.subr.mxu0 0.0
        %1900 = vmatpush1.msra.mxu0 0.0
        %1901 = vmatprep.subr.mxu0 0.0
        %1902 = vmatpush1.msra.mxu0 0.0
        %1903 = vmatprep.subr.mxu0 0.0
        %1904 = vmatpush1.msra.mxu0 0.0
        %1905 = vmatprep.subr.mxu0 0.0
        %1906 = vmatpush1.msra.mxu0 0.0
        %1907 = vmatprep.subr.mxu0 0.0
        %1908 = vmatpush1.msra.mxu0 0.0
        %1909 = vmatprep.subr.mxu0 0.0
        %1910 = vmatpush1.msra.mxu0 0.0
        %1911 = vmatprep.subr.mxu0 0.0
        %1912 = vmatpush1.msra.mxu0 0.0
        %1913 = vmatprep.subr.mxu0 0.0
        %1914 = vmatpush1.msra.mxu0 0.0
        %1915 = vmatprep.subr.mxu0 0.0
        %1916 = vmatpush1.msra.mxu0 0.0
        %1917 = vmatprep.subr.mxu0 0.0
        %1918 = vmatpush1.msra.mxu0 0.0
        %1919 = vmatprep.subr.mxu0 0.0
        %1920 = vmatpush1.msra.mxu0 0.0
        %1921 = vmatprep.subr.mxu0 0.0
        %1922 = vmatpush1.msra.mxu0 0.0
        %1923 = vmatprep.subr.mxu0 0.0
        %1924 = vmatpush1.msra.mxu0 0.0
        %1925 = vmatprep.subr.mxu0 0.0
        %1926 = vmatpush1.msra.mxu0 0.0
        %1927 = vmatprep.subr.mxu0 0.0
        %1928 = vmatpush1.msra.mxu0 0.0
        %1929 = vmatprep.mubr.f32.mxu0 0.0
        %1930 = vmatmul.mubr.f32.gmra.mrb[0].mxu0 %v1712
        %v1931 = vpop.f32.mrb[0].mxu0
        %v1932 = vadd.f32 %v1827, %v1931
        %v1933 = vpop.f32.mrb[0].mxu0
        %1934 = vmatprep.mubr.f32.mxu0 0.0
        %1935 = vmatmul.mubr.f32.gmra.mrb[0].mxu0 %v1713
        %v1936 = vpop.f32.mrb[0].mxu0
        %v1937 = vadd.f32 %v1832, %v1936
        %v1938 = vpop.f32.mrb[0].mxu0
        %1939 = vmatprep.mubr.f32.mxu0 0.0
        %1940 = vmatmul.mubr.f32.gmra.mrb[0].mxu0 %v1714
        %v1941 = vpop.f32.mrb[0].mxu0
        %v1942 = vadd.f32 %v1837, %v1941
        %v1943 = vpop.f32.mrb[0].mxu0
        %1944 = vmatprep.mubr.f32.mxu0 0.0
        %1945 = vmatmul.mubr.f32.gmra.mrb[0].mxu0 %v1715
        %v1946 = vpop.f32.mrb[0].mxu0
        %v1947 = vadd.f32 %v1842, %v1946
        %v1948 = vpop.f32.mrb[0].mxu0
        %1949 = vmatprep.mubr.f32.mxu0 0.0
        %1950 = vmatmul.mubr.f32.gmra.mrb[0].mxu0 %v1716
        %v1951 = vpop.f32.mrb[0].mxu0
        %v1952 = vadd.f32 %v1847, %v1951
        %v1953 = vpop.f32.mrb[0].mxu0
        %1954 = vmatprep.mubr.f32.mxu0 0.0
        %1955 = vmatmul.mubr.f32.gmra.mrb[0].mxu0 %v1717
        %v1956 = vpop.f32.mrb[0].mxu0
        %v1957 = vadd.f32 %v1852, %v1956
        %v1958 = vpop.f32.mrb[0].mxu0
        %1959 = vmatprep.mubr.f32.mxu0 0.0
        %1960 = vmatmul.mubr.f32.gmra.mrb[0].mxu0 %v1718
        %v1961 = vpop.f32.mrb[0].mxu0
        %v1962 = vadd.f32 %v1857, %v1961
        %v1963 = vpop.f32.mrb[0].mxu0
        %1964 = vmatprep.mubr.f32.mxu0 0.0
        %1965 = vmatmul.mubr.f32.gmra.mrb[0].mxu0 %v1719
        %v1966 = vpop.f32.mrb[0].mxu0
        %v1967 = vadd.f32 %v1862, %v1966
        %v1968 = vpop.f32.mrb[0].mxu0
        %1969 = vdwg.mxu0
        %s1970 = scalar_lea.vmem [#allocation3], 16
        %v1971 = vld [vmem:[%s1970] sm:$0xff]
        %v1972 = vld [vmem:[%s1970 + $0x10] sm:$0xff]
        %v1973 = vld [vmem:[%s1970 + $0x20] sm:$0xff]
        %v1974 = vld [vmem:[%s1970 + $0x30] sm:$0xff]
        %v1975 = vld [vmem:[%s1970 + $0x40] sm:$0xff]
        %v1976 = vld [vmem:[%s1970 + $0x50] sm:$0xff]
        %v1977 = vld [vmem:[%s1970 + $0x60] sm:$0xff]
        %v1978 = vld [vmem:[%s1970 + $0x70] sm:$0xff]
        %v1979 = vld [vmem:[#allocation12 + $0x100] sm:$0xff]
        %v1980 = vld [vmem:[#allocation12 + $0x108] sm:$0xff]
        %v1981 = vld [vmem:[#allocation12 + $0x110] sm:$0xff]
        %v1982 = vld [vmem:[#allocation12 + $0x118] sm:$0xff]
        %v1983 = vld [vmem:[#allocation12 + $0x120] sm:$0xff]
        %v1984 = vld [vmem:[#allocation12 + $0x128] sm:$0xff]
        %v1985 = vld [vmem:[#allocation12 + $0x130] sm:$0xff]
        %v1986 = vld [vmem:[#allocation12 + $0x138] sm:$0xff]
        %v1987 = vld [vmem:[#allocation12 + $0x140] sm:$0xff]
        %v1988 = vld [vmem:[#allocation12 + $0x148] sm:$0xff]
        %v1989 = vld [vmem:[#allocation12 + $0x150] sm:$0xff]
        %v1990 = vld [vmem:[#allocation12 + $0x158] sm:$0xff]
        %v1991 = vld [vmem:[#allocation12 + $0x160] sm:$0xff]
        %v1992 = vld [vmem:[#allocation12 + $0x168] sm:$0xff]
        %v1993 = vld [vmem:[#allocation12 + $0x170] sm:$0xff]
        %v1994 = vld [vmem:[#allocation12 + $0x178] sm:$0xff]
        %1995 = vmatprep.subr.mxu0 0.0
        %1996 = vmatpush1.msra.mxu0 %v1979
        %1997 = vmatprep.subr.mxu0 0.0
        %1998 = vmatpush1.msra.mxu0 %v1980
        %1999 = vmatprep.subr.mxu0 0.0
        %2000 = vmatpush1.msra.mxu0 %v1981
        %2001 = vmatprep.subr.mxu0 0.0
        %2002 = vmatpush1.msra.mxu0 %v1982
        %2003 = vmatprep.subr.mxu0 0.0
        %2004 = vmatpush1.msra.mxu0 %v1983
        %2005 = vmatprep.subr.mxu0 0.0
        %2006 = vmatpush1.msra.mxu0 %v1984
        %2007 = vmatprep.subr.mxu0 0.0
        %2008 = vmatpush1.msra.mxu0 %v1985
        %2009 = vmatprep.subr.mxu0 0.0
        %2010 = vmatpush1.msra.mxu0 %v1986
        %2011 = vmatprep.subr.mxu0 0.0
        %2012 = vmatpush1.msra.mxu0 %v1987
        %2013 = vmatprep.subr.mxu0 0.0
        %2014 = vmatpush1.msra.mxu0 %v1988
        %2015 = vmatprep.subr.mxu0 0.0
        %2016 = vmatpush1.msra.mxu0 %v1989
        %2017 = vmatprep.subr.mxu0 0.0
        %2018 = vmatpush1.msra.mxu0 %v1990
        %2019 = vmatprep.subr.mxu0 0.0
        %2020 = vmatpush1.msra.mxu0 %v1991
        %2021 = vmatprep.subr.mxu0 0.0
        %2022 = vmatpush1.msra.mxu0 %v1992
        %2023 = vmatprep.subr.mxu0 0.0
        %2024 = vmatpush1.msra.mxu0 %v1993
        %2025 = vmatprep.subr.mxu0 0.0
        %2026 = vmatpush1.msra.mxu0 %v1994
        %2027 = vmatprep.subr.mxu0 0.0
        %2028 = vmatpush1.msra.mxu0 0.0
        %2029 = vmatprep.subr.mxu0 0.0
        %2030 = vmatpush1.msra.mxu0 0.0
        %2031 = vmatprep.subr.mxu0 0.0
        %2032 = vmatpush1.msra.mxu0 0.0
        %2033 = vmatprep.subr.mxu0 0.0
        %2034 = vmatpush1.msra.mxu0 0.0
        %2035 = vmatprep.subr.mxu0 0.0
        %2036 = vmatpush1.msra.mxu0 0.0
        %2037 = vmatprep.subr.mxu0 0.0
        %2038 = vmatpush1.msra.mxu0 0.0
        %2039 = vmatprep.subr.mxu0 0.0
        %2040 = vmatpush1.msra.mxu0 0.0
        %2041 = vmatprep.subr.mxu0 0.0
        %2042 = vmatpush1.msra.mxu0 0.0
        %2043 = vmatprep.subr.mxu0 0.0
        %2044 = vmatpush1.msra.mxu0 0.0
        %2045 = vmatprep.subr.mxu0 0.0
        %2046 = vmatpush1.msra.mxu0 0.0
        %2047 = vmatprep.subr.mxu0 0.0
        %2048 = vmatpush1.msra.mxu0 0.0
        %2049 = vmatprep.subr.mxu0 0.0
        %2050 = vmatpush1.msra.mxu0 0.0
        %2051 = vmatprep.subr.mxu0 0.0
        %2052 = vmatpush1.msra.mxu0 0.0
        %2053 = vmatprep.subr.mxu0 0.0
        %2054 = vmatpush1.msra.mxu0 0.0
        %2055 = vmatprep.subr.mxu0 0.0
        %2056 = vmatpush1.msra.mxu0 0.0
        %2057 = vmatprep.subr.mxu0 0.0
        %2058 = vmatpush1.msra.mxu0 0.0
        %2059 = vmatprep.mubr.f32.mxu0 0.0
        %2060 = vmatmul.mubr.f32.gmra.mrb[0].mxu0 %v1971
        %v2061 = vpop.f32.mrb[0].mxu0
        %v2062 = vadd.f32 0.0, %v2061
        %v2063 = vpop.f32.mrb[0].mxu0
        %2064 = vmatprep.mubr.f32.mxu0 0.0
        %2065 = vmatmul.mubr.f32.gmra.mrb[0].mxu0 %v1972
        %v2066 = vpop.f32.mrb[0].mxu0
        %v2067 = vadd.f32 0.0, %v2066
        %v2068 = vpop.f32.mrb[0].mxu0
        %2069 = vmatprep.mubr.f32.mxu0 0.0
        %2070 = vmatmul.mubr.f32.gmra.mrb[0].mxu0 %v1973
        %v2071 = vpop.f32.mrb[0].mxu0
        %v2072 = vadd.f32 0.0, %v2071
        %v2073 = vpop.f32.mrb[0].mxu0
        %2074 = vmatprep.mubr.f32.mxu0 0.0
        %2075 = vmatmul.mubr.f32.gmra.mrb[0].mxu0 %v1974
        %v2076 = vpop.f32.mrb[0].mxu0
        %v2077 = vadd.f32 0.0, %v2076
        %v2078 = vpop.f32.mrb[0].mxu0
        %2079 = vmatprep.mubr.f32.mxu0 0.0
        %2080 = vmatmul.mubr.f32.gmra.mrb[0].mxu0 %v1975
        %v2081 = vpop.f32.mrb[0].mxu0
        %v2082 = vadd.f32 0.0, %v2081
        %v2083 = vpop.f32.mrb[0].mxu0
        %2084 = vmatprep.mubr.f32.mxu0 0.0
        %2085 = vmatmul.mubr.f32.gmra.mrb[0].mxu0 %v1976
        %v2086 = vpop.f32.mrb[0].mxu0
        %v2087 = vadd.f32 0.0, %v2086
        %v2088 = vpop.f32.mrb[0].mxu0
        %2089 = vmatprep.mubr.f32.mxu0 0.0
        %2090 = vmatmul.mubr.f32.gmra.mrb[0].mxu0 %v1977
        %v2091 = vpop.f32.mrb[0].mxu0
        %v2092 = vadd.f32 0.0, %v2091
        %v2093 = vpop.f32.mrb[0].mxu0
        %2094 = vmatprep.mubr.f32.mxu0 0.0
        %2095 = vmatmul.mubr.f32.gmra.mrb[0].mxu0 %v1978
        %v2096 = vpop.f32.mrb[0].mxu0
        %v2097 = vadd.f32 0.0, %v2096
        %v2098 = vpop.f32.mrb[0].mxu0
        %2099 = vdwg.mxu0
        %v2100 = vadd.f32 %v1932, %v2062
        %v2101 = vadd.f32 %v1937, %v2067
        %v2102 = vadd.f32 %v1942, %v2072
        %v2103 = vadd.f32 %v1947, %v2077
        %v2104 = vadd.f32 %v1952, %v2082
        %v2105 = vadd.f32 %v1957, %v2087
        %v2106 = vadd.f32 %v1962, %v2092
        %v2107 = vadd.f32 %v1967, %v2097
        %v2108 = vld [vmem:[%s1970 + $0x1] sm:$0xff]
        %v2109 = vld [vmem:[%s1970 + $0x11] sm:$0xff]
        %v2110 = vld [vmem:[%s1970 + $0x21] sm:$0xff]
        %v2111 = vld [vmem:[%s1970 + $0x31] sm:$0xff]
        %v2112 = vld [vmem:[%s1970 + $0x41] sm:$0xff]
        %v2113 = vld [vmem:[%s1970 + $0x51] sm:$0xff]
        %v2114 = vld [vmem:[%s1970 + $0x61] sm:$0xff]
        %v2115 = vld [vmem:[%s1970 + $0x71] sm:$0xff]
        %v2116 = vld [vmem:[#allocation12 + $0x180] sm:$0xff]
        %v2117 = vld [vmem:[#allocation12 + $0x188] sm:$0xff]
        %v2118 = vld [vmem:[#allocation12 + $0x190] sm:$0xff]
        %v2119 = vld [vmem:[#allocation12 + $0x198] sm:$0xff]
        %v2120 = vld [vmem:[#allocation12 + $0x1a0] sm:$0xff]
        %v2121 = vld [vmem:[#allocation12 + $0x1a8] sm:$0xff]
        %v2122 = vld [vmem:[#allocation12 + $0x1b0] sm:$0xff]
        %v2123 = vld [vmem:[#allocation12 + $0x1b8] sm:$0xff]
        %v2124 = vld [vmem:[#allocation12 + $0x1c0] sm:$0xff]
        %v2125 = vld [vmem:[#allocation12 + $0x1c8] sm:$0xff]
        %v2126 = vld [vmem:[#allocation12 + $0x1d0] sm:$0xff]
        %v2127 = vld [vmem:[#allocation12 + $0x1d8] sm:$0xff]
        %v2128 = vld [vmem:[#allocation12 + $0x1e0] sm:$0xff]
        %v2129 = vld [vmem:[#allocation12 + $0x1e8] sm:$0xff]
        %v2130 = vld [vmem:[#allocation12 + $0x1f0] sm:$0xff]
        %v2131 = vld [vmem:[#allocation12 + $0x1f8] sm:$0xff]
        %2132 = vmatprep.subr.mxu0 0.0
        %2133 = vmatpush1.msra.mxu0 %v2116
        %2134 = vmatprep.subr.mxu0 0.0
        %2135 = vmatpush1.msra.mxu0 %v2117
        %2136 = vmatprep.subr.mxu0 0.0
        %2137 = vmatpush1.msra.mxu0 %v2118
        %2138 = vmatprep.subr.mxu0 0.0
        %2139 = vmatpush1.msra.mxu0 %v2119
        %2140 = vmatprep.subr.mxu0 0.0
        %2141 = vmatpush1.msra.mxu0 %v2120
        %2142 = vmatprep.subr.mxu0 0.0
        %2143 = vmatpush1.msra.mxu0 %v2121
        %2144 = vmatprep.subr.mxu0 0.0
        %2145 = vmatpush1.msra.mxu0 %v2122
        %2146 = vmatprep.subr.mxu0 0.0
        %2147 = vmatpush1.msra.mxu0 %v2123
        %2148 = vmatprep.subr.mxu0 0.0
        %2149 = vmatpush1.msra.mxu0 %v2124
        %2150 = vmatprep.subr.mxu0 0.0
        %2151 = vmatpush1.msra.mxu0 %v2125
        %2152 = vmatprep.subr.mxu0 0.0
        %2153 = vmatpush1.msra.mxu0 %v2126
        %2154 = vmatprep.subr.mxu0 0.0
        %2155 = vmatpush1.msra.mxu0 %v2127
        %2156 = vmatprep.subr.mxu0 0.0
        %2157 = vmatpush1.msra.mxu0 %v2128
        %2158 = vmatprep.subr.mxu0 0.0
        %2159 = vmatpush1.msra.mxu0 %v2129
        %2160 = vmatprep.subr.mxu0 0.0
        %2161 = vmatpush1.msra.mxu0 %v2130
        %2162 = vmatprep.subr.mxu0 0.0
        %2163 = vmatpush1.msra.mxu0 %v2131
        %2164 = vmatprep.subr.mxu0 0.0
        %2165 = vmatpush1.msra.mxu0 0.0
        %2166 = vmatprep.subr.mxu0 0.0
        %2167 = vmatpush1.msra.mxu0 0.0
        %2168 = vmatprep.subr.mxu0 0.0
        %2169 = vmatpush1.msra.mxu0 0.0
        %2170 = vmatprep.subr.mxu0 0.0
        %2171 = vmatpush1.msra.mxu0 0.0
        %2172 = vmatprep.subr.mxu0 0.0
        %2173 = vmatpush1.msra.mxu0 0.0
        %2174 = vmatprep.subr.mxu0 0.0
        %2175 = vmatpush1.msra.mxu0 0.0
        %2176 = vmatprep.subr.mxu0 0.0
        %2177 = vmatpush1.msra.mxu0 0.0
        %2178 = vmatprep.subr.mxu0 0.0
        %2179 = vmatpush1.msra.mxu0 0.0
        %2180 = vmatprep.subr.mxu0 0.0
        %2181 = vmatpush1.msra.mxu0 0.0
        %2182 = vmatprep.subr.mxu0 0.0
        %2183 = vmatpush1.msra.mxu0 0.0
        %2184 = vmatprep.subr.mxu0 0.0
        %2185 = vmatpush1.msra.mxu0 0.0
        %2186 = vmatprep.subr.mxu0 0.0
        %2187 = vmatpush1.msra.mxu0 0.0
        %2188 = vmatprep.subr.mxu0 0.0
        %2189 = vmatpush1.msra.mxu0 0.0
        %2190 = vmatprep.subr.mxu0 0.0
        %2191 = vmatpush1.msra.mxu0 0.0
        %2192 = vmatprep.subr.mxu0 0.0
        %2193 = vmatpush1.msra.mxu0 0.0
        %2194 = vmatprep.subr.mxu0 0.0
        %2195 = vmatpush1.msra.mxu0 0.0
        %2196 = vmatprep.mubr.f32.mxu0 0.0
        %2197 = vmatmul.mubr.f32.gmra.mrb[0].mxu0 %v2108
        %v2198 = vpop.f32.mrb[0].mxu0
        %v2199 = vadd.f32 0.0, %v2198
        %v2200 = vpop.f32.mrb[0].mxu0
        %2201 = vmatprep.mubr.f32.mxu0 0.0
        %2202 = vmatmul.mubr.f32.gmra.mrb[0].mxu0 %v2109
        %v2203 = vpop.f32.mrb[0].mxu0
        %v2204 = vadd.f32 0.0, %v2203
        %v2205 = vpop.f32.mrb[0].mxu0
        %2206 = vmatprep.mubr.f32.mxu0 0.0
        %2207 = vmatmul.mubr.f32.gmra.mrb[0].mxu0 %v2110
        %v2208 = vpop.f32.mrb[0].mxu0
        %v2209 = vadd.f32 0.0, %v2208
        %v2210 = vpop.f32.mrb[0].mxu0
        %2211 = vmatprep.mubr.f32.mxu0 0.0
        %2212 = vmatmul.mubr.f32.gmra.mrb[0].mxu0 %v2111
        %v2213 = vpop.f32.mrb[0].mxu0
        %v2214 = vadd.f32 0.0, %v2213
        %v2215 = vpop.f32.mrb[0].mxu0
        %2216 = vmatprep.mubr.f32.mxu0 0.0
        %2217 = vmatmul.mubr.f32.gmra.mrb[0].mxu0 %v2112
        %v2218 = vpop.f32.mrb[0].mxu0
        %v2219 = vadd.f32 0.0, %v2218
        %v2220 = vpop.f32.mrb[0].mxu0
        %2221 = vmatprep.mubr.f32.mxu0 0.0
        %2222 = vmatmul.mubr.f32.gmra.mrb[0].mxu0 %v2113
        %v2223 = vpop.f32.mrb[0].mxu0
        %v2224 = vadd.f32 0.0, %v2223
        %v2225 = vpop.f32.mrb[0].mxu0
        %2226 = vmatprep.mubr.f32.mxu0 0.0
        %2227 = vmatmul.mubr.f32.gmra.mrb[0].mxu0 %v2114
        %v2228 = vpop.f32.mrb[0].mxu0
        %v2229 = vadd.f32 0.0, %v2228
        %v2230 = vpop.f32.mrb[0].mxu0
        %2231 = vmatprep.mubr.f32.mxu0 0.0
        %2232 = vmatmul.mubr.f32.gmra.mrb[0].mxu0 %v2115
        %v2233 = vpop.f32.mrb[0].mxu0
        %v2234 = vadd.f32 0.0, %v2233
        %v2235 = vpop.f32.mrb[0].mxu0
        %2236 = vdwg.mxu0
        %v2237 = vadd.f32 %v2100, %v2199
        %v2238 = vadd.f32 %v2101, %v2204
        %v2239 = vadd.f32 %v2102, %v2209
        %v2240 = vadd.f32 %v2103, %v2214
        %v2241 = vadd.f32 %v2104, %v2219
        %v2242 = vadd.f32 %v2105, %v2224
        %v2243 = vadd.f32 %v2106, %v2229
        %v2244 = vadd.f32 %v2107, %v2234
        %s2245 = scalar_lea.vmem [#allocation3], 32
        %v2246 = vld [vmem:[%s2245] sm:$0xff]
        %v2247 = vld [vmem:[%s2245 + $0x10] sm:$0xff]
        %v2248 = vld [vmem:[%s2245 + $0x20] sm:$0xff]
        %v2249 = vld [vmem:[%s2245 + $0x30] sm:$0xff]
        %v2250 = vld [vmem:[%s2245 + $0x40] sm:$0xff]
        %v2251 = vld [vmem:[%s2245 + $0x50] sm:$0xff]
        %v2252 = vld [vmem:[%s2245 + $0x60] sm:$0xff]
        %v2253 = vld [vmem:[%s2245 + $0x70] sm:$0xff]
        %v2254 = vld [vmem:[#allocation12 + $0x200] sm:$0xff]
        %v2255 = vld [vmem:[#allocation12 + $0x208] sm:$0xff]
        %v2256 = vld [vmem:[#allocation12 + $0x210] sm:$0xff]
        %v2257 = vld [vmem:[#allocation12 + $0x218] sm:$0xff]
        %v2258 = vld [vmem:[#allocation12 + $0x220] sm:$0xff]
        %v2259 = vld [vmem:[#allocation12 + $0x228] sm:$0xff]
        %v2260 = vld [vmem:[#allocation12 + $0x230] sm:$0xff]
        %v2261 = vld [vmem:[#allocation12 + $0x238] sm:$0xff]
        %v2262 = vld [vmem:[#allocation12 + $0x240] sm:$0xff]
        %v2263 = vld [vmem:[#allocation12 + $0x248] sm:$0xff]
        %v2264 = vld [vmem:[#allocation12 + $0x250] sm:$0xff]
        %v2265 = vld [vmem:[#allocation12 + $0x258] sm:$0xff]
        %v2266 = vld [vmem:[#allocation12 + $0x260] sm:$0xff]
        %v2267 = vld [vmem:[#allocation12 + $0x268] sm:$0xff]
        %v2268 = vld [vmem:[#allocation12 + $0x270] sm:$0xff]
        %v2269 = vld [vmem:[#allocation12 + $0x278] sm:$0xff]
        %2270 = vmatprep.subr.mxu0 0.0
        %2271 = vmatpush1.msra.mxu0 %v2254
        %2272 = vmatprep.subr.mxu0 0.0
        %2273 = vmatpush1.msra.mxu0 %v2255
        %2274 = vmatprep.subr.mxu0 0.0
        %2275 = vmatpush1.msra.mxu0 %v2256
        %2276 = vmatprep.subr.mxu0 0.0
        %2277 = vmatpush1.msra.mxu0 %v2257
        %2278 = vmatprep.subr.mxu0 0.0
        %2279 = vmatpush1.msra.mxu0 %v2258
        %2280 = vmatprep.subr.mxu0 0.0
        %2281 = vmatpush1.msra.mxu0 %v2259
        %2282 = vmatprep.subr.mxu0 0.0
        %2283 = vmatpush1.msra.mxu0 %v2260
        %2284 = vmatprep.subr.mxu0 0.0
        %2285 = vmatpush1.msra.mxu0 %v2261
        %2286 = vmatprep.subr.mxu0 0.0
        %2287 = vmatpush1.msra.mxu0 %v2262
        %2288 = vmatprep.subr.mxu0 0.0
        %2289 = vmatpush1.msra.mxu0 %v2263
        %2290 = vmatprep.subr.mxu0 0.0
        %2291 = vmatpush1.msra.mxu0 %v2264
        %2292 = vmatprep.subr.mxu0 0.0
        %2293 = vmatpush1.msra.mxu0 %v2265
        %2294 = vmatprep.subr.mxu0 0.0
        %2295 = vmatpush1.msra.mxu0 %v2266
        %2296 = vmatprep.subr.mxu0 0.0
        %2297 = vmatpush1.msra.mxu0 %v2267
        %2298 = vmatprep.subr.mxu0 0.0
        %2299 = vmatpush1.msra.mxu0 %v2268
        %2300 = vmatprep.subr.mxu0 0.0
        %2301 = vmatpush1.msra.mxu0 %v2269
        %2302 = vmatprep.subr.mxu0 0.0
        %2303 = vmatpush1.msra.mxu0 0.0
        %2304 = vmatprep.subr.mxu0 0.0
        %2305 = vmatpush1.msra.mxu0 0.0
        %2306 = vmatprep.subr.mxu0 0.0
        %2307 = vmatpush1.msra.mxu0 0.0
        %2308 = vmatprep.subr.mxu0 0.0
        %2309 = vmatpush1.msra.mxu0 0.0
        %2310 = vmatprep.subr.mxu0 0.0
        %2311 = vmatpush1.msra.mxu0 0.0
        %2312 = vmatprep.subr.mxu0 0.0
        %2313 = vmatpush1.msra.mxu0 0.0
        %2314 = vmatprep.subr.mxu0 0.0
        %2315 = vmatpush1.msra.mxu0 0.0
        %2316 = vmatprep.subr.mxu0 0.0
        %2317 = vmatpush1.msra.mxu0 0.0
        %2318 = vmatprep.subr.mxu0 0.0
        %2319 = vmatpush1.msra.mxu0 0.0
        %2320 = vmatprep.subr.mxu0 0.0
        %2321 = vmatpush1.msra.mxu0 0.0
        %2322 = vmatprep.subr.mxu0 0.0
        %2323 = vmatpush1.msra.mxu0 0.0
        %2324 = vmatprep.subr.mxu0 0.0
        %2325 = vmatpush1.msra.mxu0 0.0
        %2326 = vmatprep.subr.mxu0 0.0
        %2327 = vmatpush1.msra.mxu0 0.0
        %2328 = vmatprep.subr.mxu0 0.0
        %2329 = vmatpush1.msra.mxu0 0.0
        %2330 = vmatprep.subr.mxu0 0.0
        %2331 = vmatpush1.msra.mxu0 0.0
        %2332 = vmatprep.subr.mxu0 0.0
        %2333 = vmatpush1.msra.mxu0 0.0
        %2334 = vmatprep.mubr.f32.mxu0 0.0
        %2335 = vmatmul.mubr.f32.gmra.mrb[0].mxu0 %v2246
        %v2336 = vpop.f32.mrb[0].mxu0
        %v2337 = vadd.f32 0.0, %v2336
        %v2338 = vpop.f32.mrb[0].mxu0
        %2339 = vmatprep.mubr.f32.mxu0 0.0
        %2340 = vmatmul.mubr.f32.gmra.mrb[0].mxu0 %v2247
        %v2341 = vpop.f32.mrb[0].mxu0
        %v2342 = vadd.f32 0.0, %v2341
        %v2343 = vpop.f32.mrb[0].mxu0
        %2344 = vmatprep.mubr.f32.mxu0 0.0
        %2345 = vmatmul.mubr.f32.gmra.mrb[0].mxu0 %v2248
        %v2346 = vpop.f32.mrb[0].mxu0
        %v2347 = vadd.f32 0.0, %v2346
        %v2348 = vpop.f32.mrb[0].mxu0
        %2349 = vmatprep.mubr.f32.mxu0 0.0
        %2350 = vmatmul.mubr.f32.gmra.mrb[0].mxu0 %v2249
        %v2351 = vpop.f32.mrb[0].mxu0
        %v2352 = vadd.f32 0.0, %v2351
        %v2353 = vpop.f32.mrb[0].mxu0
        %2354 = vmatprep.mubr.f32.mxu0 0.0
        %2355 = vmatmul.mubr.f32.gmra.mrb[0].mxu0 %v2250
        %v2356 = vpop.f32.mrb[0].mxu0
        %v2357 = vadd.f32 0.0, %v2356
        %v2358 = vpop.f32.mrb[0].mxu0
        %2359 = vmatprep.mubr.f32.mxu0 0.0
        %2360 = vmatmul.mubr.f32.gmra.mrb[0].mxu0 %v2251
        %v2361 = vpop.f32.mrb[0].mxu0
        %v2362 = vadd.f32 0.0, %v2361
        %v2363 = vpop.f32.mrb[0].mxu0
        %2364 = vmatprep.mubr.f32.mxu0 0.0
        %2365 = vmatmul.mubr.f32.gmra.mrb[0].mxu0 %v2252
        %v2366 = vpop.f32.mrb[0].mxu0
        %v2367 = vadd.f32 0.0, %v2366
        %v2368 = vpop.f32.mrb[0].mxu0
        %2369 = vmatprep.mubr.f32.mxu0 0.0
        %2370 = vmatmul.mubr.f32.gmra.mrb[0].mxu0 %v2253
        %v2371 = vpop.f32.mrb[0].mxu0
        %v2372 = vadd.f32 0.0, %v2371
        %v2373 = vpop.f32.mrb[0].mxu0
        %2374 = vdwg.mxu0
        %v2375 = vadd.f32 %v2237, %v2337
        %v2376 = vadd.f32 %v2238, %v2342
        %v2377 = vadd.f32 %v2239, %v2347
        %v2378 = vadd.f32 %v2240, %v2352
        %v2379 = vadd.f32 %v2241, %v2357
        %v2380 = vadd.f32 %v2242, %v2362
        %v2381 = vadd.f32 %v2243, %v2367
        %v2382 = vadd.f32 %v2244, %v2372
        %v2383 = vld [vmem:[%s2245 + $0x1] sm:$0xff]
        %v2384 = vld [vmem:[%s2245 + $0x11] sm:$0xff]
        %v2385 = vld [vmem:[%s2245 + $0x21] sm:$0xff]
        %v2386 = vld [vmem:[%s2245 + $0x31] sm:$0xff]
        %v2387 = vld [vmem:[%s2245 + $0x41] sm:$0xff]
        %v2388 = vld [vmem:[%s2245 + $0x51] sm:$0xff]
        %v2389 = vld [vmem:[%s2245 + $0x61] sm:$0xff]
        %v2390 = vld [vmem:[%s2245 + $0x71] sm:$0xff]
        %v2391 = vld [vmem:[#allocation12 + $0x280] sm:$0xff]
        %v2392 = vld [vmem:[#allocation12 + $0x288] sm:$0xff]
        %v2393 = vld [vmem:[#allocation12 + $0x290] sm:$0xff]
        %v2394 = vld [vmem:[#allocation12 + $0x298] sm:$0xff]
        %v2395 = vld [vmem:[#allocation12 + $0x2a0] sm:$0xff]
        %v2396 = vld [vmem:[#allocation12 + $0x2a8] sm:$0xff]
        %v2397 = vld [vmem:[#allocation12 + $0x2b0] sm:$0xff]
        %v2398 = vld [vmem:[#allocation12 + $0x2b8] sm:$0xff]
        %v2399 = vld [vmem:[#allocation12 + $0x2c0] sm:$0xff]
        %v2400 = vld [vmem:[#allocation12 + $0x2c8] sm:$0xff]
        %v2401 = vld [vmem:[#allocation12 + $0x2d0] sm:$0xff]
        %v2402 = vld [vmem:[#allocation12 + $0x2d8] sm:$0xff]
        %v2403 = vld [vmem:[#allocation12 + $0x2e0] sm:$0xff]
        %v2404 = vld [vmem:[#allocation12 + $0x2e8] sm:$0xff]
        %v2405 = vld [vmem:[#allocation12 + $0x2f0] sm:$0xff]
        %v2406 = vld [vmem:[#allocation12 + $0x2f8] sm:$0xff]
        %2407 = vmatprep.subr.mxu0 0.0
        %2408 = vmatpush1.msra.mxu0 %v2391
        %2409 = vmatprep.subr.mxu0 0.0
        %2410 = vmatpush1.msra.mxu0 %v2392
        %2411 = vmatprep.subr.mxu0 0.0
        %2412 = vmatpush1.msra.mxu0 %v2393
        %2413 = vmatprep.subr.mxu0 0.0
        %2414 = vmatpush1.msra.mxu0 %v2394
        %2415 = vmatprep.subr.mxu0 0.0
        %2416 = vmatpush1.msra.mxu0 %v2395
        %2417 = vmatprep.subr.mxu0 0.0
        %2418 = vmatpush1.msra.mxu0 %v2396
        %2419 = vmatprep.subr.mxu0 0.0
        %2420 = vmatpush1.msra.mxu0 %v2397
        %2421 = vmatprep.subr.mxu0 0.0
        %2422 = vmatpush1.msra.mxu0 %v2398
        %2423 = vmatprep.subr.mxu0 0.0
        %2424 = vmatpush1.msra.mxu0 %v2399
        %2425 = vmatprep.subr.mxu0 0.0
        %2426 = vmatpush1.msra.mxu0 %v2400
        %2427 = vmatprep.subr.mxu0 0.0
        %2428 = vmatpush1.msra.mxu0 %v2401
        %2429 = vmatprep.subr.mxu0 0.0
        %2430 = vmatpush1.msra.mxu0 %v2402
        %2431 = vmatprep.subr.mxu0 0.0
        %2432 = vmatpush1.msra.mxu0 %v2403
        %2433 = vmatprep.subr.mxu0 0.0
        %2434 = vmatpush1.msra.mxu0 %v2404
        %2435 = vmatprep.subr.mxu0 0.0
        %2436 = vmatpush1.msra.mxu0 %v2405
        %2437 = vmatprep.subr.mxu0 0.0
        %2438 = vmatpush1.msra.mxu0 %v2406
        %2439 = vmatprep.subr.mxu0 0.0
        %2440 = vmatpush1.msra.mxu0 0.0
        %2441 = vmatprep.subr.mxu0 0.0
        %2442 = vmatpush1.msra.mxu0 0.0
        %2443 = vmatprep.subr.mxu0 0.0
        %2444 = vmatpush1.msra.mxu0 0.0
        %2445 = vmatprep.subr.mxu0 0.0
        %2446 = vmatpush1.msra.mxu0 0.0
        %2447 = vmatprep.subr.mxu0 0.0
        %2448 = vmatpush1.msra.mxu0 0.0
        %2449 = vmatprep.subr.mxu0 0.0
        %2450 = vmatpush1.msra.mxu0 0.0
        %2451 = vmatprep.subr.mxu0 0.0
        %2452 = vmatpush1.msra.mxu0 0.0
        %2453 = vmatprep.subr.mxu0 0.0
        %2454 = vmatpush1.msra.mxu0 0.0
        %2455 = vmatprep.subr.mxu0 0.0
        %2456 = vmatpush1.msra.mxu0 0.0
        %2457 = vmatprep.subr.mxu0 0.0
        %2458 = vmatpush1.msra.mxu0 0.0
        %2459 = vmatprep.subr.mxu0 0.0
        %2460 = vmatpush1.msra.mxu0 0.0
        %2461 = vmatprep.subr.mxu0 0.0
        %2462 = vmatpush1.msra.mxu0 0.0
        %2463 = vmatprep.subr.mxu0 0.0
        %2464 = vmatpush1.msra.mxu0 0.0
        %2465 = vmatprep.subr.mxu0 0.0
        %2466 = vmatpush1.msra.mxu0 0.0
        %2467 = vmatprep.subr.mxu0 0.0
        %2468 = vmatpush1.msra.mxu0 0.0
        %2469 = vmatprep.subr.mxu0 0.0
        %2470 = vmatpush1.msra.mxu0 0.0
        %2471 = vmatprep.mubr.f32.mxu0 0.0
        %2472 = vmatmul.mubr.f32.gmra.mrb[0].mxu0 %v2383
        %v2473 = vpop.f32.mrb[0].mxu0
        %v2474 = vadd.f32 0.0, %v2473
        %v2475 = vpop.f32.mrb[0].mxu0
        %2476 = vmatprep.mubr.f32.mxu0 0.0
        %2477 = vmatmul.mubr.f32.gmra.mrb[0].mxu0 %v2384
        %v2478 = vpop.f32.mrb[0].mxu0
        %v2479 = vadd.f32 0.0, %v2478
        %v2480 = vpop.f32.mrb[0].mxu0
        %2481 = vmatprep.mubr.f32.mxu0 0.0
        %2482 = vmatmul.mubr.f32.gmra.mrb[0].mxu0 %v2385
        %v2483 = vpop.f32.mrb[0].mxu0
        %v2484 = vadd.f32 0.0, %v2483
        %v2485 = vpop.f32.mrb[0].mxu0
        %2486 = vmatprep.mubr.f32.mxu0 0.0
        %2487 = vmatmul.mubr.f32.gmra.mrb[0].mxu0 %v2386
        %v2488 = vpop.f32.mrb[0].mxu0
        %v2489 = vadd.f32 0.0, %v2488
        %v2490 = vpop.f32.mrb[0].mxu0
        %2491 = vmatprep.mubr.f32.mxu0 0.0
        %2492 = vmatmul.mubr.f32.gmra.mrb[0].mxu0 %v2387
        %v2493 = vpop.f32.mrb[0].mxu0
        %v2494 = vadd.f32 0.0, %v2493
        %v2495 = vpop.f32.mrb[0].mxu0
        %2496 = vmatprep.mubr.f32.mxu0 0.0
        %2497 = vmatmul.mubr.f32.gmra.mrb[0].mxu0 %v2388
        %v2498 = vpop.f32.mrb[0].mxu0
        %v2499 = vadd.f32 0.0, %v2498
        %v2500 = vpop.f32.mrb[0].mxu0
        %2501 = vmatprep.mubr.f32.mxu0 0.0
        %2502 = vmatmul.mubr.f32.gmra.mrb[0].mxu0 %v2389
        %v2503 = vpop.f32.mrb[0].mxu0
        %v2504 = vadd.f32 0.0, %v2503
        %v2505 = vpop.f32.mrb[0].mxu0
        %2506 = vmatprep.mubr.f32.mxu0 0.0
        %2507 = vmatmul.mubr.f32.gmra.mrb[0].mxu0 %v2390
        %v2508 = vpop.f32.mrb[0].mxu0
        %v2509 = vadd.f32 0.0, %v2508
        %v2510 = vpop.f32.mrb[0].mxu0
        %2511 = vdwg.mxu0
        %v2512 = vadd.f32 %v2375, %v2474
        %v2513 = vadd.f32 %v2376, %v2479
        %v2514 = vadd.f32 %v2377, %v2484
        %v2515 = vadd.f32 %v2378, %v2489
        %v2516 = vadd.f32 %v2379, %v2494
        %v2517 = vadd.f32 %v2380, %v2499
        %v2518 = vadd.f32 %v2381, %v2504
        %v2519 = vadd.f32 %v2382, %v2509
        %v2520 = vld [vmem:[%s6] sm:$0x1]
        %v2522 = vlaneseq
        %v2523 = vshrl.u32 %v2522, 7
        %v2524 = vsub.s32 0, %v2523
        %v2525 = vrot.slane %v2520, %v2524
        %v2527 = vadd.f32 %v2512, %v2525
        %v2528 = vadd.f32 %v2513, %v2525
        %v2529 = vadd.f32 %v2514, %v2525
        %v2530 = vadd.f32 %v2515, %v2525
        %v2531 = vadd.f32 %v2516, %v2525
        %v2532 = vadd.f32 %v2517, %v2525
        %v2533 = vadd.f32 %v2518, %v2525
        %v2534 = vadd.f32 %v2519, %v2525
        %v2535 = vld [vmem:[%s386] sm:$0xff]
        %v2536 = vld [vmem:[%s386 + $0x8] sm:$0xff]
        %v2537 = vld [vmem:[%s386 + $0x10] sm:$0xff]
        %v2538 = vld [vmem:[%s386 + $0x18] sm:$0xff]
        %v2539 = vld [vmem:[%s386 + $0x20] sm:$0xff]
        %v2540 = vld [vmem:[%s386 + $0x28] sm:$0xff]
        %v2541 = vld [vmem:[%s386 + $0x30] sm:$0xff]
        %v2542 = vld [vmem:[%s386 + $0x38] sm:$0xff]
        %v2543 = vadd.f32 %v2535, %v2527
        %v2544 = vadd.f32 %v2536, %v2528
        %v2545 = vadd.f32 %v2537, %v2529
        %v2546 = vadd.f32 %v2538, %v2530
        %v2547 = vadd.f32 %v2539, %v2531
        %v2548 = vadd.f32 %v2540, %v2532
        %v2549 = vadd.f32 %v2541, %v2533
        %v2550 = vadd.f32 %v2542, %v2534
        %2551 = vst [vmem:[%s452] sm:$0xff] %v2543
        %2552 = vst [vmem:[%s452 + $0x8] sm:$0xff] %v2544
        %2553 = vst [vmem:[%s452 + $0x10] sm:$0xff] %v2545
        %2554 = vst [vmem:[%s452 + $0x18] sm:$0xff] %v2546
        %2555 = vst [vmem:[%s452 + $0x20] sm:$0xff] %v2547
        %2556 = vst [vmem:[%s452 + $0x28] sm:$0xff] %v2548
        %2557 = vst [vmem:[%s452 + $0x30] sm:$0xff] %v2549
        %2558 = vst [vmem:[%s452 + $0x38] sm:$0xff] %v2550
        %s2559 = sand.u32 %s234, 1
        %s2560 = scalar_lea.sflag [#allocation6], %s2559
        %s2561 = sand.u32 %s234, 1
        %s2562 = smul.addr %s2561, 64
        %s2563 = scalar_lea.vmem [#allocation13], %s2562
        // Predicated region
        $region85: #{tpu_custom_call.1} parent=47 // pred_check
          %p2564 = pneg %p244
        $region86: #{tpu_custom_call.1} parent=47 // pred_check_branch
          %2566 = sbr.rel (%p2564) target = $region88
        $region87: #{tpu_custom_call.1} parent=47 // pred_region
          %s2567 = smul.u32 8, %s33
          %s2569 = ssub.s32 1024, 1024
          %2570 = vsyncadd %s2560, %s2569
          %s2571 = smul.addr %s32, 24
          %s2572 = sadd.s32 %s2567, %s2571
          %s2573 = smul.addr %s2572, 128
          %s2574 = scalar_lea.hbm %s7, %s2573
          %s2575 = sshll.u32 %s2563, 4
          %s2576 = int_to_ptr.vmem [resolvable:$true] %s2575
          %2581 = dma.vmem_to_hbm [thread:$0]  %s2576, 1024, %s2574, %s2560, 128, 128, 8
        $region88: #{tpu_custom_call.1} parent=47 // pred_fallthru
          _
      $region48: #{tpu_custom_call.1} parent=5 // pred_fallthru
        _
      %p2582 = scmp.le.s32.totalorder 2, %s23
      // Predicated region
      $region89: #{tpu_custom_call.1} parent=5 // pred_check
        %p2583 = pneg %p2582
      $region90: #{tpu_custom_call.1} parent=5 // pred_check_branch
        %2585 = sbr.rel (%p2583) target = $region92
      $region91: #{tpu_custom_call.1} parent=5 // pred_region
        %s2586 = ssub.s32 %s23, 2
        // Predicated region
        $region93: #{tpu_custom_call.1} parent=91 // pred_check
          %p2587 = pneg %p250
        $region94: #{tpu_custom_call.1} parent=91 // pred_check_branch
          %2589 = sbr.rel (%p2587) target = $region96
        $region95: #{tpu_custom_call.1} parent=91 // pred_region
          %s2590 = sand.u32 %s235, 1
          %s2591 = scalar_lea.sflag [#allocation6], %s2590
          %s2592 = sand.u32 %s235, 1
          %s2593 = smul.addr %s2592, 64
          %s2594 = scalar_lea.vmem [#allocation13], %s2593
          %2595 = dma.done %s2591, 1024
        $region96: #{tpu_custom_call.1} parent=91 // pred_fallthru
          _
      $region92: #{tpu_custom_call.1} parent=5 // pred_fallthru
        _
    $region6: #{tpu_custom_call.1} parent=1 // loop_footer
      %s27 = sadd.s32 1, %s23
    $region7: #{tpu_custom_call.1} parent=1 // loop_footer_branch
      %22 = sbr.rel target = $region3
    $region8: #{tpu_custom_call.1} parent=1 // loop_exit
      _
    %2596 = vsyncpa [#allocation5], 1
    %s2597 = scalar_lea.sflag [#allocation5], 1
    %2598 = vsyncpa %s2597, 1
    %2599 = vsyncpa [#allocation8], 1
    %s2600 = scalar_lea.sflag [#allocation8], 1
    %2601 = vsyncpa %s2600, 1
    %2602 = vsyncpa [#allocation11], 1
    %2603 = vsyncpa [#allocation6], 1
    %s2604 = scalar_lea.sflag [#allocation6], 1
    %2605 = vsyncpa %s2604, 1

</llo_original>
